<compile_context>
chip_gen: v7x
topology: tpu7x:2x2x1
jax: 0.10.0
libtpu: 0.0.40
codegen_flags: <defaults>
</compile_context>

<pallas_src>
import jax
import jax.numpy as jnp
from jax.experimental import pallas as pl
from jax.experimental.pallas import tpu as pltpu


_WEIGHT_ORDER = (
    "n1_g", "n1_b", "n2_g", "n2_b", "n3_g", "n3_b",
    "sa_wq", "sa_bq", "sa_wk", "sa_bk", "sa_wv", "sa_bv", "sa_wo", "sa_bo",
    "xa_wq", "xa_bq", "xa_wk", "xa_bk", "xa_wv", "xa_bv", "xa_wo", "xa_bo",
    "ff_w1", "ff_b1", "ff_w2", "ff_b2",
)
_MATMUL_WEIGHTS = frozenset([
    "sa_wq", "sa_wk", "sa_wv", "sa_wo",
    "xa_wq", "xa_wk", "xa_wv", "xa_wo",
    "ff_w1", "ff_w2",
])


# ----------------------------- in-kernel helpers -----------------------------

def _layernorm(x, g_ref, b_ref, eps=1e-5):
    mu = jnp.mean(x, axis=-1, keepdims=True)
    var = jnp.mean(jnp.square(x - mu), axis=-1, keepdims=True)
    return (x - mu) * jax.lax.rsqrt(var + eps) * g_ref[...] + b_ref[...]


def _mha(xq, xkv, mask_ref, causal, n_kv,
         wq, bq, wk, bk, wv, bv, wo, bo,
         q_scr, k_scr, v_scr, ctx_scr,
         num_heads, bb, tq, cdt):
    """Head-batched MHA on flattened operands.

    xq: (bb*tq, D) f32, xkv: (bb*n_kv, D) f32 -> returns (bb*tq, D) f32.
    """
    D = xq.shape[-1]
    H = num_heads
    dh = D // H
    scale = 1.0 / (dh ** 0.5)

    # Projections on the tall flattened operand (bf16 into MXU, f32 accumulate).
    q = jnp.dot(xq.astype(cdt), wq[...], preferred_element_type=jnp.float32)
    q = (q + bq[...]) * scale                       # fold 1/sqrt(dh) into Q once
    k = jnp.dot(xkv.astype(cdt), wk[...], preferred_element_type=jnp.float32) + bk[...]
    v = jnp.dot(xkv.astype(cdt), wv[...], preferred_element_type=jnp.float32) + bv[...]
    q = q.astype(cdt)
    k = k.astype(cdt)
    v = v.astype(cdt)

    # One cheap relayout into head-major scratch; afterwards the score and PV
    # matmuls are single head-batched einsums (no per-head matmul loop/concat).
    for b in range(bb):
        for h in range(H):
            i = b * H + h
            q_scr[i] = q[b * tq:(b + 1) * tq, h * dh:(h + 1) * dh]
            k_scr[i] = k[b * n_kv:(b + 1) * n_kv, h * dh:(h + 1) * dh]
            v_scr[i] = v[b * n_kv:(b + 1) * n_kv, h * dh:(h + 1) * dh]

    if causal:   # generated in-kernel: no [B, T, T] mask DMA needed
        rows = jax.lax.broadcasted_iota(jnp.int32, (tq, n_kv), 0)
        cols = jax.lax.broadcasted_iota(jnp.int32, (tq, n_kv), 1)
        causal_bias = jnp.where(rows >= cols, 0.0, -1e9).astype(jnp.float32)

    for b in range(bb):
        if mask_ref is not None:
            bias = jnp.where(mask_ref[b] > 0, 0.0, -1e9).astype(jnp.float32)
        elif causal:
            bias = causal_bias
        else:
            bias = None

        qh = q_scr[b * H:(b + 1) * H]               # (H, tq,   dh)
        kh = k_scr[b * H:(b + 1) * H]               # (H, n_kv, dh)
        vh = v_scr[b * H:(b + 1) * H]               # (H, n_kv, dh)

        s = jnp.einsum("htd,hsd->hts", qh, kh,
                       preferred_element_type=jnp.float32)
        if bias is not None:
            s = s + bias[None]                      # bias shared across heads
        m = jnp.max(s, axis=-1, keepdims=True)
        p = jnp.exp(s - m)
        denom = jnp.sum(p, axis=-1, keepdims=True)
        p = p * pl.reciprocal(denom, approx=True)   # EUP slot, off the VALU path
        ctx = jnp.einsum("hts,hsd->htd", p.astype(cdt), vh,
                         preferred_element_type=jnp.float32).astype(cdt)
        for h in range(H):
            ctx_scr[b * tq:(b + 1) * tq, h * dh:(h + 1) * dh] = ctx[h]

    return jnp.dot(ctx_scr[...], wo[...],
                   preferred_element_type=jnp.float32) + bo[...]


# --------------------------------- kernel ------------------------------------

def _make_kernel(num_heads, bb, T, S, D, has_tmask, has_mmask, cdt):
    def kernel(*refs):
        q_scr, ks_scr, vs_scr, kx_scr, vx_scr, ctx_scr = refs[-6:]
        out_ref = refs[-7]
        it = iter(refs[:-7])
        tgt_ref = next(it)
        tmask_ref = next(it) if has_tmask else None
        mem_ref = next(it)
        mmask_ref = next(it) if has_mmask else None
        w = {name: next(it) for name in _WEIGHT_ORDER}

        x0 = tgt_ref[...].reshape(bb * T, D).astype(jnp.float32)
        memf = mem_ref[...].reshape(bb * S, D).astype(jnp.float32)

        # ---- self-attention block (pre-norm, residual) ----
        xq = _layernorm(x0, w["n1_g"], w["n1_b"])
        sa = _mha(xq, xq, tmask_ref, tmask_ref is None, T,
                  w["sa_wq"], w["sa_bq"], w["sa_wk"], w["sa_bk"],
                  w["sa_wv"], w["sa_bv"], w["sa_wo"], w["sa_bo"],
                  q_scr, ks_scr, vs_scr, ctx_scr, num_heads, bb, T, cdt)
        x1 = x0 + sa

        # ---- source (cross) attention block ----
        x2n = _layernorm(x1, w["n2_g"], w["n2_b"])
        xa = _mha(x2n, memf, mmask_ref, False, S,
                  w["xa_wq"], w["xa_bq"], w["xa_wk"], w["xa_bk"],
                  w["xa_wv"], w["xa_bv"], w["xa_wo"], w["xa_bo"],
                  q_scr, kx_scr, vx_scr, ctx_scr, num_heads, bb, T, cdt)
        x2 = x1 + xa

        # ---- position-wise feed-forward block ----
        x3n = _layernorm(x2, w["n3_g"], w["n3_b"])
        h1 = jnp.maximum(
            jnp.dot(x3n.astype(cdt), w["ff_w1"][...],
                    preferred_element_type=jnp.float32) + w["ff_b1"][...], 0.0)
        ffn = jnp.dot(h1.astype(cdt), w["ff_w2"][...],
                      preferred_element_type=jnp.float32) + w["ff_b2"][...]
        x3 = x2 + ffn

        out_ref[...] = x3.reshape(bb, T, D).astype(out_ref.dtype)

    return kernel


# --------------------------------- wrapper -----------------------------------

def transformer_decoder_layer(tgt, tgt_mask, memory, memory_mask, params,
                              num_heads, *, batch_block=None,
                              compute_dtype=jnp.bfloat16):
    B, T, D = tgt.shape
    S = memory.shape[1]
    assert D % num_heads == 0
    dh = D // num_heads
    bb = B if batch_block is None else batch_block
    assert B % bb == 0
    has_tmask = tgt_mask is not None
    has_mmask = memory_mask is not None

    # Matmul weight matrices go to the MXU compute dtype (halves weight DMA);
    # LayerNorm params and biases stay f32 (added to f32 accumulators).
    weights = [params[k].astype(compute_dtype) if k in _MATMUL_WEIGHTS
               else params[k].astype(jnp.float32) for k in _WEIGHT_ORDER]

    def blocked(*dims):
        return pl.BlockSpec((bb,) + dims, lambda i: (i, 0, 0))

    def full(shape):
        return pl.BlockSpec(shape, lambda i, _n=len(shape): (0,) * _n)

    inputs, in_specs = [tgt], [blocked(T, D)]
    if has_tmask:
        inputs.append(tgt_mask)
        in_specs.append(blocked(T, T))
    inputs.append(memory)
    in_specs.append(blocked(S, D))
    if has_mmask:
        inputs.append(memory_mask)
        in_specs.append(blocked(T, S))
    inputs += weights
    in_specs += [full(wt.shape) for wt in weights]

    scratch = [
        pltpu.VMEM((bb * num_heads, T, dh), compute_dtype),   # Q heads
        pltpu.VMEM((bb * num_heads, T, dh), compute_dtype),   # self-attn K
        pltpu.VMEM((bb * num_heads, T, dh), compute_dtype),   # self-attn V
        pltpu.VMEM((bb * num_heads, S, dh), compute_dtype),   # cross-attn K
        pltpu.VMEM((bb * num_heads, S, dh), compute_dtype),   # cross-attn V
        pltpu.VMEM((bb * T, D), compute_dtype),               # context reassembly
    ]

    kernel = _make_kernel(num_heads, bb, T, S, D, has_tmask, has_mmask,
                          compute_dtype)
    out = pl.pallas_call(
        kernel,
        out_shape=jax.ShapeDtypeStruct((B, T, D), tgt.dtype),
        grid_spec=pltpu.PrefetchScalarGridSpec(
            num_scalar_prefetch=0,
            grid=(B // bb,),
            in_specs=in_specs,
            out_specs=blocked(T, D),
            scratch_shapes=scratch),
        compiler_params=pltpu.CompilerParams(
            dimension_semantics=("parallel",)),
    )(*inputs)

    # Same return signature as the PyTorch module.
    return out, tgt_mask, memory, memory_mask


# ----------------------------- pure-JAX reference ----------------------------

def _ref_layer(tgt, tgt_mask, memory, memory_mask, p, num_heads):
    def ln(x, g, b):
        mu = x.mean(-1, keepdims=True)
        var = ((x - mu) ** 2).mean(-1, keepdims=True)
        return (x - mu) / jnp.sqrt(var + 1e-5) * g[0] + b[0]

    def mha(xq, xkv, mask, wq, bq, wk, bk, wv, bv, wo, bo):
        B, T, D = xq.shape
        S = xkv.shape[1]
        dh = D // num_heads
        q = (xq @ wq + bq[0]).reshape(B, T, num_heads, dh)
        k = (xkv @ wk + bk[0]).reshape(B, S, num_heads, dh)
        v = (xkv @ wv + bv[0]).reshape(B, S, num_heads, dh)
        s = jnp.einsum("bthd,bshd->bhts", q, k) / jnp.sqrt(jnp.float32(dh))
        s = jnp.where(mask[:, None] > 0, s, -1e9)
        a = jax.nn.softmax(s, axis=-1)
        ctx = jnp.einsum("bhts,bshd->bthd", a, v).reshape(B, T, D)
        return ctx @ wo + bo[0]

    x = tgt + mha(ln(tgt, p["n1_g"], p["n1_b"]), ln(tgt, p["n1_g"], p["n1_b"]),
                  tgt_mask, p["sa_wq"], p["sa_bq"], p["sa_wk"], p["sa_bk"],
                  p["sa_wv"], p["sa_bv"], p["sa_wo"], p["sa_bo"])
    x = x + mha(ln(x, p["n2_g"], p["n2_b"]), memory, memory_mask,
                p["xa_wq"], p["xa_bq"], p["xa_wk"], p["xa_bk"],
                p["xa_wv"], p["xa_bv"], p["xa_wo"], p["xa_bo"])
    x3 = ln(x, p["n3_g"], p["n3_b"])
    x = x + jnp.maximum(x3 @ p["ff_w1"] + p["ff_b1"][0], 0.0) @ p["ff_w2"] \
        + p["ff_b2"][0]
    return x


# ----------------------------------- main ------------------------------------

if __name__ == "__main__":
    B, T, S = 2, 8, 16
    D, NUM_HEADS, HIDDEN = 32, 4, 64

    key = jax.random.PRNGKey(0)
    ks = jax.random.split(key, 32)
    it = iter(ks)

    def w(shape, scale=0.05):
        return (scale * jax.random.normal(next(it), shape)).astype(jnp.float32)

    params = {
        "n1_g": 1.0 + w((1, D)), "n1_b": w((1, D)),
        "n2_g": 1.0 + w((1, D)), "n2_b": w((1, D)),
        "n3_g": 1.0 + w((1, D)), "n3_b": w((1, D)),
        "sa_wq": w((D, D)), "sa_bq": w((1, D)),
        "sa_wk": w((D, D)), "sa_bk": w((1, D)),
        "sa_wv": w((D, D)), "sa_bv": w((1, D)),
        "sa_wo": w((D, D)), "sa_bo": w((1, D)),
        "xa_wq": w((D, D)), "xa_bq": w((1, D)),
        "xa_wk": w((D, D)), "xa_bk": w((1, D)),
        "xa_wv": w((D, D)), "xa_bv": w((1, D)),
        "xa_wo": w((D, D)), "xa_bo": w((1, D)),
        "ff_w1": w((D, HIDDEN)), "ff_b1": w((1, HIDDEN)),
        "ff_w2": w((HIDDEN, D)), "ff_b2": w((1, D)),
    }

    tgt = jax.random.normal(next(it), (B, T, D), dtype=jnp.float32)
    memory = jax.random.normal(next(it), (B, S, D), dtype=jnp.float32)
    # causal self-attention mask (1 = keep), full cross-attention mask.
    tgt_mask = jnp.tril(jnp.ones((T, T), jnp.float32))[None].repeat(B, axis=0)
    memory_mask = jnp.ones((B, T, S), jnp.float32)

    out, _, _, _ = transformer_decoder_layer(
        tgt, tgt_mask, memory, memory_mask, params, NUM_HEADS)
    out = jax.block_until_ready(out)

    ref = _ref_layer(tgt, tgt_mask, memory, memory_mask, params, NUM_HEADS)
    # bf16 matmul operands (f32 accumulation) + approx reciprocal -> loose tol.
    assert jnp.allclose(out, ref, rtol=3e-2, atol=3e-2), "mismatch vs reference"

    print("KERNEL_OK")
</pallas_src>

<mosaic_0001>
module attributes {stable_mosaic.version = 11 : i64} {
  func.func @kernel(%arg0: i32, %arg1: memref<2x8x32xf32, #tpu.memory_space<vmem>>, %arg2: memref<2x8x8xf32, #tpu.memory_space<vmem>>, %arg3: memref<2x16x32xf32, #tpu.memory_space<vmem>>, %arg4: memref<2x8x16xf32, #tpu.memory_space<vmem>>, %arg5: memref<1x32xf32, #tpu.memory_space<vmem>>, %arg6: memref<1x32xf32, #tpu.memory_space<vmem>>, %arg7: memref<1x32xf32, #tpu.memory_space<vmem>>, %arg8: memref<1x32xf32, #tpu.memory_space<vmem>>, %arg9: memref<1x32xf32, #tpu.memory_space<vmem>>, %arg10: memref<1x32xf32, #tpu.memory_space<vmem>>, %arg11: memref<32x32xbf16, #tpu.memory_space<vmem>>, %arg12: memref<1x32xf32, #tpu.memory_space<vmem>>, %arg13: memref<32x32xbf16, #tpu.memory_space<vmem>>, %arg14: memref<1x32xf32, #tpu.memory_space<vmem>>, %arg15: memref<32x32xbf16, #tpu.memory_space<vmem>>, %arg16: memref<1x32xf32, #tpu.memory_space<vmem>>, %arg17: memref<32x32xbf16, #tpu.memory_space<vmem>>, %arg18: memref<1x32xf32, #tpu.memory_space<vmem>>, %arg19: memref<32x32xbf16, #tpu.memory_space<vmem>>, %arg20: memref<1x32xf32, #tpu.memory_space<vmem>>, %arg21: memref<32x32xbf16, #tpu.memory_space<vmem>>, %arg22: memref<1x32xf32, #tpu.memory_space<vmem>>, %arg23: memref<32x32xbf16, #tpu.memory_space<vmem>>, %arg24: memref<1x32xf32, #tpu.memory_space<vmem>>, %arg25: memref<32x32xbf16, #tpu.memory_space<vmem>>, %arg26: memref<1x32xf32, #tpu.memory_space<vmem>>, %arg27: memref<32x64xbf16, #tpu.memory_space<vmem>>, %arg28: memref<1x64xf32, #tpu.memory_space<vmem>>, %arg29: memref<64x32xbf16, #tpu.memory_space<vmem>>, %arg30: memref<1x32xf32, #tpu.memory_space<vmem>>, %arg31: memref<2x8x32xf32, #tpu.memory_space<vmem>>, %arg32: memref<8x8x8xbf16, #tpu.memory_space<vmem>>, %arg33: memref<8x8x8xbf16, #tpu.memory_space<vmem>>, %arg34: memref<8x8x8xbf16, #tpu.memory_space<vmem>>, %arg35: memref<8x16x8xbf16, #tpu.memory_space<vmem>>, %arg36: memref<8x16x8xbf16, #tpu.memory_space<vmem>>, %arg37: memref<16x32xbf16, #tpu.memory_space<vmem>>) attributes {dimension_semantics = [#tpu.dimension_semantics<parallel>], iteration_bounds = array<i64: 1>, scalar_prefetch = 0 : i64, scratch_operands = 6 : i64, tpu.core_type = #tpu.core_type<tc>, window_params = [{transform_indices = @transform_0, window_bounds = array<i64: 2, 8, 32>}, {transform_indices = @transform_1, window_bounds = array<i64: 2, 8, 8>}, {transform_indices = @transform_2, window_bounds = array<i64: 2, 16, 32>}, {transform_indices = @transform_3, window_bounds = array<i64: 2, 8, 16>}, {pipeline_mode = #tpu.pipeline_mode<synchronous>, transform_indices = @transform_4, window_bounds = array<i64: 1, 32>}, {pipeline_mode = #tpu.pipeline_mode<synchronous>, transform_indices = @transform_5, window_bounds = array<i64: 1, 32>}, {pipeline_mode = #tpu.pipeline_mode<synchronous>, transform_indices = @transform_6, window_bounds = array<i64: 1, 32>}, {pipeline_mode = #tpu.pipeline_mode<synchronous>, transform_indices = @transform_7, window_bounds = array<i64: 1, 32>}, {pipeline_mode = #tpu.pipeline_mode<synchronous>, transform_indices = @transform_8, window_bounds = array<i64: 1, 32>}, {pipeline_mode = #tpu.pipeline_mode<synchronous>, transform_indices = @transform_9, window_bounds = array<i64: 1, 32>}, {pipeline_mode = #tpu.pipeline_mode<synchronous>, transform_indices = @transform_10, window_bounds = array<i64: 32, 32>}, {pipeline_mode = #tpu.pipeline_mode<synchronous>, transform_indices = @transform_11, window_bounds = array<i64: 1, 32>}, {pipeline_mode = #tpu.pipeline_mode<synchronous>, transform_indices = @transform_12, window_bounds = array<i64: 32, 32>}, {pipeline_mode = #tpu.pipeline_mode<synchronous>, transform_indices = @transform_13, window_bounds = array<i64: 1, 32>}, {pipeline_mode = #tpu.pipeline_mode<synchronous>, transform_indices = @transform_14, window_bounds = array<i64: 32, 32>}, {pipeline_mode = #tpu.pipeline_mode<synchronous>, transform_indices = @transform_15, window_bounds = array<i64: 1, 32>}, {pipeline_mode = #tpu.pipeline_mode<synchronous>, transform_indices = @transform_16, window_bounds = array<i64: 32, 32>}, {pipeline_mode = #tpu.pipeline_mode<synchronous>, transform_indices = @transform_17, window_bounds = array<i64: 1, 32>}, {pipeline_mode = #tpu.pipeline_mode<synchronous>, transform_indices = @transform_18, window_bounds = array<i64: 32, 32>}, {pipeline_mode = #tpu.pipeline_mode<synchronous>, transform_indices = @transform_19, window_bounds = array<i64: 1, 32>}, {pipeline_mode = #tpu.pipeline_mode<synchronous>, transform_indices = @transform_20, window_bounds = array<i64: 32, 32>}, {pipeline_mode = #tpu.pipeline_mode<synchronous>, transform_indices = @transform_21, window_bounds = array<i64: 1, 32>}, {pipeline_mode = #tpu.pipeline_mode<synchronous>, transform_indices = @transform_22, window_bounds = array<i64: 32, 32>}, {pipeline_mode = #tpu.pipeline_mode<synchronous>, transform_indices = @transform_23, window_bounds = array<i64: 1, 32>}, {pipeline_mode = #tpu.pipeline_mode<synchronous>, transform_indices = @transform_24, window_bounds = array<i64: 32, 32>}, {pipeline_mode = #tpu.pipeline_mode<synchronous>, transform_indices = @transform_25, window_bounds = array<i64: 1, 32>}, {pipeline_mode = #tpu.pipeline_mode<synchronous>, transform_indices = @transform_26, window_bounds = array<i64: 32, 64>}, {pipeline_mode = #tpu.pipeline_mode<synchronous>, transform_indices = @transform_27, window_bounds = array<i64: 1, 64>}, {pipeline_mode = #tpu.pipeline_mode<synchronous>, transform_indices = @transform_28, window_bounds = array<i64: 64, 32>}, {pipeline_mode = #tpu.pipeline_mode<synchronous>, transform_indices = @transform_29, window_bounds = array<i64: 1, 32>}, {transform_indices = @transform_30, window_bounds = array<i64: 2, 8, 32>}]} {
    %c0 = arith.constant 0 : index
    %c0_0 = arith.constant 0 : index
    %c0_1 = arith.constant 0 : index
    %0 = vector.load %arg1[%c0, %c0_0, %c0_1] : memref<2x8x32xf32, #tpu.memory_space<vmem>>, vector<2x8x32xf32>
    %1 = vector.shape_cast %0 : vector<2x8x32xf32> to vector<16x32xf32>
    %c0_2 = arith.constant 0 : index
    %c0_3 = arith.constant 0 : index
    %c0_4 = arith.constant 0 : index
    %2 = vector.load %arg3[%c0_2, %c0_3, %c0_4] : memref<2x16x32xf32, #tpu.memory_space<vmem>>, vector<2x16x32xf32>
    %3 = vector.shape_cast %2 : vector<2x16x32xf32> to vector<32x32xf32>
    %cst = arith.constant dense<0.000000e+00> : vector<16xf32>
    %4 = vector.multi_reduction <add>, %1, %cst [1] : vector<16x32xf32> to vector<16xf32>
    %5 = vector.shape_cast %4 : vector<16xf32> to vector<16x1xf32>
    %cst_5 = arith.constant 3.200000e+01 : f32
    %6 = vector.broadcast %cst_5 : f32 to vector<16x1xf32>
    %7 = arith.divf %5, %6 : vector<16x1xf32>
    %8 = vector.broadcast %7 : vector<16x1xf32> to vector<16x32xf32>
    %9 = arith.subf %1, %8 : vector<16x32xf32>
    %10 = arith.mulf %9, %9 : vector<16x32xf32>
    %cst_6 = arith.constant dense<0.000000e+00> : vector<16xf32>
    %11 = vector.multi_reduction <add>, %10, %cst_6 [1] : vector<16x32xf32> to vector<16xf32>
    %12 = vector.shape_cast %11 : vector<16xf32> to vector<16x1xf32>
    %cst_7 = arith.constant 3.200000e+01 : f32
    %13 = vector.broadcast %cst_7 : f32 to vector<16x1xf32>
    %14 = arith.divf %12, %13 : vector<16x1xf32>
    %15 = vector.broadcast %7 : vector<16x1xf32> to vector<16x32xf32>
    %16 = arith.subf %1, %15 : vector<16x32xf32>
    %cst_8 = arith.constant 9.99999974E-6 : f32
    %17 = vector.broadcast %cst_8 : f32 to vector<16x1xf32>
    %18 = arith.addf %14, %17 : vector<16x1xf32>
    %19 = math.rsqrt %18 : vector<16x1xf32>
    %20 = vector.broadcast %19 : vector<16x1xf32> to vector<16x32xf32>
    %21 = arith.mulf %16, %20 : vector<16x32xf32>
    %c0_9 = arith.constant 0 : index
    %c0_10 = arith.constant 0 : index
    %22 = vector.load %arg5[%c0_9, %c0_10] : memref<1x32xf32, #tpu.memory_space<vmem>>, vector<1x32xf32>
    %23 = vector.broadcast %22 : vector<1x32xf32> to vector<16x32xf32>
    %24 = arith.mulf %21, %23 : vector<16x32xf32>
    %c0_11 = arith.constant 0 : index
    %c0_12 = arith.constant 0 : index
    %25 = vector.load %arg6[%c0_11, %c0_12] : memref<1x32xf32, #tpu.memory_space<vmem>>, vector<1x32xf32>
    %26 = vector.broadcast %25 : vector<1x32xf32> to vector<16x32xf32>
    %27 = arith.addf %24, %26 : vector<16x32xf32>
    %28 = arith.truncf %27 : vector<16x32xf32> to vector<16x32xbf16>
    %c0_13 = arith.constant 0 : index
    %c0_14 = arith.constant 0 : index
    %29 = vector.load %arg11[%c0_13, %c0_14] : memref<32x32xbf16, #tpu.memory_space<vmem>>, vector<32x32xbf16>
    %cst_15 = arith.constant dense<0.000000e+00> : vector<16x32xf32>
    %30 = tpu.matmul %28, %29, %cst_15 {dimension_numbers = #tpu.dot_dimension_numbers<[1], [0], [0], [1], [0, 0, 1, 1], [], []>} : vector<16x32xbf16>, vector<32x32xbf16>, vector<16x32xf32> -> vector<16x32xf32>
    %c0_16 = arith.constant 0 : index
    %c0_17 = arith.constant 0 : index
    %31 = vector.load %arg12[%c0_16, %c0_17] : memref<1x32xf32, #tpu.memory_space<vmem>>, vector<1x32xf32>
    %32 = vector.broadcast %31 : vector<1x32xf32> to vector<16x32xf32>
    %33 = arith.addf %30, %32 : vector<16x32xf32>
    %cst_18 = arith.constant 0.353553385 : f32
    %34 = vector.broadcast %cst_18 : f32 to vector<16x32xf32>
    %35 = arith.mulf %33, %34 : vector<16x32xf32>
    %36 = arith.truncf %27 : vector<16x32xf32> to vector<16x32xbf16>
    %c0_19 = arith.constant 0 : index
    %c0_20 = arith.constant 0 : index
    %37 = vector.load %arg13[%c0_19, %c0_20] : memref<32x32xbf16, #tpu.memory_space<vmem>>, vector<32x32xbf16>
    %cst_21 = arith.constant dense<0.000000e+00> : vector<16x32xf32>
    %38 = tpu.matmul %36, %37, %cst_21 {dimension_numbers = #tpu.dot_dimension_numbers<[1], [0], [0], [1], [0, 0, 1, 1], [], []>} : vector<16x32xbf16>, vector<32x32xbf16>, vector<16x32xf32> -> vector<16x32xf32>
    %c0_22 = arith.constant 0 : index
    %c0_23 = arith.constant 0 : index
    %39 = vector.load %arg14[%c0_22, %c0_23] : memref<1x32xf32, #tpu.memory_space<vmem>>, vector<1x32xf32>
    %40 = vector.broadcast %39 : vector<1x32xf32> to vector<16x32xf32>
    %41 = arith.addf %38, %40 : vector<16x32xf32>
    %42 = arith.truncf %27 : vector<16x32xf32> to vector<16x32xbf16>
    %c0_24 = arith.constant 0 : index
    %c0_25 = arith.constant 0 : index
    %43 = vector.load %arg15[%c0_24, %c0_25] : memref<32x32xbf16, #tpu.memory_space<vmem>>, vector<32x32xbf16>
    %cst_26 = arith.constant dense<0.000000e+00> : vector<16x32xf32>
    %44 = tpu.matmul %42, %43, %cst_26 {dimension_numbers = #tpu.dot_dimension_numbers<[1], [0], [0], [1], [0, 0, 1, 1], [], []>} : vector<16x32xbf16>, vector<32x32xbf16>, vector<16x32xf32> -> vector<16x32xf32>
    %c0_27 = arith.constant 0 : index
    %c0_28 = arith.constant 0 : index
    %45 = vector.load %arg16[%c0_27, %c0_28] : memref<1x32xf32, #tpu.memory_space<vmem>>, vector<1x32xf32>
    %46 = vector.broadcast %45 : vector<1x32xf32> to vector<16x32xf32>
    %47 = arith.addf %44, %46 : vector<16x32xf32>
    %48 = arith.truncf %35 : vector<16x32xf32> to vector<16x32xbf16>
    %49 = arith.truncf %41 : vector<16x32xf32> to vector<16x32xbf16>
    %50 = arith.truncf %47 : vector<16x32xf32> to vector<16x32xbf16>
    %51 = vector.extract_strided_slice %48 {offsets = [0, 0], sizes = [8, 8], strides = [1, 1]} : vector<16x32xbf16> to vector<8x8xbf16>
    %c0_29 = arith.constant 0 : index
    %c0_30 = arith.constant 0 : index
    %c0_31 = arith.constant 0 : index
    %52 = vector.load %arg32[%c0_29, %c0_30, %c0_31] : memref<8x8x8xbf16, #tpu.memory_space<vmem>>, vector<1x8x8xbf16>
    %53 = vector.shape_cast %52 : vector<1x8x8xbf16> to vector<8x8xbf16>
    %54 = vector.shape_cast %51 : vector<8x8xbf16> to vector<1x8x8xbf16>
    tpu.vector_store %arg32[%c0_29, %c0_30, %c0_31], %54 {strides = array<i32>} : memref<8x8x8xbf16, #tpu.memory_space<vmem>>, vector<1x8x8xbf16>,
    %55 = vector.extract_strided_slice %49 {offsets = [0, 0], sizes = [8, 8], strides = [1, 1]} : vector<16x32xbf16> to vector<8x8xbf16>
    %c0_32 = arith.constant 0 : index
    %c0_33 = arith.constant 0 : index
    %c0_34 = arith.constant 0 : index
    %56 = vector.load %arg33[%c0_32, %c0_33, %c0_34] : memref<8x8x8xbf16, #tpu.memory_space<vmem>>, vector<1x8x8xbf16>
    %57 = vector.shape_cast %56 : vector<1x8x8xbf16> to vector<8x8xbf16>
    %58 = vector.shape_cast %55 : vector<8x8xbf16> to vector<1x8x8xbf16>
    tpu.vector_store %arg33[%c0_32, %c0_33, %c0_34], %58 {strides = array<i32>} : memref<8x8x8xbf16, #tpu.memory_space<vmem>>, vector<1x8x8xbf16>,
    %59 = vector.extract_strided_slice %50 {offsets = [0, 0], sizes = [8, 8], strides = [1, 1]} : vector<16x32xbf16> to vector<8x8xbf16>
    %c0_35 = arith.constant 0 : index
    %c0_36 = arith.constant 0 : index
    %c0_37 = arith.constant 0 : index
    %60 = vector.load %arg34[%c0_35, %c0_36, %c0_37] : memref<8x8x8xbf16, #tpu.memory_space<vmem>>, vector<1x8x8xbf16>
    %61 = vector.shape_cast %60 : vector<1x8x8xbf16> to vector<8x8xbf16>
    %62 = vector.shape_cast %59 : vector<8x8xbf16> to vector<1x8x8xbf16>
    tpu.vector_store %arg34[%c0_35, %c0_36, %c0_37], %62 {strides = array<i32>} : memref<8x8x8xbf16, #tpu.memory_space<vmem>>, vector<1x8x8xbf16>,
    %63 = vector.extract_strided_slice %48 {offsets = [0, 8], sizes = [8, 8], strides = [1, 1]} : vector<16x32xbf16> to vector<8x8xbf16>
    %c1 = arith.constant 1 : index
    %c0_38 = arith.constant 0 : index
    %c0_39 = arith.constant 0 : index
    %64 = vector.load %arg32[%c1, %c0_38, %c0_39] : memref<8x8x8xbf16, #tpu.memory_space<vmem>>, vector<1x8x8xbf16>
    %65 = vector.shape_cast %64 : vector<1x8x8xbf16> to vector<8x8xbf16>
    %66 = vector.shape_cast %63 : vector<8x8xbf16> to vector<1x8x8xbf16>
    tpu.vector_store %arg32[%c1, %c0_38, %c0_39], %66 {strides = array<i32>} : memref<8x8x8xbf16, #tpu.memory_space<vmem>>, vector<1x8x8xbf16>,
    %67 = vector.extract_strided_slice %49 {offsets = [0, 8], sizes = [8, 8], strides = [1, 1]} : vector<16x32xbf16> to vector<8x8xbf16>
    %c1_40 = arith.constant 1 : index
    %c0_41 = arith.constant 0 : index
    %c0_42 = arith.constant 0 : index
    %68 = vector.load %arg33[%c1_40, %c0_41, %c0_42] : memref<8x8x8xbf16, #tpu.memory_space<vmem>>, vector<1x8x8xbf16>
    %69 = vector.shape_cast %68 : vector<1x8x8xbf16> to vector<8x8xbf16>
    %70 = vector.shape_cast %67 : vector<8x8xbf16> to vector<1x8x8xbf16>
    tpu.vector_store %arg33[%c1_40, %c0_41, %c0_42], %70 {strides = array<i32>} : memref<8x8x8xbf16, #tpu.memory_space<vmem>>, vector<1x8x8xbf16>,
    %71 = vector.extract_strided_slice %50 {offsets = [0, 8], sizes = [8, 8], strides = [1, 1]} : vector<16x32xbf16> to vector<8x8xbf16>
    %c1_43 = arith.constant 1 : index
    %c0_44 = arith.constant 0 : index
    %c0_45 = arith.constant 0 : index
    %72 = vector.load %arg34[%c1_43, %c0_44, %c0_45] : memref<8x8x8xbf16, #tpu.memory_space<vmem>>, vector<1x8x8xbf16>
    %73 = vector.shape_cast %72 : vector<1x8x8xbf16> to vector<8x8xbf16>
    %74 = vector.shape_cast %71 : vector<8x8xbf16> to vector<1x8x8xbf16>
    tpu.vector_store %arg34[%c1_43, %c0_44, %c0_45], %74 {strides = array<i32>} : memref<8x8x8xbf16, #tpu.memory_space<vmem>>, vector<1x8x8xbf16>,
    %75 = vector.extract_strided_slice %48 {offsets = [0, 16], sizes = [8, 8], strides = [1, 1]} : vector<16x32xbf16> to vector<8x8xbf16>
    %c2 = arith.constant 2 : index
    %c0_46 = arith.constant 0 : index
    %c0_47 = arith.constant 0 : index
    %76 = vector.load %arg32[%c2, %c0_46, %c0_47] : memref<8x8x8xbf16, #tpu.memory_space<vmem>>, vector<1x8x8xbf16>
    %77 = vector.shape_cast %76 : vector<1x8x8xbf16> to vector<8x8xbf16>
    %78 = vector.shape_cast %75 : vector<8x8xbf16> to vector<1x8x8xbf16>
    tpu.vector_store %arg32[%c2, %c0_46, %c0_47], %78 {strides = array<i32>} : memref<8x8x8xbf16, #tpu.memory_space<vmem>>, vector<1x8x8xbf16>,
    %79 = vector.extract_strided_slice %49 {offsets = [0, 16], sizes = [8, 8], strides = [1, 1]} : vector<16x32xbf16> to vector<8x8xbf16>
    %c2_48 = arith.constant 2 : index
    %c0_49 = arith.constant 0 : index
    %c0_50 = arith.constant 0 : index
    %80 = vector.load %arg33[%c2_48, %c0_49, %c0_50] : memref<8x8x8xbf16, #tpu.memory_space<vmem>>, vector<1x8x8xbf16>
    %81 = vector.shape_cast %80 : vector<1x8x8xbf16> to vector<8x8xbf16>
    %82 = vector.shape_cast %79 : vector<8x8xbf16> to vector<1x8x8xbf16>
    tpu.vector_store %arg33[%c2_48, %c0_49, %c0_50], %82 {strides = array<i32>} : memref<8x8x8xbf16, #tpu.memory_space<vmem>>, vector<1x8x8xbf16>,
    %83 = vector.extract_strided_slice %50 {offsets = [0, 16], sizes = [8, 8], strides = [1, 1]} : vector<16x32xbf16> to vector<8x8xbf16>
    %c2_51 = arith.constant 2 : index
    %c0_52 = arith.constant 0 : index
    %c0_53 = arith.constant 0 : index
    %84 = vector.load %arg34[%c2_51, %c0_52, %c0_53] : memref<8x8x8xbf16, #tpu.memory_space<vmem>>, vector<1x8x8xbf16>
    %85 = vector.shape_cast %84 : vector<1x8x8xbf16> to vector<8x8xbf16>
    %86 = vector.shape_cast %83 : vector<8x8xbf16> to vector<1x8x8xbf16>
    tpu.vector_store %arg34[%c2_51, %c0_52, %c0_53], %86 {strides = array<i32>} : memref<8x8x8xbf16, #tpu.memory_space<vmem>>, vector<1x8x8xbf16>,
    %87 = vector.extract_strided_slice %48 {offsets = [0, 24], sizes = [8, 8], strides = [1, 1]} : vector<16x32xbf16> to vector<8x8xbf16>
    %c3 = arith.constant 3 : index
    %c0_54 = arith.constant 0 : index
    %c0_55 = arith.constant 0 : index
    %88 = vector.load %arg32[%c3, %c0_54, %c0_55] : memref<8x8x8xbf16, #tpu.memory_space<vmem>>, vector<1x8x8xbf16>
    %89 = vector.shape_cast %88 : vector<1x8x8xbf16> to vector<8x8xbf16>
    %90 = vector.shape_cast %87 : vector<8x8xbf16> to vector<1x8x8xbf16>
    tpu.vector_store %arg32[%c3, %c0_54, %c0_55], %90 {strides = array<i32>} : memref<8x8x8xbf16, #tpu.memory_space<vmem>>, vector<1x8x8xbf16>,
    %91 = vector.extract_strided_slice %49 {offsets = [0, 24], sizes = [8, 8], strides = [1, 1]} : vector<16x32xbf16> to vector<8x8xbf16>
    %c3_56 = arith.constant 3 : index
    %c0_57 = arith.constant 0 : index
    %c0_58 = arith.constant 0 : index
    %92 = vector.load %arg33[%c3_56, %c0_57, %c0_58] : memref<8x8x8xbf16, #tpu.memory_space<vmem>>, vector<1x8x8xbf16>
    %93 = vector.shape_cast %92 : vector<1x8x8xbf16> to vector<8x8xbf16>
    %94 = vector.shape_cast %91 : vector<8x8xbf16> to vector<1x8x8xbf16>
    tpu.vector_store %arg33[%c3_56, %c0_57, %c0_58], %94 {strides = array<i32>} : memref<8x8x8xbf16, #tpu.memory_space<vmem>>, vector<1x8x8xbf16>,
    %95 = vector.extract_strided_slice %50 {offsets = [0, 24], sizes = [8, 8], strides = [1, 1]} : vector<16x32xbf16> to vector<8x8xbf16>
    %c3_59 = arith.constant 3 : index
    %c0_60 = arith.constant 0 : index
    %c0_61 = arith.constant 0 : index
    %96 = vector.load %arg34[%c3_59, %c0_60, %c0_61] : memref<8x8x8xbf16, #tpu.memory_space<vmem>>, vector<1x8x8xbf16>
    %97 = vector.shape_cast %96 : vector<1x8x8xbf16> to vector<8x8xbf16>
    %98 = vector.shape_cast %95 : vector<8x8xbf16> to vector<1x8x8xbf16>
    tpu.vector_store %arg34[%c3_59, %c0_60, %c0_61], %98 {strides = array<i32>} : memref<8x8x8xbf16, #tpu.memory_space<vmem>>, vector<1x8x8xbf16>,
    %99 = vector.extract_strided_slice %48 {offsets = [8, 0], sizes = [8, 8], strides = [1, 1]} : vector<16x32xbf16> to vector<8x8xbf16>
    %c4 = arith.constant 4 : index
    %c0_62 = arith.constant 0 : index
    %c0_63 = arith.constant 0 : index
    %100 = vector.load %arg32[%c4, %c0_62, %c0_63] : memref<8x8x8xbf16, #tpu.memory_space<vmem>>, vector<1x8x8xbf16>
    %101 = vector.shape_cast %100 : vector<1x8x8xbf16> to vector<8x8xbf16>
    %102 = vector.shape_cast %99 : vector<8x8xbf16> to vector<1x8x8xbf16>
    tpu.vector_store %arg32[%c4, %c0_62, %c0_63], %102 {strides = array<i32>} : memref<8x8x8xbf16, #tpu.memory_space<vmem>>, vector<1x8x8xbf16>,
    %103 = vector.extract_strided_slice %49 {offsets = [8, 0], sizes = [8, 8], strides = [1, 1]} : vector<16x32xbf16> to vector<8x8xbf16>
    %c4_64 = arith.constant 4 : index
    %c0_65 = arith.constant 0 : index
    %c0_66 = arith.constant 0 : index
    %104 = vector.load %arg33[%c4_64, %c0_65, %c0_66] : memref<8x8x8xbf16, #tpu.memory_space<vmem>>, vector<1x8x8xbf16>
    %105 = vector.shape_cast %104 : vector<1x8x8xbf16> to vector<8x8xbf16>
    %106 = vector.shape_cast %103 : vector<8x8xbf16> to vector<1x8x8xbf16>
    tpu.vector_store %arg33[%c4_64, %c0_65, %c0_66], %106 {strides = array<i32>} : memref<8x8x8xbf16, #tpu.memory_space<vmem>>, vector<1x8x8xbf16>,
    %107 = vector.extract_strided_slice %50 {offsets = [8, 0], sizes = [8, 8], strides = [1, 1]} : vector<16x32xbf16> to vector<8x8xbf16>
    %c4_67 = arith.constant 4 : index
    %c0_68 = arith.constant 0 : index
    %c0_69 = arith.constant 0 : index
    %108 = vector.load %arg34[%c4_67, %c0_68, %c0_69] : memref<8x8x8xbf16, #tpu.memory_space<vmem>>, vector<1x8x8xbf16>
    %109 = vector.shape_cast %108 : vector<1x8x8xbf16> to vector<8x8xbf16>
    %110 = vector.shape_cast %107 : vector<8x8xbf16> to vector<1x8x8xbf16>
    tpu.vector_store %arg34[%c4_67, %c0_68, %c0_69], %110 {strides = array<i32>} : memref<8x8x8xbf16, #tpu.memory_space<vmem>>, vector<1x8x8xbf16>,
    %111 = vector.extract_strided_slice %48 {offsets = [8, 8], sizes = [8, 8], strides = [1, 1]} : vector<16x32xbf16> to vector<8x8xbf16>
    %c5 = arith.constant 5 : index
    %c0_70 = arith.constant 0 : index
    %c0_71 = arith.constant 0 : index
    %112 = vector.load %arg32[%c5, %c0_70, %c0_71] : memref<8x8x8xbf16, #tpu.memory_space<vmem>>, vector<1x8x8xbf16>
    %113 = vector.shape_cast %112 : vector<1x8x8xbf16> to vector<8x8xbf16>
    %114 = vector.shape_cast %111 : vector<8x8xbf16> to vector<1x8x8xbf16>
    tpu.vector_store %arg32[%c5, %c0_70, %c0_71], %114 {strides = array<i32>} : memref<8x8x8xbf16, #tpu.memory_space<vmem>>, vector<1x8x8xbf16>,
    %115 = vector.extract_strided_slice %49 {offsets = [8, 8], sizes = [8, 8], strides = [1, 1]} : vector<16x32xbf16> to vector<8x8xbf16>
    %c5_72 = arith.constant 5 : index
    %c0_73 = arith.constant 0 : index
    %c0_74 = arith.constant 0 : index
    %116 = vector.load %arg33[%c5_72, %c0_73, %c0_74] : memref<8x8x8xbf16, #tpu.memory_space<vmem>>, vector<1x8x8xbf16>
    %117 = vector.shape_cast %116 : vector<1x8x8xbf16> to vector<8x8xbf16>
    %118 = vector.shape_cast %115 : vector<8x8xbf16> to vector<1x8x8xbf16>
    tpu.vector_store %arg33[%c5_72, %c0_73, %c0_74], %118 {strides = array<i32>} : memref<8x8x8xbf16, #tpu.memory_space<vmem>>, vector<1x8x8xbf16>,
    %119 = vector.extract_strided_slice %50 {offsets = [8, 8], sizes = [8, 8], strides = [1, 1]} : vector<16x32xbf16> to vector<8x8xbf16>
    %c5_75 = arith.constant 5 : index
    %c0_76 = arith.constant 0 : index
    %c0_77 = arith.constant 0 : index
    %120 = vector.load %arg34[%c5_75, %c0_76, %c0_77] : memref<8x8x8xbf16, #tpu.memory_space<vmem>>, vector<1x8x8xbf16>
    %121 = vector.shape_cast %120 : vector<1x8x8xbf16> to vector<8x8xbf16>
    %122 = vector.shape_cast %119 : vector<8x8xbf16> to vector<1x8x8xbf16>
    tpu.vector_store %arg34[%c5_75, %c0_76, %c0_77], %122 {strides = array<i32>} : memref<8x8x8xbf16, #tpu.memory_space<vmem>>, vector<1x8x8xbf16>,
    %123 = vector.extract_strided_slice %48 {offsets = [8, 16], sizes = [8, 8], strides = [1, 1]} : vector<16x32xbf16> to vector<8x8xbf16>
    %c6 = arith.constant 6 : index
    %c0_78 = arith.constant 0 : index
    %c0_79 = arith.constant 0 : index
    %124 = vector.load %arg32[%c6, %c0_78, %c0_79] : memref<8x8x8xbf16, #tpu.memory_space<vmem>>, vector<1x8x8xbf16>
    %125 = vector.shape_cast %124 : vector<1x8x8xbf16> to vector<8x8xbf16>
    %126 = vector.shape_cast %123 : vector<8x8xbf16> to vector<1x8x8xbf16>
    tpu.vector_store %arg32[%c6, %c0_78, %c0_79], %126 {strides = array<i32>} : memref<8x8x8xbf16, #tpu.memory_space<vmem>>, vector<1x8x8xbf16>,
    %127 = vector.extract_strided_slice %49 {offsets = [8, 16], sizes = [8, 8], strides = [1, 1]} : vector<16x32xbf16> to vector<8x8xbf16>
    %c6_80 = arith.constant 6 : index
    %c0_81 = arith.constant 0 : index
    %c0_82 = arith.constant 0 : index
    %128 = vector.load %arg33[%c6_80, %c0_81, %c0_82] : memref<8x8x8xbf16, #tpu.memory_space<vmem>>, vector<1x8x8xbf16>
    %129 = vector.shape_cast %128 : vector<1x8x8xbf16> to vector<8x8xbf16>
    %130 = vector.shape_cast %127 : vector<8x8xbf16> to vector<1x8x8xbf16>
    tpu.vector_store %arg33[%c6_80, %c0_81, %c0_82], %130 {strides = array<i32>} : memref<8x8x8xbf16, #tpu.memory_space<vmem>>, vector<1x8x8xbf16>,
    %131 = vector.extract_strided_slice %50 {offsets = [8, 16], sizes = [8, 8], strides = [1, 1]} : vector<16x32xbf16> to vector<8x8xbf16>
    %c6_83 = arith.constant 6 : index
    %c0_84 = arith.constant 0 : index
    %c0_85 = arith.constant 0 : index
    %132 = vector.load %arg34[%c6_83, %c0_84, %c0_85] : memref<8x8x8xbf16, #tpu.memory_space<vmem>>, vector<1x8x8xbf16>
    %133 = vector.shape_cast %132 : vector<1x8x8xbf16> to vector<8x8xbf16>
    %134 = vector.shape_cast %131 : vector<8x8xbf16> to vector<1x8x8xbf16>
    tpu.vector_store %arg34[%c6_83, %c0_84, %c0_85], %134 {strides = array<i32>} : memref<8x8x8xbf16, #tpu.memory_space<vmem>>, vector<1x8x8xbf16>,
    %135 = vector.extract_strided_slice %48 {offsets = [8, 24], sizes = [8, 8], strides = [1, 1]} : vector<16x32xbf16> to vector<8x8xbf16>
    %c7 = arith.constant 7 : index
    %c0_86 = arith.constant 0 : index
    %c0_87 = arith.constant 0 : index
    %136 = vector.load %arg32[%c7, %c0_86, %c0_87] : memref<8x8x8xbf16, #tpu.memory_space<vmem>>, vector<1x8x8xbf16>
    %137 = vector.shape_cast %136 : vector<1x8x8xbf16> to vector<8x8xbf16>
    %138 = vector.shape_cast %135 : vector<8x8xbf16> to vector<1x8x8xbf16>
    tpu.vector_store %arg32[%c7, %c0_86, %c0_87], %138 {strides = array<i32>} : memref<8x8x8xbf16, #tpu.memory_space<vmem>>, vector<1x8x8xbf16>,
    %139 = vector.extract_strided_slice %49 {offsets = [8, 24], sizes = [8, 8], strides = [1, 1]} : vector<16x32xbf16> to vector<8x8xbf16>
    %c7_88 = arith.constant 7 : index
    %c0_89 = arith.constant 0 : index
    %c0_90 = arith.constant 0 : index
    %140 = vector.load %arg33[%c7_88, %c0_89, %c0_90] : memref<8x8x8xbf16, #tpu.memory_space<vmem>>, vector<1x8x8xbf16>
    %141 = vector.shape_cast %140 : vector<1x8x8xbf16> to vector<8x8xbf16>
    %142 = vector.shape_cast %139 : vector<8x8xbf16> to vector<1x8x8xbf16>
    tpu.vector_store %arg33[%c7_88, %c0_89, %c0_90], %142 {strides = array<i32>} : memref<8x8x8xbf16, #tpu.memory_space<vmem>>, vector<1x8x8xbf16>,
    %143 = vector.extract_strided_slice %50 {offsets = [8, 24], sizes = [8, 8], strides = [1, 1]} : vector<16x32xbf16> to vector<8x8xbf16>
    %c7_91 = arith.constant 7 : index
    %c0_92 = arith.constant 0 : index
    %c0_93 = arith.constant 0 : index
    %144 = vector.load %arg34[%c7_91, %c0_92, %c0_93] : memref<8x8x8xbf16, #tpu.memory_space<vmem>>, vector<1x8x8xbf16>
    %145 = vector.shape_cast %144 : vector<1x8x8xbf16> to vector<8x8xbf16>
    %146 = vector.shape_cast %143 : vector<8x8xbf16> to vector<1x8x8xbf16>
    tpu.vector_store %arg34[%c7_91, %c0_92, %c0_93], %146 {strides = array<i32>} : memref<8x8x8xbf16, #tpu.memory_space<vmem>>, vector<1x8x8xbf16>,
    %c0_94 = arith.constant 0 : index
    %c0_95 = arith.constant 0 : index
    %c0_96 = arith.constant 0 : index
    %147 = vector.load %arg2[%c0_94, %c0_95, %c0_96] : memref<2x8x8xf32, #tpu.memory_space<vmem>>, vector<1x8x8xf32>
    %148 = vector.shape_cast %147 : vector<1x8x8xf32> to vector<8x8xf32>
    %cst_97 = arith.constant 0.000000e+00 : f32
    %149 = vector.broadcast %cst_97 : f32 to vector<8x8xf32>
    %150 = arith.cmpf ogt, %148, %149 : vector<8x8xf32>
    %cst_98 = arith.constant 0.000000e+00 : f32
    %cst_99 = arith.constant -1.000000e+09 : f32
    %151 = vector.broadcast %cst_98 : f32 to vector<8x8xf32>
    %152 = vector.broadcast %cst_99 : f32 to vector<8x8xf32>
    %153 = arith.select %150, %151, %152 : vector<8x8xi1>, vector<8x8xf32>
    %c0_100 = arith.constant 0 : index
    %c0_101 = arith.constant 0 : index
    %c0_102 = arith.constant 0 : index
    %154 = vector.load %arg32[%c0_100, %c0_101, %c0_102] : memref<8x8x8xbf16, #tpu.memory_space<vmem>>, vector<4x8x8xbf16>
    %c0_103 = arith.constant 0 : index
    %c0_104 = arith.constant 0 : index
    %c0_105 = arith.constant 0 : index
    %155 = vector.load %arg33[%c0_103, %c0_104, %c0_105] : memref<8x8x8xbf16, #tpu.memory_space<vmem>>, vector<4x8x8xbf16>
    %c0_106 = arith.constant 0 : index
    %c0_107 = arith.constant 0 : index
    %c0_108 = arith.constant 0 : index
    %156 = vector.load %arg34[%c0_106, %c0_107, %c0_108] : memref<8x8x8xbf16, #tpu.memory_space<vmem>>, vector<4x8x8xbf16>
    "tpu.trace_start"() <{level = 10 : i32, message = "htd,hsd->hts"}> : () -> ()
    %cst_109 = arith.constant dense<0.000000e+00> : vector<4x8x8xf32>
    %157 = tpu.matmul %154, %155, %cst_109 {dimension_numbers = #tpu.dot_dimension_numbers<[2], [2], [1], [1], [0, 0, 0, 1, 1, 1], [0], [0]>} : vector<4x8x8xbf16>, vector<4x8x8xbf16>, vector<4x8x8xf32> -> vector<4x8x8xf32>
    "tpu.trace_stop"() : () -> ()
    %158 = vector.shape_cast %153 : vector<8x8xf32> to vector<1x8x8xf32>
    %159 = vector.broadcast %158 : vector<1x8x8xf32> to vector<4x8x8xf32>
    %160 = arith.addf %157, %159 : vector<4x8x8xf32>
    %cst_110 = arith.constant dense<0xFF800000> : vector<4x8xf32>
    %161 = vector.multi_reduction <maximumf>, %160, %cst_110 [2] : vector<4x8x8xf32> to vector<4x8xf32>
    %162 = vector.shape_cast %161 : vector<4x8xf32> to vector<4x8x1xf32>
    %163 = vector.broadcast %162 : vector<4x8x1xf32> to vector<4x8x8xf32>
    %164 = arith.subf %160, %163 : vector<4x8x8xf32>
    %165 = math.exp %164 : vector<4x8x8xf32>
    %cst_111 = arith.constant dense<0.000000e+00> : vector<4x8xf32>
    %166 = vector.multi_reduction <add>, %165, %cst_111 [2] : vector<4x8x8xf32> to vector<4x8xf32>
    %167 = vector.shape_cast %166 : vector<4x8xf32> to vector<4x8x1xf32>
    %168 = tpu.reciprocal %167 {approx = true} : vector<4x8x1xf32> -> vector<4x8x1xf32>
    %169 = vector.broadcast %168 : vector<4x8x1xf32> to vector<4x8x8xf32>
    %170 = arith.mulf %165, %169 : vector<4x8x8xf32>
    %171 = arith.truncf %170 : vector<4x8x8xf32> to vector<4x8x8xbf16>
    "tpu.trace_start"() <{level = 10 : i32, message = "hts,hsd->htd"}> : () -> ()
    %cst_112 = arith.constant dense<0.000000e+00> : vector<4x8x8xf32>
    %172 = tpu.matmul %171, %156, %cst_112 {dimension_numbers = #tpu.dot_dimension_numbers<[2], [1], [1], [2], [0, 0, 0, 1, 1, 2], [0], [0]>} : vector<4x8x8xbf16>, vector<4x8x8xbf16>, vector<4x8x8xf32> -> vector<4x8x8xf32>
    "tpu.trace_stop"() : () -> ()
    %173 = arith.truncf %172 : vector<4x8x8xf32> to vector<4x8x8xbf16>
    %174 = vector.extract_strided_slice %173 {offsets = [0, 0, 0], sizes = [1, 8, 8], strides = [1, 1, 1]} : vector<4x8x8xbf16> to vector<1x8x8xbf16>
    %175 = vector.shape_cast %174 : vector<1x8x8xbf16> to vector<8x8xbf16>
    %c0_113 = arith.constant 0 : index
    %c0_114 = arith.constant 0 : index
    %176 = vector.load %arg37[%c0_113, %c0_114] : memref<16x32xbf16, #tpu.memory_space<vmem>>, vector<8x8xbf16>
    tpu.vector_store %arg37[%c0_113, %c0_114], %175 {strides = array<i32>} : memref<16x32xbf16, #tpu.memory_space<vmem>>, vector<8x8xbf16>,
    %177 = vector.extract_strided_slice %173 {offsets = [1, 0, 0], sizes = [1, 8, 8], strides = [1, 1, 1]} : vector<4x8x8xbf16> to vector<1x8x8xbf16>
    %178 = vector.shape_cast %177 : vector<1x8x8xbf16> to vector<8x8xbf16>
    %c0_115 = arith.constant 0 : index
    %c8 = arith.constant 8 : index
    %179 = vector.load %arg37[%c0_115, %c8] : memref<16x32xbf16, #tpu.memory_space<vmem>>, vector<8x8xbf16>
    tpu.vector_store %arg37[%c0_115, %c8], %178 {strides = array<i32>} : memref<16x32xbf16, #tpu.memory_space<vmem>>, vector<8x8xbf16>,
    %180 = vector.extract_strided_slice %173 {offsets = [2, 0, 0], sizes = [1, 8, 8], strides = [1, 1, 1]} : vector<4x8x8xbf16> to vector<1x8x8xbf16>
    %181 = vector.shape_cast %180 : vector<1x8x8xbf16> to vector<8x8xbf16>
    %c0_116 = arith.constant 0 : index
    %c16 = arith.constant 16 : index
    %182 = vector.load %arg37[%c0_116, %c16] : memref<16x32xbf16, #tpu.memory_space<vmem>>, vector<8x8xbf16>
    tpu.vector_store %arg37[%c0_116, %c16], %181 {strides = array<i32>} : memref<16x32xbf16, #tpu.memory_space<vmem>>, vector<8x8xbf16>,
    %183 = vector.extract_strided_slice %173 {offsets = [3, 0, 0], sizes = [1, 8, 8], strides = [1, 1, 1]} : vector<4x8x8xbf16> to vector<1x8x8xbf16>
    %184 = vector.shape_cast %183 : vector<1x8x8xbf16> to vector<8x8xbf16>
    %c0_117 = arith.constant 0 : index
    %c24 = arith.constant 24 : index
    %185 = vector.load %arg37[%c0_117, %c24] : memref<16x32xbf16, #tpu.memory_space<vmem>>, vector<8x8xbf16>
    tpu.vector_store %arg37[%c0_117, %c24], %184 {strides = array<i32>} : memref<16x32xbf16, #tpu.memory_space<vmem>>, vector<8x8xbf16>,
    %c1_118 = arith.constant 1 : index
    %c0_119 = arith.constant 0 : index
    %c0_120 = arith.constant 0 : index
    %186 = vector.load %arg2[%c1_118, %c0_119, %c0_120] : memref<2x8x8xf32, #tpu.memory_space<vmem>>, vector<1x8x8xf32>
    %187 = vector.shape_cast %186 : vector<1x8x8xf32> to vector<8x8xf32>
    %cst_121 = arith.constant 0.000000e+00 : f32
    %188 = vector.broadcast %cst_121 : f32 to vector<8x8xf32>
    %189 = arith.cmpf ogt, %187, %188 : vector<8x8xf32>
    %cst_122 = arith.constant 0.000000e+00 : f32
    %cst_123 = arith.constant -1.000000e+09 : f32
    %190 = vector.broadcast %cst_122 : f32 to vector<8x8xf32>
    %191 = vector.broadcast %cst_123 : f32 to vector<8x8xf32>
    %192 = arith.select %189, %190, %191 : vector<8x8xi1>, vector<8x8xf32>
    %c4_124 = arith.constant 4 : index
    %c0_125 = arith.constant 0 : index
    %c0_126 = arith.constant 0 : index
    %193 = vector.load %arg32[%c4_124, %c0_125, %c0_126] : memref<8x8x8xbf16, #tpu.memory_space<vmem>>, vector<4x8x8xbf16>
    %c4_127 = arith.constant 4 : index
    %c0_128 = arith.constant 0 : index
    %c0_129 = arith.constant 0 : index
    %194 = vector.load %arg33[%c4_127, %c0_128, %c0_129] : memref<8x8x8xbf16, #tpu.memory_space<vmem>>, vector<4x8x8xbf16>
    %c4_130 = arith.constant 4 : index
    %c0_131 = arith.constant 0 : index
    %c0_132 = arith.constant 0 : index
    %195 = vector.load %arg34[%c4_130, %c0_131, %c0_132] : memref<8x8x8xbf16, #tpu.memory_space<vmem>>, vector<4x8x8xbf16>
    "tpu.trace_start"() <{level = 10 : i32, message = "htd,hsd->hts"}> : () -> ()
    %cst_133 = arith.constant dense<0.000000e+00> : vector<4x8x8xf32>
    %196 = tpu.matmul %193, %194, %cst_133 {dimension_numbers = #tpu.dot_dimension_numbers<[2], [2], [1], [1], [0, 0, 0, 1, 1, 1], [0], [0]>} : vector<4x8x8xbf16>, vector<4x8x8xbf16>, vector<4x8x8xf32> -> vector<4x8x8xf32>
    "tpu.trace_stop"() : () -> ()
    %197 = vector.shape_cast %192 : vector<8x8xf32> to vector<1x8x8xf32>
    %198 = vector.broadcast %197 : vector<1x8x8xf32> to vector<4x8x8xf32>
    %199 = arith.addf %196, %198 : vector<4x8x8xf32>
    %cst_134 = arith.constant dense<0xFF800000> : vector<4x8xf32>
    %200 = vector.multi_reduction <maximumf>, %199, %cst_134 [2] : vector<4x8x8xf32> to vector<4x8xf32>
    %201 = vector.shape_cast %200 : vector<4x8xf32> to vector<4x8x1xf32>
    %202 = vector.broadcast %201 : vector<4x8x1xf32> to vector<4x8x8xf32>
    %203 = arith.subf %199, %202 : vector<4x8x8xf32>
    %204 = math.exp %203 : vector<4x8x8xf32>
    %cst_135 = arith.constant dense<0.000000e+00> : vector<4x8xf32>
    %205 = vector.multi_reduction <add>, %204, %cst_135 [2] : vector<4x8x8xf32> to vector<4x8xf32>
    %206 = vector.shape_cast %205 : vector<4x8xf32> to vector<4x8x1xf32>
    %207 = tpu.reciprocal %206 {approx = true} : vector<4x8x1xf32> -> vector<4x8x1xf32>
    %208 = vector.broadcast %207 : vector<4x8x1xf32> to vector<4x8x8xf32>
    %209 = arith.mulf %204, %208 : vector<4x8x8xf32>
    %210 = arith.truncf %209 : vector<4x8x8xf32> to vector<4x8x8xbf16>
    "tpu.trace_start"() <{level = 10 : i32, message = "hts,hsd->htd"}> : () -> ()
    %cst_136 = arith.constant dense<0.000000e+00> : vector<4x8x8xf32>
    %211 = tpu.matmul %210, %195, %cst_136 {dimension_numbers = #tpu.dot_dimension_numbers<[2], [1], [1], [2], [0, 0, 0, 1, 1, 2], [0], [0]>} : vector<4x8x8xbf16>, vector<4x8x8xbf16>, vector<4x8x8xf32> -> vector<4x8x8xf32>
    "tpu.trace_stop"() : () -> ()
    %212 = arith.truncf %211 : vector<4x8x8xf32> to vector<4x8x8xbf16>
    %213 = vector.extract_strided_slice %212 {offsets = [0, 0, 0], sizes = [1, 8, 8], strides = [1, 1, 1]} : vector<4x8x8xbf16> to vector<1x8x8xbf16>
    %214 = vector.shape_cast %213 : vector<1x8x8xbf16> to vector<8x8xbf16>
    %c8_137 = arith.constant 8 : index
    %c0_138 = arith.constant 0 : index
    %215 = vector.load %arg37[%c8_137, %c0_138] : memref<16x32xbf16, #tpu.memory_space<vmem>>, vector<8x8xbf16>
    tpu.vector_store %arg37[%c8_137, %c0_138], %214 {strides = array<i32>} : memref<16x32xbf16, #tpu.memory_space<vmem>>, vector<8x8xbf16>,
    %216 = vector.extract_strided_slice %212 {offsets = [1, 0, 0], sizes = [1, 8, 8], strides = [1, 1, 1]} : vector<4x8x8xbf16> to vector<1x8x8xbf16>
    %217 = vector.shape_cast %216 : vector<1x8x8xbf16> to vector<8x8xbf16>
    %c8_139 = arith.constant 8 : index
    %c8_140 = arith.constant 8 : index
    %218 = vector.load %arg37[%c8_139, %c8_140] : memref<16x32xbf16, #tpu.memory_space<vmem>>, vector<8x8xbf16>
    tpu.vector_store %arg37[%c8_139, %c8_140], %217 {strides = array<i32>} : memref<16x32xbf16, #tpu.memory_space<vmem>>, vector<8x8xbf16>,
    %219 = vector.extract_strided_slice %212 {offsets = [2, 0, 0], sizes = [1, 8, 8], strides = [1, 1, 1]} : vector<4x8x8xbf16> to vector<1x8x8xbf16>
    %220 = vector.shape_cast %219 : vector<1x8x8xbf16> to vector<8x8xbf16>
    %c8_141 = arith.constant 8 : index
    %c16_142 = arith.constant 16 : index
    %221 = vector.load %arg37[%c8_141, %c16_142] : memref<16x32xbf16, #tpu.memory_space<vmem>>, vector<8x8xbf16>
    tpu.vector_store %arg37[%c8_141, %c16_142], %220 {strides = array<i32>} : memref<16x32xbf16, #tpu.memory_space<vmem>>, vector<8x8xbf16>,
    %222 = vector.extract_strided_slice %212 {offsets = [3, 0, 0], sizes = [1, 8, 8], strides = [1, 1, 1]} : vector<4x8x8xbf16> to vector<1x8x8xbf16>
    %223 = vector.shape_cast %222 : vector<1x8x8xbf16> to vector<8x8xbf16>
    %c8_143 = arith.constant 8 : index
    %c24_144 = arith.constant 24 : index
    %224 = vector.load %arg37[%c8_143, %c24_144] : memref<16x32xbf16, #tpu.memory_space<vmem>>, vector<8x8xbf16>
    tpu.vector_store %arg37[%c8_143, %c24_144], %223 {strides = array<i32>} : memref<16x32xbf16, #tpu.memory_space<vmem>>, vector<8x8xbf16>,
    %c0_145 = arith.constant 0 : index
    %c0_146 = arith.constant 0 : index
    %225 = vector.load %arg37[%c0_145, %c0_146] : memref<16x32xbf16, #tpu.memory_space<vmem>>, vector<16x32xbf16>
    %c0_147 = arith.constant 0 : index
    %c0_148 = arith.constant 0 : index
    %226 = vector.load %arg17[%c0_147, %c0_148] : memref<32x32xbf16, #tpu.memory_space<vmem>>, vector<32x32xbf16>
    %cst_149 = arith.constant dense<0.000000e+00> : vector<16x32xf32>
    %227 = tpu.matmul %225, %226, %cst_149 {dimension_numbers = #tpu.dot_dimension_numbers<[1], [0], [0], [1], [0, 0, 1, 1], [], []>} : vector<16x32xbf16>, vector<32x32xbf16>, vector<16x32xf32> -> vector<16x32xf32>
    %c0_150 = arith.constant 0 : index
    %c0_151 = arith.constant 0 : index
    %228 = vector.load %arg18[%c0_150, %c0_151] : memref<1x32xf32, #tpu.memory_space<vmem>>, vector<1x32xf32>
    %229 = vector.broadcast %228 : vector<1x32xf32> to vector<16x32xf32>
    %230 = arith.addf %227, %229 : vector<16x32xf32>
    %231 = arith.addf %1, %230 : vector<16x32xf32>
    %cst_152 = arith.constant dense<0.000000e+00> : vector<16xf32>
    %232 = vector.multi_reduction <add>, %231, %cst_152 [1] : vector<16x32xf32> to vector<16xf32>
    %233 = vector.shape_cast %232 : vector<16xf32> to vector<16x1xf32>
    %cst_153 = arith.constant 3.200000e+01 : f32
    %234 = vector.broadcast %cst_153 : f32 to vector<16x1xf32>
    %235 = arith.divf %233, %234 : vector<16x1xf32>
    %236 = vector.broadcast %235 : vector<16x1xf32> to vector<16x32xf32>
    %237 = arith.subf %231, %236 : vector<16x32xf32>
    %238 = arith.mulf %237, %237 : vector<16x32xf32>
    %cst_154 = arith.constant dense<0.000000e+00> : vector<16xf32>
    %239 = vector.multi_reduction <add>, %238, %cst_154 [1] : vector<16x32xf32> to vector<16xf32>
    %240 = vector.shape_cast %239 : vector<16xf32> to vector<16x1xf32>
    %cst_155 = arith.constant 3.200000e+01 : f32
    %241 = vector.broadcast %cst_155 : f32 to vector<16x1xf32>
    %242 = arith.divf %240, %241 : vector<16x1xf32>
    %243 = vector.broadcast %235 : vector<16x1xf32> to vector<16x32xf32>
    %244 = arith.subf %231, %243 : vector<16x32xf32>
    %cst_156 = arith.constant 9.99999974E-6 : f32
    %245 = vector.broadcast %cst_156 : f32 to vector<16x1xf32>
    %246 = arith.addf %242, %245 : vector<16x1xf32>
    %247 = math.rsqrt %246 : vector<16x1xf32>
    %248 = vector.broadcast %247 : vector<16x1xf32> to vector<16x32xf32>
    %249 = arith.mulf %244, %248 : vector<16x32xf32>
    %c0_157 = arith.constant 0 : index
    %c0_158 = arith.constant 0 : index
    %250 = vector.load %arg7[%c0_157, %c0_158] : memref<1x32xf32, #tpu.memory_space<vmem>>, vector<1x32xf32>
    %251 = vector.broadcast %250 : vector<1x32xf32> to vector<16x32xf32>
    %252 = arith.mulf %249, %251 : vector<16x32xf32>
    %c0_159 = arith.constant 0 : index
    %c0_160 = arith.constant 0 : index
    %253 = vector.load %arg8[%c0_159, %c0_160] : memref<1x32xf32, #tpu.memory_space<vmem>>, vector<1x32xf32>
    %254 = vector.broadcast %253 : vector<1x32xf32> to vector<16x32xf32>
    %255 = arith.addf %252, %254 : vector<16x32xf32>
    %256 = arith.truncf %255 : vector<16x32xf32> to vector<16x32xbf16>
    %c0_161 = arith.constant 0 : index
    %c0_162 = arith.constant 0 : index
    %257 = vector.load %arg19[%c0_161, %c0_162] : memref<32x32xbf16, #tpu.memory_space<vmem>>, vector<32x32xbf16>
    %cst_163 = arith.constant dense<0.000000e+00> : vector<16x32xf32>
    %258 = tpu.matmul %256, %257, %cst_163 {dimension_numbers = #tpu.dot_dimension_numbers<[1], [0], [0], [1], [0, 0, 1, 1], [], []>} : vector<16x32xbf16>, vector<32x32xbf16>, vector<16x32xf32> -> vector<16x32xf32>
    %c0_164 = arith.constant 0 : index
    %c0_165 = arith.constant 0 : index
    %259 = vector.load %arg20[%c0_164, %c0_165] : memref<1x32xf32, #tpu.memory_space<vmem>>, vector<1x32xf32>
    %260 = vector.broadcast %259 : vector<1x32xf32> to vector<16x32xf32>
    %261 = arith.addf %258, %260 : vector<16x32xf32>
    %cst_166 = arith.constant 0.353553385 : f32
    %262 = vector.broadcast %cst_166 : f32 to vector<16x32xf32>
    %263 = arith.mulf %261, %262 : vector<16x32xf32>
    %264 = arith.truncf %3 : vector<32x32xf32> to vector<32x32xbf16>
    %c0_167 = arith.constant 0 : index
    %c0_168 = arith.constant 0 : index
    %265 = vector.load %arg21[%c0_167, %c0_168] : memref<32x32xbf16, #tpu.memory_space<vmem>>, vector<32x32xbf16>
    %cst_169 = arith.constant dense<0.000000e+00> : vector<32x32xf32>
    %266 = tpu.matmul %264, %265, %cst_169 {dimension_numbers = #tpu.dot_dimension_numbers<[1], [0], [0], [1], [0, 0, 1, 1], [], []>} : vector<32x32xbf16>, vector<32x32xbf16>, vector<32x32xf32> -> vector<32x32xf32>
    %c0_170 = arith.constant 0 : index
    %c0_171 = arith.constant 0 : index
    %267 = vector.load %arg22[%c0_170, %c0_171] : memref<1x32xf32, #tpu.memory_space<vmem>>, vector<1x32xf32>
    %268 = vector.broadcast %267 : vector<1x32xf32> to vector<32x32xf32>
    %269 = arith.addf %266, %268 : vector<32x32xf32>
    %270 = arith.truncf %3 : vector<32x32xf32> to vector<32x32xbf16>
    %c0_172 = arith.constant 0 : index
    %c0_173 = arith.constant 0 : index
    %271 = vector.load %arg23[%c0_172, %c0_173] : memref<32x32xbf16, #tpu.memory_space<vmem>>, vector<32x32xbf16>
    %cst_174 = arith.constant dense<0.000000e+00> : vector<32x32xf32>
    %272 = tpu.matmul %270, %271, %cst_174 {dimension_numbers = #tpu.dot_dimension_numbers<[1], [0], [0], [1], [0, 0, 1, 1], [], []>} : vector<32x32xbf16>, vector<32x32xbf16>, vector<32x32xf32> -> vector<32x32xf32>
    %c0_175 = arith.constant 0 : index
    %c0_176 = arith.constant 0 : index
    %273 = vector.load %arg24[%c0_175, %c0_176] : memref<1x32xf32, #tpu.memory_space<vmem>>, vector<1x32xf32>
    %274 = vector.broadcast %273 : vector<1x32xf32> to vector<32x32xf32>
    %275 = arith.addf %272, %274 : vector<32x32xf32>
    %276 = arith.truncf %263 : vector<16x32xf32> to vector<16x32xbf16>
    %277 = arith.truncf %269 : vector<32x32xf32> to vector<32x32xbf16>
    %278 = arith.truncf %275 : vector<32x32xf32> to vector<32x32xbf16>
    %279 = vector.extract_strided_slice %276 {offsets = [0, 0], sizes = [8, 8], strides = [1, 1]} : vector<16x32xbf16> to vector<8x8xbf16>
    %c0_177 = arith.constant 0 : index
    %c0_178 = arith.constant 0 : index
    %c0_179 = arith.constant 0 : index
    %280 = vector.load %arg32[%c0_177, %c0_178, %c0_179] : memref<8x8x8xbf16, #tpu.memory_space<vmem>>, vector<1x8x8xbf16>
    %281 = vector.shape_cast %280 : vector<1x8x8xbf16> to vector<8x8xbf16>
    %282 = vector.shape_cast %279 : vector<8x8xbf16> to vector<1x8x8xbf16>
    tpu.vector_store %arg32[%c0_177, %c0_178, %c0_179], %282 {strides = array<i32>} : memref<8x8x8xbf16, #tpu.memory_space<vmem>>, vector<1x8x8xbf16>,
    %283 = vector.extract_strided_slice %277 {offsets = [0, 0], sizes = [16, 8], strides = [1, 1]} : vector<32x32xbf16> to vector<16x8xbf16>
    %c0_180 = arith.constant 0 : index
    %c0_181 = arith.constant 0 : index
    %c0_182 = arith.constant 0 : index
    %284 = vector.load %arg35[%c0_180, %c0_181, %c0_182] : memref<8x16x8xbf16, #tpu.memory_space<vmem>>, vector<1x16x8xbf16>
    %285 = vector.shape_cast %284 : vector<1x16x8xbf16> to vector<16x8xbf16>
    %286 = vector.shape_cast %283 : vector<16x8xbf16> to vector<1x16x8xbf16>
    tpu.vector_store %arg35[%c0_180, %c0_181, %c0_182], %286 {strides = array<i32>} : memref<8x16x8xbf16, #tpu.memory_space<vmem>>, vector<1x16x8xbf16>,
    %287 = vector.extract_strided_slice %278 {offsets = [0, 0], sizes = [16, 8], strides = [1, 1]} : vector<32x32xbf16> to vector<16x8xbf16>
    %c0_183 = arith.constant 0 : index
    %c0_184 = arith.constant 0 : index
    %c0_185 = arith.constant 0 : index
    %288 = vector.load %arg36[%c0_183, %c0_184, %c0_185] : memref<8x16x8xbf16, #tpu.memory_space<vmem>>, vector<1x16x8xbf16>
    %289 = vector.shape_cast %288 : vector<1x16x8xbf16> to vector<16x8xbf16>
    %290 = vector.shape_cast %287 : vector<16x8xbf16> to vector<1x16x8xbf16>
    tpu.vector_store %arg36[%c0_183, %c0_184, %c0_185], %290 {strides = array<i32>} : memref<8x16x8xbf16, #tpu.memory_space<vmem>>, vector<1x16x8xbf16>,
    %291 = vector.extract_strided_slice %276 {offsets = [0, 8], sizes = [8, 8], strides = [1, 1]} : vector<16x32xbf16> to vector<8x8xbf16>
    %c1_186 = arith.constant 1 : index
    %c0_187 = arith.constant 0 : index
    %c0_188 = arith.constant 0 : index
    %292 = vector.load %arg32[%c1_186, %c0_187, %c0_188] : memref<8x8x8xbf16, #tpu.memory_space<vmem>>, vector<1x8x8xbf16>
    %293 = vector.shape_cast %292 : vector<1x8x8xbf16> to vector<8x8xbf16>
    %294 = vector.shape_cast %291 : vector<8x8xbf16> to vector<1x8x8xbf16>
    tpu.vector_store %arg32[%c1_186, %c0_187, %c0_188], %294 {strides = array<i32>} : memref<8x8x8xbf16, #tpu.memory_space<vmem>>, vector<1x8x8xbf16>,
    %295 = vector.extract_strided_slice %277 {offsets = [0, 8], sizes = [16, 8], strides = [1, 1]} : vector<32x32xbf16> to vector<16x8xbf16>
    %c1_189 = arith.constant 1 : index
    %c0_190 = arith.constant 0 : index
    %c0_191 = arith.constant 0 : index
    %296 = vector.load %arg35[%c1_189, %c0_190, %c0_191] : memref<8x16x8xbf16, #tpu.memory_space<vmem>>, vector<1x16x8xbf16>
    %297 = vector.shape_cast %296 : vector<1x16x8xbf16> to vector<16x8xbf16>
    %298 = vector.shape_cast %295 : vector<16x8xbf16> to vector<1x16x8xbf16>
    tpu.vector_store %arg35[%c1_189, %c0_190, %c0_191], %298 {strides = array<i32>} : memref<8x16x8xbf16, #tpu.memory_space<vmem>>, vector<1x16x8xbf16>,
    %299 = vector.extract_strided_slice %278 {offsets = [0, 8], sizes = [16, 8], strides = [1, 1]} : vector<32x32xbf16> to vector<16x8xbf16>
    %c1_192 = arith.constant 1 : index
    %c0_193 = arith.constant 0 : index
    %c0_194 = arith.constant 0 : index
    %300 = vector.load %arg36[%c1_192, %c0_193, %c0_194] : memref<8x16x8xbf16, #tpu.memory_space<vmem>>, vector<1x16x8xbf16>
    %301 = vector.shape_cast %300 : vector<1x16x8xbf16> to vector<16x8xbf16>
    %302 = vector.shape_cast %299 : vector<16x8xbf16> to vector<1x16x8xbf16>
    tpu.vector_store %arg36[%c1_192, %c0_193, %c0_194], %302 {strides = array<i32>} : memref<8x16x8xbf16, #tpu.memory_space<vmem>>, vector<1x16x8xbf16>,
    %303 = vector.extract_strided_slice %276 {offsets = [0, 16], sizes = [8, 8], strides = [1, 1]} : vector<16x32xbf16> to vector<8x8xbf16>
    %c2_195 = arith.constant 2 : index
    %c0_196 = arith.constant 0 : index
    %c0_197 = arith.constant 0 : index
    %304 = vector.load %arg32[%c2_195, %c0_196, %c0_197] : memref<8x8x8xbf16, #tpu.memory_space<vmem>>, vector<1x8x8xbf16>
    %305 = vector.shape_cast %304 : vector<1x8x8xbf16> to vector<8x8xbf16>
    %306 = vector.shape_cast %303 : vector<8x8xbf16> to vector<1x8x8xbf16>
    tpu.vector_store %arg32[%c2_195, %c0_196, %c0_197], %306 {strides = array<i32>} : memref<8x8x8xbf16, #tpu.memory_space<vmem>>, vector<1x8x8xbf16>,
    %307 = vector.extract_strided_slice %277 {offsets = [0, 16], sizes = [16, 8], strides = [1, 1]} : vector<32x32xbf16> to vector<16x8xbf16>
    %c2_198 = arith.constant 2 : index
    %c0_199 = arith.constant 0 : index
    %c0_200 = arith.constant 0 : index
    %308 = vector.load %arg35[%c2_198, %c0_199, %c0_200] : memref<8x16x8xbf16, #tpu.memory_space<vmem>>, vector<1x16x8xbf16>
    %309 = vector.shape_cast %308 : vector<1x16x8xbf16> to vector<16x8xbf16>
    %310 = vector.shape_cast %307 : vector<16x8xbf16> to vector<1x16x8xbf16>
    tpu.vector_store %arg35[%c2_198, %c0_199, %c0_200], %310 {strides = array<i32>} : memref<8x16x8xbf16, #tpu.memory_space<vmem>>, vector<1x16x8xbf16>,
    %311 = vector.extract_strided_slice %278 {offsets = [0, 16], sizes = [16, 8], strides = [1, 1]} : vector<32x32xbf16> to vector<16x8xbf16>
    %c2_201 = arith.constant 2 : index
    %c0_202 = arith.constant 0 : index
    %c0_203 = arith.constant 0 : index
    %312 = vector.load %arg36[%c2_201, %c0_202, %c0_203] : memref<8x16x8xbf16, #tpu.memory_space<vmem>>, vector<1x16x8xbf16>
    %313 = vector.shape_cast %312 : vector<1x16x8xbf16> to vector<16x8xbf16>
    %314 = vector.shape_cast %311 : vector<16x8xbf16> to vector<1x16x8xbf16>
    tpu.vector_store %arg36[%c2_201, %c0_202, %c0_203], %314 {strides = array<i32>} : memref<8x16x8xbf16, #tpu.memory_space<vmem>>, vector<1x16x8xbf16>,
    %315 = vector.extract_strided_slice %276 {offsets = [0, 24], sizes = [8, 8], strides = [1, 1]} : vector<16x32xbf16> to vector<8x8xbf16>
    %c3_204 = arith.constant 3 : index
    %c0_205 = arith.constant 0 : index
    %c0_206 = arith.constant 0 : index
    %316 = vector.load %arg32[%c3_204, %c0_205, %c0_206] : memref<8x8x8xbf16, #tpu.memory_space<vmem>>, vector<1x8x8xbf16>
    %317 = vector.shape_cast %316 : vector<1x8x8xbf16> to vector<8x8xbf16>
    %318 = vector.shape_cast %315 : vector<8x8xbf16> to vector<1x8x8xbf16>
    tpu.vector_store %arg32[%c3_204, %c0_205, %c0_206], %318 {strides = array<i32>} : memref<8x8x8xbf16, #tpu.memory_space<vmem>>, vector<1x8x8xbf16>,
    %319 = vector.extract_strided_slice %277 {offsets = [0, 24], sizes = [16, 8], strides = [1, 1]} : vector<32x32xbf16> to vector<16x8xbf16>
    %c3_207 = arith.constant 3 : index
    %c0_208 = arith.constant 0 : index
    %c0_209 = arith.constant 0 : index
    %320 = vector.load %arg35[%c3_207, %c0_208, %c0_209] : memref<8x16x8xbf16, #tpu.memory_space<vmem>>, vector<1x16x8xbf16>
    %321 = vector.shape_cast %320 : vector<1x16x8xbf16> to vector<16x8xbf16>
    %322 = vector.shape_cast %319 : vector<16x8xbf16> to vector<1x16x8xbf16>
    tpu.vector_store %arg35[%c3_207, %c0_208, %c0_209], %322 {strides = array<i32>} : memref<8x16x8xbf16, #tpu.memory_space<vmem>>, vector<1x16x8xbf16>,
    %323 = vector.extract_strided_slice %278 {offsets = [0, 24], sizes = [16, 8], strides = [1, 1]} : vector<32x32xbf16> to vector<16x8xbf16>
    %c3_210 = arith.constant 3 : index
    %c0_211 = arith.constant 0 : index
    %c0_212 = arith.constant 0 : index
    %324 = vector.load %arg36[%c3_210, %c0_211, %c0_212] : memref<8x16x8xbf16, #tpu.memory_space<vmem>>, vector<1x16x8xbf16>
    %325 = vector.shape_cast %324 : vector<1x16x8xbf16> to vector<16x8xbf16>
    %326 = vector.shape_cast %323 : vector<16x8xbf16> to vector<1x16x8xbf16>
    tpu.vector_store %arg36[%c3_210, %c0_211, %c0_212], %326 {strides = array<i32>} : memref<8x16x8xbf16, #tpu.memory_space<vmem>>, vector<1x16x8xbf16>,
    %327 = vector.extract_strided_slice %276 {offsets = [8, 0], sizes = [8, 8], strides = [1, 1]} : vector<16x32xbf16> to vector<8x8xbf16>
    %c4_213 = arith.constant 4 : index
    %c0_214 = arith.constant 0 : index
    %c0_215 = arith.constant 0 : index
    %328 = vector.load %arg32[%c4_213, %c0_214, %c0_215] : memref<8x8x8xbf16, #tpu.memory_space<vmem>>, vector<1x8x8xbf16>
    %329 = vector.shape_cast %328 : vector<1x8x8xbf16> to vector<8x8xbf16>
    %330 = vector.shape_cast %327 : vector<8x8xbf16> to vector<1x8x8xbf16>
    tpu.vector_store %arg32[%c4_213, %c0_214, %c0_215], %330 {strides = array<i32>} : memref<8x8x8xbf16, #tpu.memory_space<vmem>>, vector<1x8x8xbf16>,
    %331 = vector.extract_strided_slice %277 {offsets = [16, 0], sizes = [16, 8], strides = [1, 1]} : vector<32x32xbf16> to vector<16x8xbf16>
    %c4_216 = arith.constant 4 : index
    %c0_217 = arith.constant 0 : index
    %c0_218 = arith.constant 0 : index
    %332 = vector.load %arg35[%c4_216, %c0_217, %c0_218] : memref<8x16x8xbf16, #tpu.memory_space<vmem>>, vector<1x16x8xbf16>
    %333 = vector.shape_cast %332 : vector<1x16x8xbf16> to vector<16x8xbf16>
    %334 = vector.shape_cast %331 : vector<16x8xbf16> to vector<1x16x8xbf16>
    tpu.vector_store %arg35[%c4_216, %c0_217, %c0_218], %334 {strides = array<i32>} : memref<8x16x8xbf16, #tpu.memory_space<vmem>>, vector<1x16x8xbf16>,
    %335 = vector.extract_strided_slice %278 {offsets = [16, 0], sizes = [16, 8], strides = [1, 1]} : vector<32x32xbf16> to vector<16x8xbf16>
    %c4_219 = arith.constant 4 : index
    %c0_220 = arith.constant 0 : index
    %c0_221 = arith.constant 0 : index
    %336 = vector.load %arg36[%c4_219, %c0_220, %c0_221] : memref<8x16x8xbf16, #tpu.memory_space<vmem>>, vector<1x16x8xbf16>
    %337 = vector.shape_cast %336 : vector<1x16x8xbf16> to vector<16x8xbf16>
    %338 = vector.shape_cast %335 : vector<16x8xbf16> to vector<1x16x8xbf16>
    tpu.vector_store %arg36[%c4_219, %c0_220, %c0_221], %338 {strides = array<i32>} : memref<8x16x8xbf16, #tpu.memory_space<vmem>>, vector<1x16x8xbf16>,
    %339 = vector.extract_strided_slice %276 {offsets = [8, 8], sizes = [8, 8], strides = [1, 1]} : vector<16x32xbf16> to vector<8x8xbf16>
    %c5_222 = arith.constant 5 : index
    %c0_223 = arith.constant 0 : index
    %c0_224 = arith.constant 0 : index
    %340 = vector.load %arg32[%c5_222, %c0_223, %c0_224] : memref<8x8x8xbf16, #tpu.memory_space<vmem>>, vector<1x8x8xbf16>
    %341 = vector.shape_cast %340 : vector<1x8x8xbf16> to vector<8x8xbf16>
    %342 = vector.shape_cast %339 : vector<8x8xbf16> to vector<1x8x8xbf16>
    tpu.vector_store %arg32[%c5_222, %c0_223, %c0_224], %342 {strides = array<i32>} : memref<8x8x8xbf16, #tpu.memory_space<vmem>>, vector<1x8x8xbf16>,
    %343 = vector.extract_strided_slice %277 {offsets = [16, 8], sizes = [16, 8], strides = [1, 1]} : vector<32x32xbf16> to vector<16x8xbf16>
    %c5_225 = arith.constant 5 : index
    %c0_226 = arith.constant 0 : index
    %c0_227 = arith.constant 0 : index
    %344 = vector.load %arg35[%c5_225, %c0_226, %c0_227] : memref<8x16x8xbf16, #tpu.memory_space<vmem>>, vector<1x16x8xbf16>
    %345 = vector.shape_cast %344 : vector<1x16x8xbf16> to vector<16x8xbf16>
    %346 = vector.shape_cast %343 : vector<16x8xbf16> to vector<1x16x8xbf16>
    tpu.vector_store %arg35[%c5_225, %c0_226, %c0_227], %346 {strides = array<i32>} : memref<8x16x8xbf16, #tpu.memory_space<vmem>>, vector<1x16x8xbf16>,
    %347 = vector.extract_strided_slice %278 {offsets = [16, 8], sizes = [16, 8], strides = [1, 1]} : vector<32x32xbf16> to vector<16x8xbf16>
    %c5_228 = arith.constant 5 : index
    %c0_229 = arith.constant 0 : index
    %c0_230 = arith.constant 0 : index
    %348 = vector.load %arg36[%c5_228, %c0_229, %c0_230] : memref<8x16x8xbf16, #tpu.memory_space<vmem>>, vector<1x16x8xbf16>
    %349 = vector.shape_cast %348 : vector<1x16x8xbf16> to vector<16x8xbf16>
    %350 = vector.shape_cast %347 : vector<16x8xbf16> to vector<1x16x8xbf16>
    tpu.vector_store %arg36[%c5_228, %c0_229, %c0_230], %350 {strides = array<i32>} : memref<8x16x8xbf16, #tpu.memory_space<vmem>>, vector<1x16x8xbf16>,
    %351 = vector.extract_strided_slice %276 {offsets = [8, 16], sizes = [8, 8], strides = [1, 1]} : vector<16x32xbf16> to vector<8x8xbf16>
    %c6_231 = arith.constant 6 : index
    %c0_232 = arith.constant 0 : index
    %c0_233 = arith.constant 0 : index
    %352 = vector.load %arg32[%c6_231, %c0_232, %c0_233] : memref<8x8x8xbf16, #tpu.memory_space<vmem>>, vector<1x8x8xbf16>
    %353 = vector.shape_cast %352 : vector<1x8x8xbf16> to vector<8x8xbf16>
    %354 = vector.shape_cast %351 : vector<8x8xbf16> to vector<1x8x8xbf16>
    tpu.vector_store %arg32[%c6_231, %c0_232, %c0_233], %354 {strides = array<i32>} : memref<8x8x8xbf16, #tpu.memory_space<vmem>>, vector<1x8x8xbf16>,
    %355 = vector.extract_strided_slice %277 {offsets = [16, 16], sizes = [16, 8], strides = [1, 1]} : vector<32x32xbf16> to vector<16x8xbf16>
    %c6_234 = arith.constant 6 : index
    %c0_235 = arith.constant 0 : index
    %c0_236 = arith.constant 0 : index
    %356 = vector.load %arg35[%c6_234, %c0_235, %c0_236] : memref<8x16x8xbf16, #tpu.memory_space<vmem>>, vector<1x16x8xbf16>
    %357 = vector.shape_cast %356 : vector<1x16x8xbf16> to vector<16x8xbf16>
    %358 = vector.shape_cast %355 : vector<16x8xbf16> to vector<1x16x8xbf16>
    tpu.vector_store %arg35[%c6_234, %c0_235, %c0_236], %358 {strides = array<i32>} : memref<8x16x8xbf16, #tpu.memory_space<vmem>>, vector<1x16x8xbf16>,
    %359 = vector.extract_strided_slice %278 {offsets = [16, 16], sizes = [16, 8], strides = [1, 1]} : vector<32x32xbf16> to vector<16x8xbf16>
    %c6_237 = arith.constant 6 : index
    %c0_238 = arith.constant 0 : index
    %c0_239 = arith.constant 0 : index
    %360 = vector.load %arg36[%c6_237, %c0_238, %c0_239] : memref<8x16x8xbf16, #tpu.memory_space<vmem>>, vector<1x16x8xbf16>
    %361 = vector.shape_cast %360 : vector<1x16x8xbf16> to vector<16x8xbf16>
    %362 = vector.shape_cast %359 : vector<16x8xbf16> to vector<1x16x8xbf16>
    tpu.vector_store %arg36[%c6_237, %c0_238, %c0_239], %362 {strides = array<i32>} : memref<8x16x8xbf16, #tpu.memory_space<vmem>>, vector<1x16x8xbf16>,
    %363 = vector.extract_strided_slice %276 {offsets = [8, 24], sizes = [8, 8], strides = [1, 1]} : vector<16x32xbf16> to vector<8x8xbf16>
    %c7_240 = arith.constant 7 : index
    %c0_241 = arith.constant 0 : index
    %c0_242 = arith.constant 0 : index
    %364 = vector.load %arg32[%c7_240, %c0_241, %c0_242] : memref<8x8x8xbf16, #tpu.memory_space<vmem>>, vector<1x8x8xbf16>
    %365 = vector.shape_cast %364 : vector<1x8x8xbf16> to vector<8x8xbf16>
    %366 = vector.shape_cast %363 : vector<8x8xbf16> to vector<1x8x8xbf16>
    tpu.vector_store %arg32[%c7_240, %c0_241, %c0_242], %366 {strides = array<i32>} : memref<8x8x8xbf16, #tpu.memory_space<vmem>>, vector<1x8x8xbf16>,
    %367 = vector.extract_strided_slice %277 {offsets = [16, 24], sizes = [16, 8], strides = [1, 1]} : vector<32x32xbf16> to vector<16x8xbf16>
    %c7_243 = arith.constant 7 : index
    %c0_244 = arith.constant 0 : index
    %c0_245 = arith.constant 0 : index
    %368 = vector.load %arg35[%c7_243, %c0_244, %c0_245] : memref<8x16x8xbf16, #tpu.memory_space<vmem>>, vector<1x16x8xbf16>
    %369 = vector.shape_cast %368 : vector<1x16x8xbf16> to vector<16x8xbf16>
    %370 = vector.shape_cast %367 : vector<16x8xbf16> to vector<1x16x8xbf16>
    tpu.vector_store %arg35[%c7_243, %c0_244, %c0_245], %370 {strides = array<i32>} : memref<8x16x8xbf16, #tpu.memory_space<vmem>>, vector<1x16x8xbf16>,
    %371 = vector.extract_strided_slice %278 {offsets = [16, 24], sizes = [16, 8], strides = [1, 1]} : vector<32x32xbf16> to vector<16x8xbf16>
    %c7_246 = arith.constant 7 : index
    %c0_247 = arith.constant 0 : index
    %c0_248 = arith.constant 0 : index
    %372 = vector.load %arg36[%c7_246, %c0_247, %c0_248] : memref<8x16x8xbf16, #tpu.memory_space<vmem>>, vector<1x16x8xbf16>
    %373 = vector.shape_cast %372 : vector<1x16x8xbf16> to vector<16x8xbf16>
    %374 = vector.shape_cast %371 : vector<16x8xbf16> to vector<1x16x8xbf16>
    tpu.vector_store %arg36[%c7_246, %c0_247, %c0_248], %374 {strides = array<i32>} : memref<8x16x8xbf16, #tpu.memory_space<vmem>>, vector<1x16x8xbf16>,
    %c0_249 = arith.constant 0 : index
    %c0_250 = arith.constant 0 : index
    %c0_251 = arith.constant 0 : index
    %375 = vector.load %arg4[%c0_249, %c0_250, %c0_251] : memref<2x8x16xf32, #tpu.memory_space<vmem>>, vector<1x8x16xf32>
    %376 = vector.shape_cast %375 : vector<1x8x16xf32> to vector<8x16xf32>
    %cst_252 = arith.constant 0.000000e+00 : f32
    %377 = vector.broadcast %cst_252 : f32 to vector<8x16xf32>
    %378 = arith.cmpf ogt, %376, %377 : vector<8x16xf32>
    %cst_253 = arith.constant 0.000000e+00 : f32
    %cst_254 = arith.constant -1.000000e+09 : f32
    %379 = vector.broadcast %cst_253 : f32 to vector<8x16xf32>
    %380 = vector.broadcast %cst_254 : f32 to vector<8x16xf32>
    %381 = arith.select %378, %379, %380 : vector<8x16xi1>, vector<8x16xf32>
    %c0_255 = arith.constant 0 : index
    %c0_256 = arith.constant 0 : index
    %c0_257 = arith.constant 0 : index
    %382 = vector.load %arg32[%c0_255, %c0_256, %c0_257] : memref<8x8x8xbf16, #tpu.memory_space<vmem>>, vector<4x8x8xbf16>
    %c0_258 = arith.constant 0 : index
    %c0_259 = arith.constant 0 : index
    %c0_260 = arith.constant 0 : index
    %383 = vector.load %arg35[%c0_258, %c0_259, %c0_260] : memref<8x16x8xbf16, #tpu.memory_space<vmem>>, vector<4x16x8xbf16>
    %c0_261 = arith.constant 0 : index
    %c0_262 = arith.constant 0 : index
    %c0_263 = arith.constant 0 : index
    %384 = vector.load %arg36[%c0_261, %c0_262, %c0_263] : memref<8x16x8xbf16, #tpu.memory_space<vmem>>, vector<4x16x8xbf16>
    "tpu.trace_start"() <{level = 10 : i32, message = "htd,hsd->hts"}> : () -> ()
    %cst_264 = arith.constant dense<0.000000e+00> : vector<4x8x16xf32>
    %385 = tpu.matmul %382, %383, %cst_264 {dimension_numbers = #tpu.dot_dimension_numbers<[2], [2], [1], [1], [0, 0, 0, 1, 1, 1], [0], [0]>} : vector<4x8x8xbf16>, vector<4x16x8xbf16>, vector<4x8x16xf32> -> vector<4x8x16xf32>
    "tpu.trace_stop"() : () -> ()
    %386 = vector.shape_cast %381 : vector<8x16xf32> to vector<1x8x16xf32>
    %387 = vector.broadcast %386 : vector<1x8x16xf32> to vector<4x8x16xf32>
    %388 = arith.addf %385, %387 : vector<4x8x16xf32>
    %cst_265 = arith.constant dense<0xFF800000> : vector<4x8xf32>
    %389 = vector.multi_reduction <maximumf>, %388, %cst_265 [2] : vector<4x8x16xf32> to vector<4x8xf32>
    %390 = vector.shape_cast %389 : vector<4x8xf32> to vector<4x8x1xf32>
    %391 = vector.broadcast %390 : vector<4x8x1xf32> to vector<4x8x16xf32>
    %392 = arith.subf %388, %391 : vector<4x8x16xf32>
    %393 = math.exp %392 : vector<4x8x16xf32>
    %cst_266 = arith.constant dense<0.000000e+00> : vector<4x8xf32>
    %394 = vector.multi_reduction <add>, %393, %cst_266 [2] : vector<4x8x16xf32> to vector<4x8xf32>
    %395 = vector.shape_cast %394 : vector<4x8xf32> to vector<4x8x1xf32>
    %396 = tpu.reciprocal %395 {approx = true} : vector<4x8x1xf32> -> vector<4x8x1xf32>
    %397 = vector.broadcast %396 : vector<4x8x1xf32> to vector<4x8x16xf32>
    %398 = arith.mulf %393, %397 : vector<4x8x16xf32>
    %399 = arith.truncf %398 : vector<4x8x16xf32> to vector<4x8x16xbf16>
    "tpu.trace_start"() <{level = 10 : i32, message = "hts,hsd->htd"}> : () -> ()
    %cst_267 = arith.constant dense<0.000000e+00> : vector<4x8x8xf32>
    %400 = tpu.matmul %399, %384, %cst_267 {dimension_numbers = #tpu.dot_dimension_numbers<[2], [1], [1], [2], [0, 0, 0, 1, 1, 2], [0], [0]>} : vector<4x8x16xbf16>, vector<4x16x8xbf16>, vector<4x8x8xf32> -> vector<4x8x8xf32>
    "tpu.trace_stop"() : () -> ()
    %401 = arith.truncf %400 : vector<4x8x8xf32> to vector<4x8x8xbf16>
    %402 = vector.extract_strided_slice %401 {offsets = [0, 0, 0], sizes = [1, 8, 8], strides = [1, 1, 1]} : vector<4x8x8xbf16> to vector<1x8x8xbf16>
    %403 = vector.shape_cast %402 : vector<1x8x8xbf16> to vector<8x8xbf16>
    %c0_268 = arith.constant 0 : index
    %c0_269 = arith.constant 0 : index
    %404 = vector.load %arg37[%c0_268, %c0_269] : memref<16x32xbf16, #tpu.memory_space<vmem>>, vector<8x8xbf16>
    tpu.vector_store %arg37[%c0_268, %c0_269], %403 {strides = array<i32>} : memref<16x32xbf16, #tpu.memory_space<vmem>>, vector<8x8xbf16>,
    %405 = vector.extract_strided_slice %401 {offsets = [1, 0, 0], sizes = [1, 8, 8], strides = [1, 1, 1]} : vector<4x8x8xbf16> to vector<1x8x8xbf16>
    %406 = vector.shape_cast %405 : vector<1x8x8xbf16> to vector<8x8xbf16>
    %c0_270 = arith.constant 0 : index
    %c8_271 = arith.constant 8 : index
    %407 = vector.load %arg37[%c0_270, %c8_271] : memref<16x32xbf16, #tpu.memory_space<vmem>>, vector<8x8xbf16>
    tpu.vector_store %arg37[%c0_270, %c8_271], %406 {strides = array<i32>} : memref<16x32xbf16, #tpu.memory_space<vmem>>, vector<8x8xbf16>,
    %408 = vector.extract_strided_slice %401 {offsets = [2, 0, 0], sizes = [1, 8, 8], strides = [1, 1, 1]} : vector<4x8x8xbf16> to vector<1x8x8xbf16>
    %409 = vector.shape_cast %408 : vector<1x8x8xbf16> to vector<8x8xbf16>
    %c0_272 = arith.constant 0 : index
    %c16_273 = arith.constant 16 : index
    %410 = vector.load %arg37[%c0_272, %c16_273] : memref<16x32xbf16, #tpu.memory_space<vmem>>, vector<8x8xbf16>
    tpu.vector_store %arg37[%c0_272, %c16_273], %409 {strides = array<i32>} : memref<16x32xbf16, #tpu.memory_space<vmem>>, vector<8x8xbf16>,
    %411 = vector.extract_strided_slice %401 {offsets = [3, 0, 0], sizes = [1, 8, 8], strides = [1, 1, 1]} : vector<4x8x8xbf16> to vector<1x8x8xbf16>
    %412 = vector.shape_cast %411 : vector<1x8x8xbf16> to vector<8x8xbf16>
    %c0_274 = arith.constant 0 : index
    %c24_275 = arith.constant 24 : index
    %413 = vector.load %arg37[%c0_274, %c24_275] : memref<16x32xbf16, #tpu.memory_space<vmem>>, vector<8x8xbf16>
    tpu.vector_store %arg37[%c0_274, %c24_275], %412 {strides = array<i32>} : memref<16x32xbf16, #tpu.memory_space<vmem>>, vector<8x8xbf16>,
    %c1_276 = arith.constant 1 : index
    %c0_277 = arith.constant 0 : index
    %c0_278 = arith.constant 0 : index
    %414 = vector.load %arg4[%c1_276, %c0_277, %c0_278] : memref<2x8x16xf32, #tpu.memory_space<vmem>>, vector<1x8x16xf32>
    %415 = vector.shape_cast %414 : vector<1x8x16xf32> to vector<8x16xf32>
    %cst_279 = arith.constant 0.000000e+00 : f32
    %416 = vector.broadcast %cst_279 : f32 to vector<8x16xf32>
    %417 = arith.cmpf ogt, %415, %416 : vector<8x16xf32>
    %cst_280 = arith.constant 0.000000e+00 : f32
    %cst_281 = arith.constant -1.000000e+09 : f32
    %418 = vector.broadcast %cst_280 : f32 to vector<8x16xf32>
    %419 = vector.broadcast %cst_281 : f32 to vector<8x16xf32>
    %420 = arith.select %417, %418, %419 : vector<8x16xi1>, vector<8x16xf32>
    %c4_282 = arith.constant 4 : index
    %c0_283 = arith.constant 0 : index
    %c0_284 = arith.constant 0 : index
    %421 = vector.load %arg32[%c4_282, %c0_283, %c0_284] : memref<8x8x8xbf16, #tpu.memory_space<vmem>>, vector<4x8x8xbf16>
    %c4_285 = arith.constant 4 : index
    %c0_286 = arith.constant 0 : index
    %c0_287 = arith.constant 0 : index
    %422 = vector.load %arg35[%c4_285, %c0_286, %c0_287] : memref<8x16x8xbf16, #tpu.memory_space<vmem>>, vector<4x16x8xbf16>
    %c4_288 = arith.constant 4 : index
    %c0_289 = arith.constant 0 : index
    %c0_290 = arith.constant 0 : index
    %423 = vector.load %arg36[%c4_288, %c0_289, %c0_290] : memref<8x16x8xbf16, #tpu.memory_space<vmem>>, vector<4x16x8xbf16>
    "tpu.trace_start"() <{level = 10 : i32, message = "htd,hsd->hts"}> : () -> ()
    %cst_291 = arith.constant dense<0.000000e+00> : vector<4x8x16xf32>
    %424 = tpu.matmul %421, %422, %cst_291 {dimension_numbers = #tpu.dot_dimension_numbers<[2], [2], [1], [1], [0, 0, 0, 1, 1, 1], [0], [0]>} : vector<4x8x8xbf16>, vector<4x16x8xbf16>, vector<4x8x16xf32> -> vector<4x8x16xf32>
    "tpu.trace_stop"() : () -> ()
    %425 = vector.shape_cast %420 : vector<8x16xf32> to vector<1x8x16xf32>
    %426 = vector.broadcast %425 : vector<1x8x16xf32> to vector<4x8x16xf32>
    %427 = arith.addf %424, %426 : vector<4x8x16xf32>
    %cst_292 = arith.constant dense<0xFF800000> : vector<4x8xf32>
    %428 = vector.multi_reduction <maximumf>, %427, %cst_292 [2] : vector<4x8x16xf32> to vector<4x8xf32>
    %429 = vector.shape_cast %428 : vector<4x8xf32> to vector<4x8x1xf32>
    %430 = vector.broadcast %429 : vector<4x8x1xf32> to vector<4x8x16xf32>
    %431 = arith.subf %427, %430 : vector<4x8x16xf32>
    %432 = math.exp %431 : vector<4x8x16xf32>
    %cst_293 = arith.constant dense<0.000000e+00> : vector<4x8xf32>
    %433 = vector.multi_reduction <add>, %432, %cst_293 [2] : vector<4x8x16xf32> to vector<4x8xf32>
    %434 = vector.shape_cast %433 : vector<4x8xf32> to vector<4x8x1xf32>
    %435 = tpu.reciprocal %434 {approx = true} : vector<4x8x1xf32> -> vector<4x8x1xf32>
    %436 = vector.broadcast %435 : vector<4x8x1xf32> to vector<4x8x16xf32>
    %437 = arith.mulf %432, %436 : vector<4x8x16xf32>
    %438 = arith.truncf %437 : vector<4x8x16xf32> to vector<4x8x16xbf16>
    "tpu.trace_start"() <{level = 10 : i32, message = "hts,hsd->htd"}> : () -> ()
    %cst_294 = arith.constant dense<0.000000e+00> : vector<4x8x8xf32>
    %439 = tpu.matmul %438, %423, %cst_294 {dimension_numbers = #tpu.dot_dimension_numbers<[2], [1], [1], [2], [0, 0, 0, 1, 1, 2], [0], [0]>} : vector<4x8x16xbf16>, vector<4x16x8xbf16>, vector<4x8x8xf32> -> vector<4x8x8xf32>
    "tpu.trace_stop"() : () -> ()
    %440 = arith.truncf %439 : vector<4x8x8xf32> to vector<4x8x8xbf16>
    %441 = vector.extract_strided_slice %440 {offsets = [0, 0, 0], sizes = [1, 8, 8], strides = [1, 1, 1]} : vector<4x8x8xbf16> to vector<1x8x8xbf16>
    %442 = vector.shape_cast %441 : vector<1x8x8xbf16> to vector<8x8xbf16>
    %c8_295 = arith.constant 8 : index
    %c0_296 = arith.constant 0 : index
    %443 = vector.load %arg37[%c8_295, %c0_296] : memref<16x32xbf16, #tpu.memory_space<vmem>>, vector<8x8xbf16>
    tpu.vector_store %arg37[%c8_295, %c0_296], %442 {strides = array<i32>} : memref<16x32xbf16, #tpu.memory_space<vmem>>, vector<8x8xbf16>,
    %444 = vector.extract_strided_slice %440 {offsets = [1, 0, 0], sizes = [1, 8, 8], strides = [1, 1, 1]} : vector<4x8x8xbf16> to vector<1x8x8xbf16>
    %445 = vector.shape_cast %444 : vector<1x8x8xbf16> to vector<8x8xbf16>
    %c8_297 = arith.constant 8 : index
    %c8_298 = arith.constant 8 : index
    %446 = vector.load %arg37[%c8_297, %c8_298] : memref<16x32xbf16, #tpu.memory_space<vmem>>, vector<8x8xbf16>
    tpu.vector_store %arg37[%c8_297, %c8_298], %445 {strides = array<i32>} : memref<16x32xbf16, #tpu.memory_space<vmem>>, vector<8x8xbf16>,
    %447 = vector.extract_strided_slice %440 {offsets = [2, 0, 0], sizes = [1, 8, 8], strides = [1, 1, 1]} : vector<4x8x8xbf16> to vector<1x8x8xbf16>
    %448 = vector.shape_cast %447 : vector<1x8x8xbf16> to vector<8x8xbf16>
    %c8_299 = arith.constant 8 : index
    %c16_300 = arith.constant 16 : index
    %449 = vector.load %arg37[%c8_299, %c16_300] : memref<16x32xbf16, #tpu.memory_space<vmem>>, vector<8x8xbf16>
    tpu.vector_store %arg37[%c8_299, %c16_300], %448 {strides = array<i32>} : memref<16x32xbf16, #tpu.memory_space<vmem>>, vector<8x8xbf16>,
    %450 = vector.extract_strided_slice %440 {offsets = [3, 0, 0], sizes = [1, 8, 8], strides = [1, 1, 1]} : vector<4x8x8xbf16> to vector<1x8x8xbf16>
    %451 = vector.shape_cast %450 : vector<1x8x8xbf16> to vector<8x8xbf16>
    %c8_301 = arith.constant 8 : index
    %c24_302 = arith.constant 24 : index
    %452 = vector.load %arg37[%c8_301, %c24_302] : memref<16x32xbf16, #tpu.memory_space<vmem>>, vector<8x8xbf16>
    tpu.vector_store %arg37[%c8_301, %c24_302], %451 {strides = array<i32>} : memref<16x32xbf16, #tpu.memory_space<vmem>>, vector<8x8xbf16>,
    %c0_303 = arith.constant 0 : index
    %c0_304 = arith.constant 0 : index
    %453 = vector.load %arg37[%c0_303, %c0_304] : memref<16x32xbf16, #tpu.memory_space<vmem>>, vector<16x32xbf16>
    %c0_305 = arith.constant 0 : index
    %c0_306 = arith.constant 0 : index
    %454 = vector.load %arg25[%c0_305, %c0_306] : memref<32x32xbf16, #tpu.memory_space<vmem>>, vector<32x32xbf16>
    %cst_307 = arith.constant dense<0.000000e+00> : vector<16x32xf32>
    %455 = tpu.matmul %453, %454, %cst_307 {dimension_numbers = #tpu.dot_dimension_numbers<[1], [0], [0], [1], [0, 0, 1, 1], [], []>} : vector<16x32xbf16>, vector<32x32xbf16>, vector<16x32xf32> -> vector<16x32xf32>
    %c0_308 = arith.constant 0 : index
    %c0_309 = arith.constant 0 : index
    %456 = vector.load %arg26[%c0_308, %c0_309] : memref<1x32xf32, #tpu.memory_space<vmem>>, vector<1x32xf32>
    %457 = vector.broadcast %456 : vector<1x32xf32> to vector<16x32xf32>
    %458 = arith.addf %455, %457 : vector<16x32xf32>
    %459 = arith.addf %231, %458 : vector<16x32xf32>
    %cst_310 = arith.constant dense<0.000000e+00> : vector<16xf32>
    %460 = vector.multi_reduction <add>, %459, %cst_310 [1] : vector<16x32xf32> to vector<16xf32>
    %461 = vector.shape_cast %460 : vector<16xf32> to vector<16x1xf32>
    %cst_311 = arith.constant 3.200000e+01 : f32
    %462 = vector.broadcast %cst_311 : f32 to vector<16x1xf32>
    %463 = arith.divf %461, %462 : vector<16x1xf32>
    %464 = vector.broadcast %463 : vector<16x1xf32> to vector<16x32xf32>
    %465 = arith.subf %459, %464 : vector<16x32xf32>
    %466 = arith.mulf %465, %465 : vector<16x32xf32>
    %cst_312 = arith.constant dense<0.000000e+00> : vector<16xf32>
    %467 = vector.multi_reduction <add>, %466, %cst_312 [1] : vector<16x32xf32> to vector<16xf32>
    %468 = vector.shape_cast %467 : vector<16xf32> to vector<16x1xf32>
    %cst_313 = arith.constant 3.200000e+01 : f32
    %469 = vector.broadcast %cst_313 : f32 to vector<16x1xf32>
    %470 = arith.divf %468, %469 : vector<16x1xf32>
    %471 = vector.broadcast %463 : vector<16x1xf32> to vector<16x32xf32>
    %472 = arith.subf %459, %471 : vector<16x32xf32>
    %cst_314 = arith.constant 9.99999974E-6 : f32
    %473 = vector.broadcast %cst_314 : f32 to vector<16x1xf32>
    %474 = arith.addf %470, %473 : vector<16x1xf32>
    %475 = math.rsqrt %474 : vector<16x1xf32>
    %476 = vector.broadcast %475 : vector<16x1xf32> to vector<16x32xf32>
    %477 = arith.mulf %472, %476 : vector<16x32xf32>
    %c0_315 = arith.constant 0 : index
    %c0_316 = arith.constant 0 : index
    %478 = vector.load %arg9[%c0_315, %c0_316] : memref<1x32xf32, #tpu.memory_space<vmem>>, vector<1x32xf32>
    %479 = vector.broadcast %478 : vector<1x32xf32> to vector<16x32xf32>
    %480 = arith.mulf %477, %479 : vector<16x32xf32>
    %c0_317 = arith.constant 0 : index
    %c0_318 = arith.constant 0 : index
    %481 = vector.load %arg10[%c0_317, %c0_318] : memref<1x32xf32, #tpu.memory_space<vmem>>, vector<1x32xf32>
    %482 = vector.broadcast %481 : vector<1x32xf32> to vector<16x32xf32>
    %483 = arith.addf %480, %482 : vector<16x32xf32>
    %484 = arith.truncf %483 : vector<16x32xf32> to vector<16x32xbf16>
    %c0_319 = arith.constant 0 : index
    %c0_320 = arith.constant 0 : index
    %485 = vector.load %arg27[%c0_319, %c0_320] : memref<32x64xbf16, #tpu.memory_space<vmem>>, vector<32x64xbf16>
    %cst_321 = arith.constant dense<0.000000e+00> : vector<16x64xf32>
    %486 = tpu.matmul %484, %485, %cst_321 {dimension_numbers = #tpu.dot_dimension_numbers<[1], [0], [0], [1], [0, 0, 1, 1], [], []>} : vector<16x32xbf16>, vector<32x64xbf16>, vector<16x64xf32> -> vector<16x64xf32>
    %c0_322 = arith.constant 0 : index
    %c0_323 = arith.constant 0 : index
    %487 = vector.load %arg28[%c0_322, %c0_323] : memref<1x64xf32, #tpu.memory_space<vmem>>, vector<1x64xf32>
    %488 = vector.broadcast %487 : vector<1x64xf32> to vector<16x64xf32>
    %489 = arith.addf %486, %488 : vector<16x64xf32>
    %cst_324 = arith.constant 0.000000e+00 : f32
    %490 = vector.broadcast %cst_324 : f32 to vector<16x64xf32>
    %491 = arith.maximumf %489, %490 : vector<16x64xf32>
    %492 = arith.truncf %491 : vector<16x64xf32> to vector<16x64xbf16>
    %c0_325 = arith.constant 0 : index
    %c0_326 = arith.constant 0 : index
    %493 = vector.load %arg29[%c0_325, %c0_326] : memref<64x32xbf16, #tpu.memory_space<vmem>>, vector<64x32xbf16>
    %cst_327 = arith.constant dense<0.000000e+00> : vector<16x32xf32>
    %494 = tpu.matmul %492, %493, %cst_327 {dimension_numbers = #tpu.dot_dimension_numbers<[1], [0], [0], [1], [0, 0, 1, 1], [], []>} : vector<16x64xbf16>, vector<64x32xbf16>, vector<16x32xf32> -> vector<16x32xf32>
    %c0_328 = arith.constant 0 : index
    %c0_329 = arith.constant 0 : index
    %495 = vector.load %arg30[%c0_328, %c0_329] : memref<1x32xf32, #tpu.memory_space<vmem>>, vector<1x32xf32>
    %496 = vector.broadcast %495 : vector<1x32xf32> to vector<16x32xf32>
    %497 = arith.addf %494, %496 : vector<16x32xf32>
    %498 = arith.addf %459, %497 : vector<16x32xf32>
    %499 = vector.shape_cast %498 : vector<16x32xf32> to vector<2x8x32xf32>
    %c0_330 = arith.constant 0 : index
    %c0_331 = arith.constant 0 : index
    %c0_332 = arith.constant 0 : index
    %500 = vector.load %arg31[%c0_330, %c0_331, %c0_332] : memref<2x8x32xf32, #tpu.memory_space<vmem>>, vector<2x8x32xf32>
    tpu.vector_store %arg31[%c0_330, %c0_331, %c0_332], %499 {strides = array<i32>} : memref<2x8x32xf32, #tpu.memory_space<vmem>>, vector<2x8x32xf32>,
    return
  }
  func.func @transform_0(%arg0: i32) -> (i32, i32, i32) {
    %c0_i32 = arith.constant 0 : i32
    %c0_i32_0 = arith.constant 0 : i32
    %c0_i32_1 = arith.constant 0 : i32
    return %arg0, %c0_i32, %c0_i32_0 : i32, i32, i32
  }
  func.func @transform_1(%arg0: i32) -> (i32, i32, i32) {
    %c0_i32 = arith.constant 0 : i32
    %c0_i32_0 = arith.constant 0 : i32
    %c0_i32_1 = arith.constant 0 : i32
    return %arg0, %c0_i32, %c0_i32_0 : i32, i32, i32
  }
  func.func @transform_2(%arg0: i32) -> (i32, i32, i32) {
    %c0_i32 = arith.constant 0 : i32
    %c0_i32_0 = arith.constant 0 : i32
    %c0_i32_1 = arith.constant 0 : i32
    return %arg0, %c0_i32, %c0_i32_0 : i32, i32, i32
  }
  func.func @transform_3(%arg0: i32) -> (i32, i32, i32) {
    %c0_i32 = arith.constant 0 : i32
    %c0_i32_0 = arith.constant 0 : i32
    %c0_i32_1 = arith.constant 0 : i32
    return %arg0, %c0_i32, %c0_i32_0 : i32, i32, i32
  }
  func.func @transform_4(%arg0: i32) -> (i32, i32) {
    %c0_i32 = arith.constant 0 : i32
    %c0_i32_0 = arith.constant 0 : i32
    %c0_i32_1 = arith.constant 0 : i32
    return %c0_i32, %c0_i32_0 : i32, i32
  }
  func.func @transform_5(%arg0: i32) -> (i32, i32) {
    %c0_i32 = arith.constant 0 : i32
    %c0_i32_0 = arith.constant 0 : i32
    %c0_i32_1 = arith.constant 0 : i32
    return %c0_i32, %c0_i32_0 : i32, i32
  }
  func.func @transform_6(%arg0: i32) -> (i32, i32) {
    %c0_i32 = arith.constant 0 : i32
    %c0_i32_0 = arith.constant 0 : i32
    %c0_i32_1 = arith.constant 0 : i32
    return %c0_i32, %c0_i32_0 : i32, i32
  }
  func.func @transform_7(%arg0: i32) -> (i32, i32) {
    %c0_i32 = arith.constant 0 : i32
    %c0_i32_0 = arith.constant 0 : i32
    %c0_i32_1 = arith.constant 0 : i32
    return %c0_i32, %c0_i32_0 : i32, i32
  }
  func.func @transform_8(%arg0: i32) -> (i32, i32) {
    %c0_i32 = arith.constant 0 : i32
    %c0_i32_0 = arith.constant 0 : i32
    %c0_i32_1 = arith.constant 0 : i32
    return %c0_i32, %c0_i32_0 : i32, i32
  }
  func.func @transform_9(%arg0: i32) -> (i32, i32) {
    %c0_i32 = arith.constant 0 : i32
    %c0_i32_0 = arith.constant 0 : i32
    %c0_i32_1 = arith.constant 0 : i32
    return %c0_i32, %c0_i32_0 : i32, i32
  }
  func.func @transform_10(%arg0: i32) -> (i32, i32) {
    %c0_i32 = arith.constant 0 : i32
    %c0_i32_0 = arith.constant 0 : i32
    %c0_i32_1 = arith.constant 0 : i32
    return %c0_i32, %c0_i32_0 : i32, i32
  }
  func.func @transform_11(%arg0: i32) -> (i32, i32) {
    %c0_i32 = arith.constant 0 : i32
    %c0_i32_0 = arith.constant 0 : i32
    %c0_i32_1 = arith.constant 0 : i32
    return %c0_i32, %c0_i32_0 : i32, i32
  }
  func.func @transform_12(%arg0: i32) -> (i32, i32) {
    %c0_i32 = arith.constant 0 : i32
    %c0_i32_0 = arith.constant 0 : i32
    %c0_i32_1 = arith.constant 0 : i32
    return %c0_i32, %c0_i32_0 : i32, i32
  }
  func.func @transform_13(%arg0: i32) -> (i32, i32) {
    %c0_i32 = arith.constant 0 : i32
    %c0_i32_0 = arith.constant 0 : i32
    %c0_i32_1 = arith.constant 0 : i32
    return %c0_i32, %c0_i32_0 : i32, i32
  }
  func.func @transform_14(%arg0: i32) -> (i32, i32) {
    %c0_i32 = arith.constant 0 : i32
    %c0_i32_0 = arith.constant 0 : i32
    %c0_i32_1 = arith.constant 0 : i32
    return %c0_i32, %c0_i32_0 : i32, i32
  }
  func.func @transform_15(%arg0: i32) -> (i32, i32) {
    %c0_i32 = arith.constant 0 : i32
    %c0_i32_0 = arith.constant 0 : i32
    %c0_i32_1 = arith.constant 0 : i32
    return %c0_i32, %c0_i32_0 : i32, i32
  }
  func.func @transform_16(%arg0: i32) -> (i32, i32) {
    %c0_i32 = arith.constant 0 : i32
    %c0_i32_0 = arith.constant 0 : i32
    %c0_i32_1 = arith.constant 0 : i32
    return %c0_i32, %c0_i32_0 : i32, i32
  }
  func.func @transform_17(%arg0: i32) -> (i32, i32) {
    %c0_i32 = arith.constant 0 : i32
    %c0_i32_0 = arith.constant 0 : i32
    %c0_i32_1 = arith.constant 0 : i32
    return %c0_i32, %c0_i32_0 : i32, i32
  }
  func.func @transform_18(%arg0: i32) -> (i32, i32) {
    %c0_i32 = arith.constant 0 : i32
    %c0_i32_0 = arith.constant 0 : i32
    %c0_i32_1 = arith.constant 0 : i32
    return %c0_i32, %c0_i32_0 : i32, i32
  }
  func.func @transform_19(%arg0: i32) -> (i32, i32) {
    %c0_i32 = arith.constant 0 : i32
    %c0_i32_0 = arith.constant 0 : i32
    %c0_i32_1 = arith.constant 0 : i32
    return %c0_i32, %c0_i32_0 : i32, i32
  }
  func.func @transform_20(%arg0: i32) -> (i32, i32) {
    %c0_i32 = arith.constant 0 : i32
    %c0_i32_0 = arith.constant 0 : i32
    %c0_i32_1 = arith.constant 0 : i32
    return %c0_i32, %c0_i32_0 : i32, i32
  }
  func.func @transform_21(%arg0: i32) -> (i32, i32) {
    %c0_i32 = arith.constant 0 : i32
    %c0_i32_0 = arith.constant 0 : i32
    %c0_i32_1 = arith.constant 0 : i32
    return %c0_i32, %c0_i32_0 : i32, i32
  }
  func.func @transform_22(%arg0: i32) -> (i32, i32) {
    %c0_i32 = arith.constant 0 : i32
    %c0_i32_0 = arith.constant 0 : i32
    %c0_i32_1 = arith.constant 0 : i32
    return %c0_i32, %c0_i32_0 : i32, i32
  }
  func.func @transform_23(%arg0: i32) -> (i32, i32) {
    %c0_i32 = arith.constant 0 : i32
    %c0_i32_0 = arith.constant 0 : i32
    %c0_i32_1 = arith.constant 0 : i32
    return %c0_i32, %c0_i32_0 : i32, i32
  }
  func.func @transform_24(%arg0: i32) -> (i32, i32) {
    %c0_i32 = arith.constant 0 : i32
    %c0_i32_0 = arith.constant 0 : i32
    %c0_i32_1 = arith.constant 0 : i32
    return %c0_i32, %c0_i32_0 : i32, i32
  }
  func.func @transform_25(%arg0: i32) -> (i32, i32) {
    %c0_i32 = arith.constant 0 : i32
    %c0_i32_0 = arith.constant 0 : i32
    %c0_i32_1 = arith.constant 0 : i32
    return %c0_i32, %c0_i32_0 : i32, i32
  }
  func.func @transform_26(%arg0: i32) -> (i32, i32) {
    %c0_i32 = arith.constant 0 : i32
    %c0_i32_0 = arith.constant 0 : i32
    %c0_i32_1 = arith.constant 0 : i32
    return %c0_i32, %c0_i32_0 : i32, i32
  }
  func.func @transform_27(%arg0: i32) -> (i32, i32) {
    %c0_i32 = arith.constant 0 : i32
    %c0_i32_0 = arith.constant 0 : i32
    %c0_i32_1 = arith.constant 0 : i32
    return %c0_i32, %c0_i32_0 : i32, i32
  }
  func.func @transform_28(%arg0: i32) -> (i32, i32) {
    %c0_i32 = arith.constant 0 : i32
    %c0_i32_0 = arith.constant 0 : i32
    %c0_i32_1 = arith.constant 0 : i32
    return %c0_i32, %c0_i32_0 : i32, i32
  }
  func.func @transform_29(%arg0: i32) -> (i32, i32) {
    %c0_i32 = arith.constant 0 : i32
    %c0_i32_0 = arith.constant 0 : i32
    %c0_i32_1 = arith.constant 0 : i32
    return %c0_i32, %c0_i32_0 : i32, i32
  }
  func.func @transform_30(%arg0: i32) -> (i32, i32, i32) {
    %c0_i32 = arith.constant 0 : i32
    %c0_i32_0 = arith.constant 0 : i32
    %c0_i32_1 = arith.constant 0 : i32
    return %arg0, %c0_i32, %c0_i32_0 : i32, i32, i32
  }
}

</mosaic_0001>

<llo_original>
// kernel: tpu_custom_call.1
$region0: #{tpu_custom_call.1}
  #allocation0 [shape = 'u32[]', space=smem, size = 0x4, offset = 0x4, fixed_abs, tag = 'smem constant byte address 0x4 - core index']
  #allocation1 [shape = 'u32[144,128]{1,0:T(1,128)}', space=vmem, size = 0x12000, scoped, tag = 'internal scratch']
  #allocation2 [shape = 'bf16[8,8,8]{2,1,0:T(8,128)(2,1)}', space=vmem, size = 0x4000, scoped, tag = 'scratch operand']
  #allocation3 [shape = 'bf16[8,8,8]{2,1,0:T(8,128)(2,1)}', space=vmem, size = 0x4000, scoped, tag = 'scratch operand']
  #allocation4 [shape = 'bf16[8,8,8]{2,1,0:T(8,128)(2,1)}', space=vmem, size = 0x4000, scoped, tag = 'scratch operand']
  #allocation5 [shape = 'bf16[8,16,8]{2,1,0:T(16,128)(2,1)}', space=vmem, size = 0x8000, scoped, tag = 'scratch operand']
  #allocation6 [shape = 'bf16[8,16,8]{2,1,0:T(16,128)(2,1)}', space=vmem, size = 0x8000, scoped, tag = 'scratch operand']
  #allocation7 [shape = 'bf16[16,32]{1,0:T(16,128)(2,1)}', space=vmem, size = 0x1000, scoped, tag = 'scratch operand']
  %s0 = inlined_call_operand.smem [shape: u32[31], index: -1, kind: input, shape index: {}]
  %s1 = sld [smem:[%s0]]
  %s2 = scalar_lea.smem %s0, 1
  %s3 = sld [smem:[%s2]]
  %s4 = scalar_lea.smem %s0, 2
  %s5 = sld [smem:[%s4]]
  %s6 = scalar_lea.smem %s0, 3
  %s7 = sld [smem:[%s6]]
  %s8 = scalar_lea.smem %s0, 4
  %s9 = sld [smem:[%s8]]
  %s10 = scalar_lea.smem %s0, 5
  %s11 = sld [smem:[%s10]]
  %s12 = scalar_lea.smem %s0, 6
  %s13 = sld [smem:[%s12]]
  %s14 = scalar_lea.smem %s0, 7
  %s15 = sld [smem:[%s14]]
  %s16 = scalar_lea.smem %s0, 8
  %s17 = sld [smem:[%s16]]
  %s18 = scalar_lea.smem %s0, 9
  %s19 = sld [smem:[%s18]]
  %s20 = scalar_lea.smem %s0, 10
  %s21 = sld [smem:[%s20]]
  %s22 = scalar_lea.smem %s0, 11
  %s23 = sld [smem:[%s22]]
  %s24 = scalar_lea.smem %s0, 12
  %s25 = sld [smem:[%s24]]
  %s26 = scalar_lea.smem %s0, 13
  %s27 = sld [smem:[%s26]]
  %s28 = scalar_lea.smem %s0, 14
  %s29 = sld [smem:[%s28]]
  %s30 = scalar_lea.smem %s0, 15
  %s31 = sld [smem:[%s30]]
  %s32 = scalar_lea.smem %s0, 16
  %s33 = sld [smem:[%s32]]
  %s34 = scalar_lea.smem %s0, 17
  %s35 = sld [smem:[%s34]]
  %s36 = scalar_lea.smem %s0, 18
  %s37 = sld [smem:[%s36]]
  %s38 = scalar_lea.smem %s0, 19
  %s39 = sld [smem:[%s38]]
  %s40 = scalar_lea.smem %s0, 20
  %s41 = sld [smem:[%s40]]
  %s42 = scalar_lea.smem %s0, 21
  %s43 = sld [smem:[%s42]]
  %s44 = scalar_lea.smem %s0, 22
  %s45 = sld [smem:[%s44]]
  %s46 = scalar_lea.smem %s0, 23
  %s47 = sld [smem:[%s46]]
  %s48 = scalar_lea.smem %s0, 24
  %s49 = sld [smem:[%s48]]
  %s50 = scalar_lea.smem %s0, 25
  %s51 = sld [smem:[%s50]]
  %s52 = scalar_lea.smem %s0, 26
  %s53 = sld [smem:[%s52]]
  %s54 = scalar_lea.smem %s0, 27
  %s55 = sld [smem:[%s54]]
  %s56 = scalar_lea.smem %s0, 28
  %s57 = sld [smem:[%s56]]
  %s58 = scalar_lea.smem %s0, 29
  %s59 = sld [smem:[%s58]]
  %s60 = scalar_lea.smem %s0, 30
  %s61 = sld [smem:[%s60]]
  %s62 = sld [smem:[#allocation0]]
  $region202: #{tpu_custom_call.1} parent=0
    _
  %s64 = ssub.s32 1, %s62
  %s65 = scalar_select 0, %s64, %s62
  $region1: #{tpu_custom_call.1} parent=0
    #allocation8 [shape = 'u8[8192]{0}', space=vmem, size = 0x2000, scoped, tag = 'input window, operand 1, single buffered']
    #allocation9 [shape = 's32[1]{0}', space=sflag, size = 0x4, scoped, tag = 'scoped memory for tpu_custom_call.1']
    #allocation10 [shape = 's32[1]{0}', space=sflag, size = 0x4, scoped, tag = 'scoped memory for tpu_custom_call.1']
    #allocation11 [shape = 'u8[8192]{0}', space=vmem, size = 0x2000, scoped, tag = 'input window, operand 3, single buffered']
    #allocation12 [shape = 's32[1]{0}', space=sflag, size = 0x4, scoped, tag = 'scoped memory for tpu_custom_call.1']
    #allocation13 [shape = 'u8[512]{0}', space=vmem, size = 0x400, scoped, tag = 'input window, operand 4, single buffered']
    #allocation14 [shape = 'u8[512]{0}', space=vmem, size = 0x400, scoped, tag = 'input window, operand 5, single buffered']
    #allocation15 [shape = 's32[1]{0}', space=sflag, size = 0x4, scoped, tag = 'scoped memory for tpu_custom_call.1']
    #allocation16 [shape = 'u8[512]{0}', space=vmem, size = 0x400, scoped, tag = 'input window, operand 6, single buffered']
    #allocation17 [shape = 'u8[512]{0}', space=vmem, size = 0x400, scoped, tag = 'input window, operand 7, single buffered']
    #allocation18 [shape = 's32[1]{0}', space=sflag, size = 0x4, scoped, tag = 'scoped memory for tpu_custom_call.1']
    #allocation19 [shape = 'u8[512]{0}', space=vmem, size = 0x400, scoped, tag = 'input window, operand 8, single buffered']
    #allocation20 [shape = 'u8[512]{0}', space=vmem, size = 0x400, scoped, tag = 'input window, operand 9, single buffered']
    #allocation21 [shape = 's32[1]{0}', space=sflag, size = 0x4, scoped, tag = 'scoped memory for tpu_custom_call.1']
    #allocation22 [shape = 'u8[512]{0}', space=vmem, size = 0x400, scoped, tag = 'input window, operand 11, single buffered']
    #allocation23 [shape = 'u8[8192]{0}', space=vmem, size = 0x2000, scoped, tag = 'input window, operand 12, single buffered']
    #allocation24 [shape = 's32[1]{0}', space=sflag, size = 0x4, scoped, tag = 'scoped memory for tpu_custom_call.1']
    #allocation25 [shape = 'u8[512]{0}', space=vmem, size = 0x400, scoped, tag = 'input window, operand 13, single buffered']
    #allocation26 [shape = 'u8[512]{0}', space=vmem, size = 0x400, scoped, tag = 'input window, operand 15, single buffered']
    #allocation27 [shape = 's32[1]{0}', space=sflag, size = 0x4, scoped, tag = 'scoped memory for tpu_custom_call.1']
    #allocation28 [shape = 'u8[8192]{0}', space=vmem, size = 0x2000, scoped, tag = 'input window, operand 16, single buffered']
    #allocation29 [shape = 'u8[512]{0}', space=vmem, size = 0x400, scoped, tag = 'input window, operand 17, single buffered']
    #allocation30 [shape = 's32[1]{0}', space=sflag, size = 0x4, scoped, tag = 'scoped memory for tpu_custom_call.1']
    #allocation31 [shape = 'u8[8192]{0}', space=vmem, size = 0x2000, scoped, tag = 'input window, operand 20, single buffered']
    #allocation32 [shape = 'u8[512]{0}', space=vmem, size = 0x400, scoped, tag = 'input window, operand 23, single buffered']
    #allocation33 [shape = 's32[1]{0}', space=sflag, size = 0x4, scoped, tag = 'scoped memory for tpu_custom_call.1']
    #allocation34 [shape = 'u8[8192]{0}', space=vmem, size = 0x2000, scoped, tag = 'input window, operand 24, single buffered']
    #allocation35 [shape = 'u8[512]{0}', space=vmem, size = 0x400, scoped, tag = 'input window, operand 25, single buffered']
    #allocation36 [shape = 's32[1]{0}', space=sflag, size = 0x4, scoped, tag = 'scoped memory for tpu_custom_call.1']
    #allocation37 [shape = 'u8[8192]{0}', space=vmem, size = 0x2000, scoped, tag = 'output window, operand 0, single buffered']
    %66 = vsyncpa [#allocation9], 0
    %67 = vsyncpa [#allocation12], 0
    %68 = vsyncpa [#allocation15], 0
    %69 = vsyncpa [#allocation18], 0
    %70 = vsyncpa [#allocation21], 0
    %71 = vsyncpa [#allocation24], 0
    %72 = vsyncpa [#allocation27], 0
    %73 = vsyncpa [#allocation30], 0
    %74 = vsyncpa [#allocation33], 0
    %75 = vsyncpa [#allocation36], 0
    %76 = vsyncpa [#allocation10], 0
    // Predicated region
    $region2: #{tpu_custom_call.1} parent=1 // pred_check
      _
    $region3: #{tpu_custom_call.1} parent=1 // pred_check_branch
      %78 = sbr.rel (0) target = $region5
    $region4: #{tpu_custom_call.1} parent=1 // pred_region
      _
    $region5: #{tpu_custom_call.1} parent=1 // pred_fallthru
      _
    // Predicated region
    $region6: #{tpu_custom_call.1} parent=1 // pred_check
      _
    $region7: #{tpu_custom_call.1} parent=1 // pred_check_branch
      %80 = sbr.rel (0) target = $region9
    $region8: #{tpu_custom_call.1} parent=1 // pred_region
      %s82 = ssub.s32 256, 256
      %83 = vsyncadd [#allocation9], %s82
      %s84 = sshll.u32 [#allocation8], 4
      %s85 = int_to_ptr.vmem [resolvable:$true] %s84
      %90 = dma.hbm_to_vmem [thread:$0]  %s3, 256, %s85, [#allocation9], 128, 128, 8
    $region9: #{tpu_custom_call.1} parent=1 // pred_fallthru
      _
    // Predicated region
    $region10: #{tpu_custom_call.1} parent=1 // pred_check
      _
    $region11: #{tpu_custom_call.1} parent=1 // pred_check_branch
      %92 = sbr.rel (0) target = $region13
    $region12: #{tpu_custom_call.1} parent=1 // pred_region
      _
    $region13: #{tpu_custom_call.1} parent=1 // pred_fallthru
      _
    // Predicated region
    $region14: #{tpu_custom_call.1} parent=1 // pred_check
      _
    $region15: #{tpu_custom_call.1} parent=1 // pred_check_branch
      %94 = sbr.rel (0) target = $region17
    $region16: #{tpu_custom_call.1} parent=1 // pred_region
      %s96 = ssub.s32 256, 256
      %97 = vsyncadd [#allocation12], %s96
      %s98 = sshll.u32 [#allocation11], 4
      %s99 = int_to_ptr.vmem [resolvable:$true] %s98
      %104 = dma.hbm_to_vmem [thread:$0]  %s7, 256, %s99, [#allocation12], 128, 128, 8
    $region17: #{tpu_custom_call.1} parent=1 // pred_fallthru
      _
    // Predicated region
    $region18: #{tpu_custom_call.1} parent=1 // pred_check
      _
    $region19: #{tpu_custom_call.1} parent=1 // pred_check_branch
      %106 = sbr.rel (0) target = $region21
    $region20: #{tpu_custom_call.1} parent=1 // pred_region
      %s108 = ssub.s32 16, 16
      %109 = vsyncadd [#allocation12], %s108
      %s111 = sshll.u32 [#allocation13], 4
      %s112 = int_to_ptr.vmem [resolvable:$true] %s111
      %114 = dma.hbm_to_vmem [thread:$0]  %s9, 16, %s112, [#allocation12]
    $region21: #{tpu_custom_call.1} parent=1 // pred_fallthru
      _
    // Predicated region
    $region22: #{tpu_custom_call.1} parent=1 // pred_check
      _
    $region23: #{tpu_custom_call.1} parent=1 // pred_check_branch
      %116 = sbr.rel (0) target = $region25
    $region24: #{tpu_custom_call.1} parent=1 // pred_region
      %s118 = ssub.s32 16, 16
      %119 = vsyncadd [#allocation15], %s118
      %s121 = sshll.u32 [#allocation14], 4
      %s122 = int_to_ptr.vmem [resolvable:$true] %s121
      %124 = dma.hbm_to_vmem [thread:$0]  %s11, 16, %s122, [#allocation15]
    $region25: #{tpu_custom_call.1} parent=1 // pred_fallthru
      _
    // Predicated region
    $region26: #{tpu_custom_call.1} parent=1 // pred_check
      _
    $region27: #{tpu_custom_call.1} parent=1 // pred_check_branch
      %126 = sbr.rel (0) target = $region29
    $region28: #{tpu_custom_call.1} parent=1 // pred_region
      %s128 = ssub.s32 16, 16
      %129 = vsyncadd [#allocation15], %s128
      %s131 = sshll.u32 [#allocation16], 4
      %s132 = int_to_ptr.vmem [resolvable:$true] %s131
      %134 = dma.hbm_to_vmem [thread:$0]  %s13, 16, %s132, [#allocation15]
    $region29: #{tpu_custom_call.1} parent=1 // pred_fallthru
      _
    // Predicated region
    $region30: #{tpu_custom_call.1} parent=1 // pred_check
      _
    $region31: #{tpu_custom_call.1} parent=1 // pred_check_branch
      %136 = sbr.rel (0) target = $region33
    $region32: #{tpu_custom_call.1} parent=1 // pred_region
      %s138 = ssub.s32 16, 16
      %139 = vsyncadd [#allocation18], %s138
      %s141 = sshll.u32 [#allocation17], 4
      %s142 = int_to_ptr.vmem [resolvable:$true] %s141
      %144 = dma.hbm_to_vmem [thread:$0]  %s15, 16, %s142, [#allocation18]
    $region33: #{tpu_custom_call.1} parent=1 // pred_fallthru
      _
    // Predicated region
    $region34: #{tpu_custom_call.1} parent=1 // pred_check
      _
    $region35: #{tpu_custom_call.1} parent=1 // pred_check_branch
      %146 = sbr.rel (0) target = $region37
    $region36: #{tpu_custom_call.1} parent=1 // pred_region
      %s148 = ssub.s32 16, 16
      %149 = vsyncadd [#allocation18], %s148
      %s151 = sshll.u32 [#allocation19], 4
      %s152 = int_to_ptr.vmem [resolvable:$true] %s151
      %154 = dma.hbm_to_vmem [thread:$0]  %s17, 16, %s152, [#allocation18]
    $region37: #{tpu_custom_call.1} parent=1 // pred_fallthru
      _
    // Predicated region
    $region38: #{tpu_custom_call.1} parent=1 // pred_check
      _
    $region39: #{tpu_custom_call.1} parent=1 // pred_check_branch
      %156 = sbr.rel (0) target = $region41
    $region40: #{tpu_custom_call.1} parent=1 // pred_region
      %s158 = ssub.s32 16, 16
      %159 = vsyncadd [#allocation21], %s158
      %s161 = sshll.u32 [#allocation20], 4
      %s162 = int_to_ptr.vmem [resolvable:$true] %s161
      %164 = dma.hbm_to_vmem [thread:$0]  %s19, 16, %s162, [#allocation21]
    $region41: #{tpu_custom_call.1} parent=1 // pred_fallthru
      _
    // Predicated region
    $region42: #{tpu_custom_call.1} parent=1 // pred_check
      _
    $region43: #{tpu_custom_call.1} parent=1 // pred_check_branch
      %166 = sbr.rel (0) target = $region45
    $region44: #{tpu_custom_call.1} parent=1 // pred_region
      _
    $region45: #{tpu_custom_call.1} parent=1 // pred_fallthru
      _
    // Predicated region
    $region46: #{tpu_custom_call.1} parent=1 // pred_check
      _
    $region47: #{tpu_custom_call.1} parent=1 // pred_check_branch
      %168 = sbr.rel (0) target = $region49
    $region48: #{tpu_custom_call.1} parent=1 // pred_region
      %s170 = ssub.s32 16, 16
      %171 = vsyncadd [#allocation21], %s170
      %s173 = sshll.u32 [#allocation22], 4
      %s174 = int_to_ptr.vmem [resolvable:$true] %s173
      %176 = dma.hbm_to_vmem [thread:$0]  %s23, 16, %s174, [#allocation21]
    $region49: #{tpu_custom_call.1} parent=1 // pred_fallthru
      _
    // Predicated region
    $region50: #{tpu_custom_call.1} parent=1 // pred_check
      _
    $region51: #{tpu_custom_call.1} parent=1 // pred_check_branch
      %178 = sbr.rel (0) target = $region53
    $region52: #{tpu_custom_call.1} parent=1 // pred_region
      %s180 = ssub.s32 256, 256
      %181 = vsyncadd [#allocation24], %s180
      %s182 = sshll.u32 [#allocation23], 4
      %s183 = int_to_ptr.vmem [resolvable:$true] %s182
      %188 = dma.hbm_to_vmem [thread:$0]  %s25, 256, %s183, [#allocation24], 64, 64, 4
    $region53: #{tpu_custom_call.1} parent=1 // pred_fallthru
      _
    // Predicated region
    $region54: #{tpu_custom_call.1} parent=1 // pred_check
      _
    $region55: #{tpu_custom_call.1} parent=1 // pred_check_branch
      %190 = sbr.rel (0) target = $region57
    $region56: #{tpu_custom_call.1} parent=1 // pred_region
      %s192 = ssub.s32 16, 16
      %193 = vsyncadd [#allocation24], %s192
      %s195 = sshll.u32 [#allocation25], 4
      %s196 = int_to_ptr.vmem [resolvable:$true] %s195
      %198 = dma.hbm_to_vmem [thread:$0]  %s27, 16, %s196, [#allocation24]
    $region57: #{tpu_custom_call.1} parent=1 // pred_fallthru
      _
    // Predicated region
    $region58: #{tpu_custom_call.1} parent=1 // pred_check
      _
    $region59: #{tpu_custom_call.1} parent=1 // pred_check_branch
      %200 = sbr.rel (0) target = $region61
    $region60: #{tpu_custom_call.1} parent=1 // pred_region
      _
    $region61: #{tpu_custom_call.1} parent=1 // pred_fallthru
      _
    // Predicated region
    $region62: #{tpu_custom_call.1} parent=1 // pred_check
      _
    $region63: #{tpu_custom_call.1} parent=1 // pred_check_branch
      %202 = sbr.rel (0) target = $region65
    $region64: #{tpu_custom_call.1} parent=1 // pred_region
      %s204 = ssub.s32 16, 16
      %205 = vsyncadd [#allocation27], %s204
      %s207 = sshll.u32 [#allocation26], 4
      %s208 = int_to_ptr.vmem [resolvable:$true] %s207
      %210 = dma.hbm_to_vmem [thread:$0]  %s31, 16, %s208, [#allocation27]
    $region65: #{tpu_custom_call.1} parent=1 // pred_fallthru
      _
    // Predicated region
    $region66: #{tpu_custom_call.1} parent=1 // pred_check
      _
    $region67: #{tpu_custom_call.1} parent=1 // pred_check_branch
      %212 = sbr.rel (0) target = $region69
    $region68: #{tpu_custom_call.1} parent=1 // pred_region
      %s214 = ssub.s32 256, 256
      %215 = vsyncadd [#allocation27], %s214
      %s216 = sshll.u32 [#allocation28], 4
      %s217 = int_to_ptr.vmem [resolvable:$true] %s216
      %222 = dma.hbm_to_vmem [thread:$0]  %s33, 256, %s217, [#allocation27], 64, 64, 4
    $region69: #{tpu_custom_call.1} parent=1 // pred_fallthru
      _
    // Predicated region
    $region70: #{tpu_custom_call.1} parent=1 // pred_check
      _
    $region71: #{tpu_custom_call.1} parent=1 // pred_check_branch
      %224 = sbr.rel (0) target = $region73
    $region72: #{tpu_custom_call.1} parent=1 // pred_region
      %s226 = ssub.s32 16, 16
      %227 = vsyncadd [#allocation30], %s226
      %s229 = sshll.u32 [#allocation29], 4
      %s230 = int_to_ptr.vmem [resolvable:$true] %s229
      %232 = dma.hbm_to_vmem [thread:$0]  %s35, 16, %s230, [#allocation30]
    $region73: #{tpu_custom_call.1} parent=1 // pred_fallthru
      _
    // Predicated region
    $region74: #{tpu_custom_call.1} parent=1 // pred_check
      _
    $region75: #{tpu_custom_call.1} parent=1 // pred_check_branch
      %234 = sbr.rel (0) target = $region77
    $region76: #{tpu_custom_call.1} parent=1 // pred_region
      _
    $region77: #{tpu_custom_call.1} parent=1 // pred_fallthru
      _
    // Predicated region
    $region78: #{tpu_custom_call.1} parent=1 // pred_check
      _
    $region79: #{tpu_custom_call.1} parent=1 // pred_check_branch
      %236 = sbr.rel (0) target = $region81
    $region80: #{tpu_custom_call.1} parent=1 // pred_region
      _
    $region81: #{tpu_custom_call.1} parent=1 // pred_fallthru
      _
    // Predicated region
    $region82: #{tpu_custom_call.1} parent=1 // pred_check
      _
    $region83: #{tpu_custom_call.1} parent=1 // pred_check_branch
      %238 = sbr.rel (0) target = $region85
    $region84: #{tpu_custom_call.1} parent=1 // pred_region
      %s240 = ssub.s32 256, 256
      %241 = vsyncadd [#allocation30], %s240
      %s242 = sshll.u32 [#allocation31], 4
      %s243 = int_to_ptr.vmem [resolvable:$true] %s242
      %248 = dma.hbm_to_vmem [thread:$0]  %s41, 256, %s243, [#allocation30], 64, 64, 4
    $region85: #{tpu_custom_call.1} parent=1 // pred_fallthru
      _
    // Predicated region
    $region86: #{tpu_custom_call.1} parent=1 // pred_check
      _
    $region87: #{tpu_custom_call.1} parent=1 // pred_check_branch
      %250 = sbr.rel (0) target = $region89
    $region88: #{tpu_custom_call.1} parent=1 // pred_region
      _
    $region89: #{tpu_custom_call.1} parent=1 // pred_fallthru
      _
    // Predicated region
    $region90: #{tpu_custom_call.1} parent=1 // pred_check
      _
    $region91: #{tpu_custom_call.1} parent=1 // pred_check_branch
      %252 = sbr.rel (0) target = $region93
    $region92: #{tpu_custom_call.1} parent=1 // pred_region
      _
    $region93: #{tpu_custom_call.1} parent=1 // pred_fallthru
      _
    // Predicated region
    $region94: #{tpu_custom_call.1} parent=1 // pred_check
      _
    $region95: #{tpu_custom_call.1} parent=1 // pred_check_branch
      %254 = sbr.rel (0) target = $region97
    $region96: #{tpu_custom_call.1} parent=1 // pred_region
      %s256 = ssub.s32 16, 16
      %257 = vsyncadd [#allocation33], %s256
      %s259 = sshll.u32 [#allocation32], 4
      %s260 = int_to_ptr.vmem [resolvable:$true] %s259
      %262 = dma.hbm_to_vmem [thread:$0]  %s47, 16, %s260, [#allocation33]
    $region97: #{tpu_custom_call.1} parent=1 // pred_fallthru
      _
    // Predicated region
    $region98: #{tpu_custom_call.1} parent=1 // pred_check
      _
    $region99: #{tpu_custom_call.1} parent=1 // pred_check_branch
      %264 = sbr.rel (0) target = $region101
    $region100: #{tpu_custom_call.1} parent=1 // pred_region
      %s266 = ssub.s32 256, 256
      %267 = vsyncadd [#allocation33], %s266
      %s268 = sshll.u32 [#allocation34], 4
      %s269 = int_to_ptr.vmem [resolvable:$true] %s268
      %274 = dma.hbm_to_vmem [thread:$0]  %s49, 256, %s269, [#allocation33], 64, 64, 4
    $region101: #{tpu_custom_call.1} parent=1 // pred_fallthru
      _
    // Predicated region
    $region102: #{tpu_custom_call.1} parent=1 // pred_check
      _
    $region103: #{tpu_custom_call.1} parent=1 // pred_check_branch
      %276 = sbr.rel (0) target = $region105
    $region104: #{tpu_custom_call.1} parent=1 // pred_region
      %s278 = ssub.s32 16, 16
      %279 = vsyncadd [#allocation36], %s278
      %s281 = sshll.u32 [#allocation35], 4
      %s282 = int_to_ptr.vmem [resolvable:$true] %s281
      %284 = dma.hbm_to_vmem [thread:$0]  %s51, 16, %s282, [#allocation36]
    $region105: #{tpu_custom_call.1} parent=1 // pred_fallthru
      _
    // Predicated region
    $region106: #{tpu_custom_call.1} parent=1 // pred_check
      _
    $region107: #{tpu_custom_call.1} parent=1 // pred_check_branch
      %286 = sbr.rel (0) target = $region109
    $region108: #{tpu_custom_call.1} parent=1 // pred_region
      _
    $region109: #{tpu_custom_call.1} parent=1 // pred_fallthru
      _
    // Predicated region
    $region110: #{tpu_custom_call.1} parent=1 // pred_check
      _
    $region111: #{tpu_custom_call.1} parent=1 // pred_check_branch
      %288 = sbr.rel (0) target = $region113
    $region112: #{tpu_custom_call.1} parent=1 // pred_region
      _
    $region113: #{tpu_custom_call.1} parent=1 // pred_fallthru
      _
    // Predicated region
    $region114: #{tpu_custom_call.1} parent=1 // pred_check
      _
    $region115: #{tpu_custom_call.1} parent=1 // pred_check_branch
      %290 = sbr.rel (0) target = $region117
    $region116: #{tpu_custom_call.1} parent=1 // pred_region
      _
    $region117: #{tpu_custom_call.1} parent=1 // pred_fallthru
      _
    // Predicated region
    $region118: #{tpu_custom_call.1} parent=1 // pred_check
      _
    $region119: #{tpu_custom_call.1} parent=1 // pred_check_branch
      %292 = sbr.rel (0) target = $region121
    $region120: #{tpu_custom_call.1} parent=1 // pred_region
      _
    $region121: #{tpu_custom_call.1} parent=1 // pred_fallthru
      _
    // Predicated region
    $region122: #{tpu_custom_call.1} parent=1 // pred_check
      _
    $region123: #{tpu_custom_call.1} parent=1 // pred_check_branch
      %294 = sbr.rel (0) target = $region125
    $region124: #{tpu_custom_call.1} parent=1 // pred_region
      %295 = dma.done [#allocation9], 256
    $region125: #{tpu_custom_call.1} parent=1 // pred_fallthru
      _
    // Predicated region
    $region126: #{tpu_custom_call.1} parent=1 // pred_check
      _
    $region127: #{tpu_custom_call.1} parent=1 // pred_check_branch
      %297 = sbr.rel (0) target = $region129
    $region128: #{tpu_custom_call.1} parent=1 // pred_region
      %298 = dma.done [#allocation12], 256
    $region129: #{tpu_custom_call.1} parent=1 // pred_fallthru
      _
    // Predicated region
    $region130: #{tpu_custom_call.1} parent=1 // pred_check
      _
    $region131: #{tpu_custom_call.1} parent=1 // pred_check_branch
      %300 = sbr.rel (0) target = $region133
    $region132: #{tpu_custom_call.1} parent=1 // pred_region
      %301 = dma.done [#allocation12], 16
    $region133: #{tpu_custom_call.1} parent=1 // pred_fallthru
      _
    // Predicated region
    $region134: #{tpu_custom_call.1} parent=1 // pred_check
      _
    $region135: #{tpu_custom_call.1} parent=1 // pred_check_branch
      %303 = sbr.rel (0) target = $region137
    $region136: #{tpu_custom_call.1} parent=1 // pred_region
      %304 = dma.done [#allocation15], 16
    $region137: #{tpu_custom_call.1} parent=1 // pred_fallthru
      _
    // Predicated region
    $region138: #{tpu_custom_call.1} parent=1 // pred_check
      _
    $region139: #{tpu_custom_call.1} parent=1 // pred_check_branch
      %306 = sbr.rel (0) target = $region141
    $region140: #{tpu_custom_call.1} parent=1 // pred_region
      %307 = dma.done [#allocation15], 16
    $region141: #{tpu_custom_call.1} parent=1 // pred_fallthru
      _
    // Predicated region
    $region142: #{tpu_custom_call.1} parent=1 // pred_check
      _
    $region143: #{tpu_custom_call.1} parent=1 // pred_check_branch
      %309 = sbr.rel (0) target = $region145
    $region144: #{tpu_custom_call.1} parent=1 // pred_region
      %310 = dma.done [#allocation18], 16
    $region145: #{tpu_custom_call.1} parent=1 // pred_fallthru
      _
    // Predicated region
    $region146: #{tpu_custom_call.1} parent=1 // pred_check
      _
    $region147: #{tpu_custom_call.1} parent=1 // pred_check_branch
      %312 = sbr.rel (0) target = $region149
    $region148: #{tpu_custom_call.1} parent=1 // pred_region
      %313 = dma.done [#allocation18], 16
    $region149: #{tpu_custom_call.1} parent=1 // pred_fallthru
      _
    // Predicated region
    $region150: #{tpu_custom_call.1} parent=1 // pred_check
      _
    $region151: #{tpu_custom_call.1} parent=1 // pred_check_branch
      %315 = sbr.rel (0) target = $region153
    $region152: #{tpu_custom_call.1} parent=1 // pred_region
      %316 = dma.done [#allocation21], 16
    $region153: #{tpu_custom_call.1} parent=1 // pred_fallthru
      _
    // Predicated region
    $region154: #{tpu_custom_call.1} parent=1 // pred_check
      _
    $region155: #{tpu_custom_call.1} parent=1 // pred_check_branch
      %318 = sbr.rel (0) target = $region157
    $region156: #{tpu_custom_call.1} parent=1 // pred_region
      %319 = dma.done [#allocation21], 16
    $region157: #{tpu_custom_call.1} parent=1 // pred_fallthru
      _
    // Predicated region
    $region158: #{tpu_custom_call.1} parent=1 // pred_check
      _
    $region159: #{tpu_custom_call.1} parent=1 // pred_check_branch
      %321 = sbr.rel (0) target = $region161
    $region160: #{tpu_custom_call.1} parent=1 // pred_region
      %322 = dma.done [#allocation24], 256
    $region161: #{tpu_custom_call.1} parent=1 // pred_fallthru
      _
    // Predicated region
    $region162: #{tpu_custom_call.1} parent=1 // pred_check
      _
    $region163: #{tpu_custom_call.1} parent=1 // pred_check_branch
      %324 = sbr.rel (0) target = $region165
    $region164: #{tpu_custom_call.1} parent=1 // pred_region
      %325 = dma.done [#allocation24], 16
    $region165: #{tpu_custom_call.1} parent=1 // pred_fallthru
      _
    // Predicated region
    $region166: #{tpu_custom_call.1} parent=1 // pred_check
      _
    $region167: #{tpu_custom_call.1} parent=1 // pred_check_branch
      %327 = sbr.rel (0) target = $region169
    $region168: #{tpu_custom_call.1} parent=1 // pred_region
      %328 = dma.done [#allocation27], 16
    $region169: #{tpu_custom_call.1} parent=1 // pred_fallthru
      _
    // Predicated region
    $region170: #{tpu_custom_call.1} parent=1 // pred_check
      _
    $region171: #{tpu_custom_call.1} parent=1 // pred_check_branch
      %330 = sbr.rel (0) target = $region173
    $region172: #{tpu_custom_call.1} parent=1 // pred_region
      %331 = dma.done [#allocation27], 256
    $region173: #{tpu_custom_call.1} parent=1 // pred_fallthru
      _
    // Predicated region
    $region174: #{tpu_custom_call.1} parent=1 // pred_check
      _
    $region175: #{tpu_custom_call.1} parent=1 // pred_check_branch
      %333 = sbr.rel (0) target = $region177
    $region176: #{tpu_custom_call.1} parent=1 // pred_region
      %334 = dma.done [#allocation30], 16
    $region177: #{tpu_custom_call.1} parent=1 // pred_fallthru
      _
    // Predicated region
    $region178: #{tpu_custom_call.1} parent=1 // pred_check
      _
    $region179: #{tpu_custom_call.1} parent=1 // pred_check_branch
      %336 = sbr.rel (0) target = $region181
    $region180: #{tpu_custom_call.1} parent=1 // pred_region
      %337 = dma.done [#allocation30], 256
    $region181: #{tpu_custom_call.1} parent=1 // pred_fallthru
      _
    // Predicated region
    $region182: #{tpu_custom_call.1} parent=1 // pred_check
      _
    $region183: #{tpu_custom_call.1} parent=1 // pred_check_branch
      %339 = sbr.rel (0) target = $region185
    $region184: #{tpu_custom_call.1} parent=1 // pred_region
      %340 = dma.done [#allocation33], 16
    $region185: #{tpu_custom_call.1} parent=1 // pred_fallthru
      _
    // Predicated region
    $region186: #{tpu_custom_call.1} parent=1 // pred_check
      _
    $region187: #{tpu_custom_call.1} parent=1 // pred_check_branch
      %342 = sbr.rel (0) target = $region189
    $region188: #{tpu_custom_call.1} parent=1 // pred_region
      %343 = dma.done [#allocation33], 256
    $region189: #{tpu_custom_call.1} parent=1 // pred_fallthru
      _
    // Predicated region
    $region190: #{tpu_custom_call.1} parent=1 // pred_check
      _
    $region191: #{tpu_custom_call.1} parent=1 // pred_check_branch
      %345 = sbr.rel (0) target = $region193
    $region192: #{tpu_custom_call.1} parent=1 // pred_region
      %346 = dma.done [#allocation36], 16
    $region193: #{tpu_custom_call.1} parent=1 // pred_fallthru
      _
    %v348 = vld [vmem:[%s1] sm:$0xff]
    %v349 = vld [vmem:[%s1 + $0x8] sm:$0xff]
    %v350 = vld [vmem:[%s5] sm:$0xff]
    %v351 = vld [vmem:[%s5 + $0x8] sm:$0xff]
    %v352 = vld [vmem:[%s5 + $0x10] sm:$0xff]
    %v353 = vld [vmem:[%s5 + $0x18] sm:$0xff]
    %vm354 = vcmask 261120
    %v355 = vsel %vm354, %v348, 0.0
    %356 = vadd.xlane.f32.xlu0 %v355
    %v357 = vpop.xlane.xlu0 %356
    %v358 = vsel %vm354, %v349, 0.0
    %359 = vadd.xlane.f32.xlu0 %v358
    %v360 = vpop.xlane.xlu0 %359
    %v361 = vrcp.pop 32.0
    %v362 = vmul.f32 %v357, %v361
    %v363 = vmul.f32 %v360, %v361
    %v364 = vsub.f32 %v348, %v362
    %v365 = vsub.f32 %v349, %v363
    %v366 = vmul.f32 %v364, %v364
    %v367 = vmul.f32 %v365, %v365
    %v368 = vsel %vm354, %v366, 0.0
    %369 = vadd.xlane.f32.xlu0 %v368
    %v370 = vpop.xlane.xlu0 %369
    %v371 = vsel %vm354, %v367, 0.0
    %372 = vadd.xlane.f32.xlu0 %v371
    %v373 = vpop.xlane.xlu0 %372
    %v374 = vmul.f32 %v370, %v361
    %v375 = vmul.f32 %v373, %v361
    %v376 = vadd.f32 %v374, 1e-05
    %v377 = vadd.f32 %v375, 1e-05
    %v378 = vrsqrt.pop %v376
    %v379 = vrsqrt.pop %v377
    %v380 = vmul.f32 %v364, %v378
    %v381 = vmul.f32 %v365, %v379
    %v382 = vld [vmem:[#allocation13] sm:$0x1]
    %v384 = vlaneseq
    %v385 = vshrl.u32 %v384, 7
    %v386 = vsub.s32 0, %v385
    %v387 = vrot.slane %v382, %v386
    %v389 = vmul.f32 %v380, %v387
    %v390 = vmul.f32 %v381, %v387
    %v391 = vld [vmem:[#allocation14] sm:$0x1]
    %v393 = vlaneseq
    %v394 = vshrl.u32 %v393, 7
    %v395 = vsub.s32 0, %v394
    %v396 = vrot.slane %v391, %v395
    %v398 = vadd.f32 %v389, %v396
    %v399 = vadd.f32 %v390, %v396
    %v400 = vpack.c.bf16 %v399, %v398
    %v401 = vld [vmem:[%s21] sm:$0xf]
    %v402 = vld [vmem:[%s21 + $0x4] sm:$0xf]
    %v403 = vld [vmem:[%s21 + $0x8] sm:$0xf]
    %v404 = vld [vmem:[%s21 + $0xc] sm:$0xf]
    %v405 = vld [vmem:[#allocation22] sm:$0x1]
    %v407 = vlaneseq
    %v408 = vshrl.u32 %v407, 7
    %v409 = vsub.s32 0, %v408
    %v410 = vrot.slane %v405, %v409
    %v416 = vunpack.c.l.b16 %v401
    %v417 = vunpack.c.l.b16 %v402
    %v418 = vunpack.c.l.b16 %v403
    %v419 = vunpack.c.l.b16 %v404
    %v420 = vpack.c.b16 %v417, %v416
    %v421 = vpack.c.b16 %v419, %v418
    %v425 = vsel %vm354, %v400, 0
    %427 = vmatprep.subr.bf16.mxu0 0
    %428 = vmatpush1.bf16.msra.mxu0 %v420
    %429 = vmatprep.subr.bf16.mxu0 0
    %430 = vmatpush1.bf16.msra.mxu0 %v421
    %431 = vmatprep.subr.bf16.mxu0 0
    %432 = vmatpush1.bf16.msra.mxu0 0
    %433 = vmatprep.subr.bf16.mxu0 0
    %434 = vmatpush1.bf16.msra.mxu0 0
    %435 = vmatprep.subr.bf16.mxu0 0
    %436 = vmatpush1.bf16.msra.mxu0 0
    %437 = vmatprep.subr.bf16.mxu0 0
    %438 = vmatpush1.bf16.msra.mxu0 0
    %439 = vmatprep.subr.bf16.mxu0 0
    %440 = vmatpush1.bf16.msra.mxu0 0
    %441 = vmatprep.subr.bf16.mxu0 0
    %442 = vmatpush1.bf16.msra.mxu0 0
    %443 = vmatprep.subr.bf16.mxu0 0
    %444 = vmatpush1.bf16.msra.mxu0 0
    %445 = vmatprep.subr.bf16.mxu0 0
    %446 = vmatpush1.bf16.msra.mxu0 0
    %447 = vmatprep.subr.bf16.mxu0 0
    %448 = vmatpush1.bf16.msra.mxu0 0
    %449 = vmatprep.subr.bf16.mxu0 0
    %450 = vmatpush1.bf16.msra.mxu0 0
    %451 = vmatprep.subr.bf16.mxu0 0
    %452 = vmatpush1.bf16.msra.mxu0 0
    %453 = vmatprep.subr.bf16.mxu0 0
    %454 = vmatpush1.bf16.msra.mxu0 0
    %455 = vmatprep.subr.bf16.mxu0 0
    %456 = vmatpush1.bf16.msra.mxu0 0
    %457 = vmatprep.subr.bf16.mxu0 0
    %458 = vmatpush1.bf16.msra.mxu0 0
    %459 = vmatprep.mubr.bf16.mxu0 0
    %460 = vmatmul.mubr.bf16.gmra.mrb[0].mxu0 %v425
    %v461 = vpop.f32.mrb[0].mxu0
    %v462 = vadd.f32 %v410, %v461
    %v463 = vpop.f32.mrb[0].mxu0
    %v464 = vpop.f32.mrb[0].mxu0
    %v465 = vadd.f32 %v410, %v464
    %v466 = vpop.f32.mrb[0].mxu0
    %467 = vdwg.mxu0
    %v468 = vmul.f32 %v462, 0.35355338
    %v469 = vmul.f32 %v465, 0.35355338
    %v470 = vld [vmem:[#allocation23] sm:$0xf]
    %v471 = vld [vmem:[#allocation23 + $0x4] sm:$0xf]
    %v472 = vld [vmem:[#allocation23 + $0x8] sm:$0xf]
    %v473 = vld [vmem:[#allocation23 + $0xc] sm:$0xf]
    %v474 = vld [vmem:[#allocation25] sm:$0x1]
    %v476 = vlaneseq
    %v477 = vshrl.u32 %v476, 7
    %v478 = vsub.s32 0, %v477
    %v479 = vrot.slane %v474, %v478
    %v485 = vunpack.c.l.b16 %v470
    %v486 = vunpack.c.l.b16 %v471
    %v487 = vunpack.c.l.b16 %v472
    %v488 = vunpack.c.l.b16 %v473
    %v489 = vpack.c.b16 %v486, %v485
    %v490 = vpack.c.b16 %v488, %v487
    %493 = vmatprep.subr.bf16.mxu0 0
    %494 = vmatpush1.bf16.msra.mxu0 %v489
    %495 = vmatprep.subr.bf16.mxu0 0
    %496 = vmatpush1.bf16.msra.mxu0 %v490
    %497 = vmatprep.subr.bf16.mxu0 0
    %498 = vmatpush1.bf16.msra.mxu0 0
    %499 = vmatprep.subr.bf16.mxu0 0
    %500 = vmatpush1.bf16.msra.mxu0 0
    %501 = vmatprep.subr.bf16.mxu0 0
    %502 = vmatpush1.bf16.msra.mxu0 0
    %503 = vmatprep.subr.bf16.mxu0 0
    %504 = vmatpush1.bf16.msra.mxu0 0
    %505 = vmatprep.subr.bf16.mxu0 0
    %506 = vmatpush1.bf16.msra.mxu0 0
    %507 = vmatprep.subr.bf16.mxu0 0
    %508 = vmatpush1.bf16.msra.mxu0 0
    %509 = vmatprep.subr.bf16.mxu0 0
    %510 = vmatpush1.bf16.msra.mxu0 0
    %511 = vmatprep.subr.bf16.mxu0 0
    %512 = vmatpush1.bf16.msra.mxu0 0
    %513 = vmatprep.subr.bf16.mxu0 0
    %514 = vmatpush1.bf16.msra.mxu0 0
    %515 = vmatprep.subr.bf16.mxu0 0
    %516 = vmatpush1.bf16.msra.mxu0 0
    %517 = vmatprep.subr.bf16.mxu0 0
    %518 = vmatpush1.bf16.msra.mxu0 0
    %519 = vmatprep.subr.bf16.mxu0 0
    %520 = vmatpush1.bf16.msra.mxu0 0
    %521 = vmatprep.subr.bf16.mxu0 0
    %522 = vmatpush1.bf16.msra.mxu0 0
    %523 = vmatprep.subr.bf16.mxu0 0
    %524 = vmatpush1.bf16.msra.mxu0 0
    %525 = vmatprep.mubr.bf16.mxu0 0
    %526 = vmatmul.mubr.bf16.gmra.mrb[0].mxu0 %v425
    %v527 = vpop.f32.mrb[0].mxu0
    %v528 = vadd.f32 %v479, %v527
    %v529 = vpop.f32.mrb[0].mxu0
    %v530 = vpop.f32.mrb[0].mxu0
    %v531 = vadd.f32 %v479, %v530
    %v532 = vpop.f32.mrb[0].mxu0
    %533 = vdwg.mxu0
    %v534 = vld [vmem:[%s29] sm:$0xf]
    %v535 = vld [vmem:[%s29 + $0x4] sm:$0xf]
    %v536 = vld [vmem:[%s29 + $0x8] sm:$0xf]
    %v537 = vld [vmem:[%s29 + $0xc] sm:$0xf]
    %v538 = vld [vmem:[#allocation26] sm:$0x1]
    %v540 = vlaneseq
    %v541 = vshrl.u32 %v540, 7
    %v542 = vsub.s32 0, %v541
    %v543 = vrot.slane %v538, %v542
    %v549 = vunpack.c.l.b16 %v534
    %v550 = vunpack.c.l.b16 %v535
    %v551 = vunpack.c.l.b16 %v536
    %v552 = vunpack.c.l.b16 %v537
    %v553 = vpack.c.b16 %v550, %v549
    %v554 = vpack.c.b16 %v552, %v551
    %557 = vmatprep.subr.bf16.mxu0 0
    %558 = vmatpush1.bf16.msra.mxu0 %v553
    %559 = vmatprep.subr.bf16.mxu0 0
    %560 = vmatpush1.bf16.msra.mxu0 %v554
    %561 = vmatprep.subr.bf16.mxu0 0
    %562 = vmatpush1.bf16.msra.mxu0 0
    %563 = vmatprep.subr.bf16.mxu0 0
    %564 = vmatpush1.bf16.msra.mxu0 0
    %565 = vmatprep.subr.bf16.mxu0 0
    %566 = vmatpush1.bf16.msra.mxu0 0
    %567 = vmatprep.subr.bf16.mxu0 0
    %568 = vmatpush1.bf16.msra.mxu0 0
    %569 = vmatprep.subr.bf16.mxu0 0
    %570 = vmatpush1.bf16.msra.mxu0 0
    %571 = vmatprep.subr.bf16.mxu0 0
    %572 = vmatpush1.bf16.msra.mxu0 0
    %573 = vmatprep.subr.bf16.mxu0 0
    %574 = vmatpush1.bf16.msra.mxu0 0
    %575 = vmatprep.subr.bf16.mxu0 0
    %576 = vmatpush1.bf16.msra.mxu0 0
    %577 = vmatprep.subr.bf16.mxu0 0
    %578 = vmatpush1.bf16.msra.mxu0 0
    %579 = vmatprep.subr.bf16.mxu0 0
    %580 = vmatpush1.bf16.msra.mxu0 0
    %581 = vmatprep.subr.bf16.mxu0 0
    %582 = vmatpush1.bf16.msra.mxu0 0
    %583 = vmatprep.subr.bf16.mxu0 0
    %584 = vmatpush1.bf16.msra.mxu0 0
    %585 = vmatprep.subr.bf16.mxu0 0
    %586 = vmatpush1.bf16.msra.mxu0 0
    %587 = vmatprep.subr.bf16.mxu0 0
    %588 = vmatpush1.bf16.msra.mxu0 0
    %589 = vmatprep.mubr.bf16.mxu0 0
    %590 = vmatmul.mubr.bf16.gmra.mrb[0].mxu0 %v425
    %v591 = vpop.f32.mrb[0].mxu0
    %v592 = vadd.f32 %v543, %v591
    %v593 = vpop.f32.mrb[0].mxu0
    %v594 = vpop.f32.mrb[0].mxu0
    %v595 = vadd.f32 %v543, %v594
    %v596 = vpop.f32.mrb[0].mxu0
    %597 = vdwg.mxu0
    %v598 = vpack.c.bf16 %v469, %v468
    %v599 = vpack.c.bf16 %v531, %v528
    %v600 = vpack.c.bf16 %v595, %v592
    %vm601 = vcmask 60416
    %602 = vst.msk [vmem:[#allocation2] sm:$0xf] %vm601, %v598
    %603 = vst.msk [vmem:[#allocation3] sm:$0xf] %vm601, %v599
    %604 = vst.msk [vmem:[#allocation4] sm:$0xf] %vm601, %v600
    %v606 = vunpack.c.l.b16 %v598
    %v607 = vpack.c.b16 %v606, %v606
    %608 = vrot.lane.b32.xlu0 %v607, 120
    %v609 = vpop.permute.xlu0 %608
    %s611 = scalar_lea.vmem [#allocation2], 4
    %612 = vst.msk [vmem:[%s611] sm:$0xf] %vm601, %v609
    %v614 = vunpack.c.l.b16 %v599
    %v615 = vpack.c.b16 %v614, %v614
    %616 = vrot.lane.b32.xlu0 %v615, 120
    %v617 = vpop.permute.xlu0 %616
    %s619 = scalar_lea.vmem [#allocation3], 4
    %620 = vst.msk [vmem:[%s619] sm:$0xf] %vm601, %v617
    %v622 = vunpack.c.l.b16 %v600
    %v623 = vpack.c.b16 %v622, %v622
    %624 = vrot.lane.b32.xlu0 %v623, 120
    %v625 = vpop.permute.xlu0 %624
    %s627 = scalar_lea.vmem [#allocation4], 4
    %628 = vst.msk [vmem:[%s627] sm:$0xf] %vm601, %v625
    %629 = vrot.lane.b32.xlu0 %v607, 112
    %v630 = vpop.permute.xlu0 %629
    %s632 = scalar_lea.vmem [#allocation2], 8
    %633 = vst.msk [vmem:[%s632] sm:$0xf] %vm601, %v630
    %634 = vrot.lane.b32.xlu0 %v615, 112
    %v635 = vpop.permute.xlu0 %634
    %s637 = scalar_lea.vmem [#allocation3], 8
    %638 = vst.msk [vmem:[%s637] sm:$0xf] %vm601, %v635
    %639 = vrot.lane.b32.xlu0 %v623, 112
    %v640 = vpop.permute.xlu0 %639
    %s642 = scalar_lea.vmem [#allocation4], 8
    %643 = vst.msk [vmem:[%s642] sm:$0xf] %vm601, %v640
    %644 = vrot.lane.b32.xlu0 %v607, 104
    %v645 = vpop.permute.xlu0 %644
    %s647 = scalar_lea.vmem [#allocation2], 12
    %648 = vst.msk [vmem:[%s647] sm:$0xf] %vm601, %v645
    %649 = vrot.lane.b32.xlu0 %v615, 104
    %v650 = vpop.permute.xlu0 %649
    %s652 = scalar_lea.vmem [#allocation3], 12
    %653 = vst.msk [vmem:[%s652] sm:$0xf] %vm601, %v650
    %654 = vrot.lane.b32.xlu0 %v623, 104
    %v655 = vpop.permute.xlu0 %654
    %s657 = scalar_lea.vmem [#allocation4], 12
    %658 = vst.msk [vmem:[%s657] sm:$0xf] %vm601, %v655
    %v659 = vunpack.c.h.b16 %v598
    %v660 = vpack.c.b16 %v659, %v659
    %s662 = scalar_lea.vmem [#allocation2], 16
    %663 = vst.msk [vmem:[%s662] sm:$0xf] %vm601, %v660
    %v664 = vunpack.c.h.b16 %v599
    %v665 = vpack.c.b16 %v664, %v664
    %s667 = scalar_lea.vmem [#allocation3], 16
    %668 = vst.msk [vmem:[%s667] sm:$0xf] %vm601, %v665
    %v669 = vunpack.c.h.b16 %v600
    %v670 = vpack.c.b16 %v669, %v669
    %s672 = scalar_lea.vmem [#allocation4], 16
    %673 = vst.msk [vmem:[%s672] sm:$0xf] %vm601, %v670
    %674 = vrot.lane.b32.xlu0 %v660, 120
    %v675 = vpop.permute.xlu0 %674
    %s677 = scalar_lea.vmem [#allocation2], 20
    %678 = vst.msk [vmem:[%s677] sm:$0xf] %vm601, %v675
    %679 = vrot.lane.b32.xlu0 %v665, 120
    %v680 = vpop.permute.xlu0 %679
    %s682 = scalar_lea.vmem [#allocation3], 20
    %683 = vst.msk [vmem:[%s682] sm:$0xf] %vm601, %v680
    %684 = vrot.lane.b32.xlu0 %v670, 120
    %v685 = vpop.permute.xlu0 %684
    %s687 = scalar_lea.vmem [#allocation4], 20
    %688 = vst.msk [vmem:[%s687] sm:$0xf] %vm601, %v685
    %689 = vrot.lane.b32.xlu0 %v660, 112
    %v690 = vpop.permute.xlu0 %689
    %s692 = scalar_lea.vmem [#allocation2], 24
    %693 = vst.msk [vmem:[%s692] sm:$0xf] %vm601, %v690
    %694 = vrot.lane.b32.xlu0 %v665, 112
    %v695 = vpop.permute.xlu0 %694
    %s697 = scalar_lea.vmem [#allocation3], 24
    %698 = vst.msk [vmem:[%s697] sm:$0xf] %vm601, %v695
    %699 = vrot.lane.b32.xlu0 %v670, 112
    %v700 = vpop.permute.xlu0 %699
    %s702 = scalar_lea.vmem [#allocation4], 24
    %703 = vst.msk [vmem:[%s702] sm:$0xf] %vm601, %v700
    %704 = vrot.lane.b32.xlu0 %v660, 104
    %v705 = vpop.permute.xlu0 %704
    %s707 = scalar_lea.vmem [#allocation2], 28
    %708 = vst.msk [vmem:[%s707] sm:$0xf] %vm601, %v705
    %709 = vrot.lane.b32.xlu0 %v665, 104
    %v710 = vpop.permute.xlu0 %709
    %s712 = scalar_lea.vmem [#allocation3], 28
    %713 = vst.msk [vmem:[%s712] sm:$0xf] %vm601, %v710
    %714 = vrot.lane.b32.xlu0 %v670, 104
    %v715 = vpop.permute.xlu0 %714
    %s717 = scalar_lea.vmem [#allocation4], 28
    %718 = vst.msk [vmem:[%s717] sm:$0xf] %vm601, %v715
    %v719 = vld [vmem:[#allocation8] sm:$0xff]
    %vm720 = vcmp.gt.f32.partialorder %v719, 0.0
    %v721 = vsel %vm720, 0.0, -1e+09
    %v722 = vld [vmem:[#allocation2] sm:$0xf]
    %v723 = vld [vmem:[#allocation2 + $0x4] sm:$0xf]
    %v724 = vld [vmem:[#allocation2 + $0x8] sm:$0xf]
    %v725 = vld [vmem:[#allocation2 + $0xc] sm:$0xf]
    %v726 = vld [vmem:[#allocation3] sm:$0xf]
    %v727 = vld [vmem:[#allocation3 + $0x4] sm:$0xf]
    %v728 = vld [vmem:[#allocation3 + $0x8] sm:$0xf]
    %v729 = vld [vmem:[#allocation3 + $0xc] sm:$0xf]
    %v730 = vld [vmem:[#allocation4] sm:$0xf]
    %v731 = vld [vmem:[#allocation4 + $0x4] sm:$0xf]
    %v732 = vld [vmem:[#allocation4 + $0x8] sm:$0xf]
    %v733 = vld [vmem:[#allocation4 + $0xc] sm:$0xf]
    %vm734 = vcmask 64512
    %v736 = vsel %vm734, %v722, 0
    %v739 = vsel %vm734, %v726, 0
    %741 = vmatprep.subr.bf16.mxu0 0
    %742 = vmatpush1.bf16.xpose.msra.mxu0 %v739
    %743 = vmatprep.subr.bf16.mxu0 0
    %744 = vmatpush1.bf16.xpose.msra.mxu0 0
    %745 = vmatprep.subr.bf16.mxu0 0
    %746 = vmatpush1.bf16.xpose.msra.mxu0 0
    %747 = vmatprep.subr.bf16.mxu0 0
    %748 = vmatpush1.bf16.xpose.msra.mxu0 0
    %749 = vmatprep.subr.bf16.mxu0 0
    %750 = vmatpush1.bf16.xpose.msra.mxu0 0
    %751 = vmatprep.subr.bf16.mxu0 0
    %752 = vmatpush1.bf16.xpose.msra.mxu0 0
    %753 = vmatprep.subr.bf16.mxu0 0
    %754 = vmatpush1.bf16.xpose.msra.mxu0 0
    %755 = vmatprep.subr.bf16.mxu0 0
    %756 = vmatpush1.bf16.xpose.msra.mxu0 0
    %757 = vmatprep.subr.bf16.mxu0 0
    %758 = vmatpush1.bf16.xpose.msra.mxu0 0
    %759 = vmatprep.subr.bf16.mxu0 0
    %760 = vmatpush1.bf16.xpose.msra.mxu0 0
    %761 = vmatprep.subr.bf16.mxu0 0
    %762 = vmatpush1.bf16.xpose.msra.mxu0 0
    %763 = vmatprep.subr.bf16.mxu0 0
    %764 = vmatpush1.bf16.xpose.msra.mxu0 0
    %765 = vmatprep.subr.bf16.mxu0 0
    %766 = vmatpush1.bf16.xpose.msra.mxu0 0
    %767 = vmatprep.subr.bf16.mxu0 0
    %768 = vmatpush1.bf16.xpose.msra.mxu0 0
    %769 = vmatprep.subr.bf16.mxu0 0
    %770 = vmatpush1.bf16.xpose.msra.mxu0 0
    %771 = vmatprep.subr.bf16.mxu0 0
    %772 = vmatpush1.bf16.xpose.msra.mxu0 0
    %773 = vmatprep.mubr.bf16.mxu0 0
    %774 = vmatmul.mubr.bf16.gmra.mrb[0].mxu0 %v736
    %v775 = vpop.f32.mrb[0].mxu0
    %v776 = vadd.f32 %v721, %v775
    %v777 = vpop.f32.mrb[0].mxu0
    %v778 = vpop.f32.mrb[0].mxu0
    %v779 = vpop.f32.mrb[0].mxu0
    %780 = vdwg.mxu0
    %v782 = vsel %vm734, %v723, 0
    %v785 = vsel %vm734, %v727, 0
    %787 = vmatprep.subr.bf16.mxu0 0
    %788 = vmatpush1.bf16.xpose.msra.mxu0 %v785
    %789 = vmatprep.subr.bf16.mxu0 0
    %790 = vmatpush1.bf16.xpose.msra.mxu0 0
    %791 = vmatprep.subr.bf16.mxu0 0
    %792 = vmatpush1.bf16.xpose.msra.mxu0 0
    %793 = vmatprep.subr.bf16.mxu0 0
    %794 = vmatpush1.bf16.xpose.msra.mxu0 0
    %795 = vmatprep.subr.bf16.mxu0 0
    %796 = vmatpush1.bf16.xpose.msra.mxu0 0
    %797 = vmatprep.subr.bf16.mxu0 0
    %798 = vmatpush1.bf16.xpose.msra.mxu0 0
    %799 = vmatprep.subr.bf16.mxu0 0
    %800 = vmatpush1.bf16.xpose.msra.mxu0 0
    %801 = vmatprep.subr.bf16.mxu0 0
    %802 = vmatpush1.bf16.xpose.msra.mxu0 0
    %803 = vmatprep.subr.bf16.mxu0 0
    %804 = vmatpush1.bf16.xpose.msra.mxu0 0
    %805 = vmatprep.subr.bf16.mxu0 0
    %806 = vmatpush1.bf16.xpose.msra.mxu0 0
    %807 = vmatprep.subr.bf16.mxu0 0
    %808 = vmatpush1.bf16.xpose.msra.mxu0 0
    %809 = vmatprep.subr.bf16.mxu0 0
    %810 = vmatpush1.bf16.xpose.msra.mxu0 0
    %811 = vmatprep.subr.bf16.mxu0 0
    %812 = vmatpush1.bf16.xpose.msra.mxu0 0
    %813 = vmatprep.subr.bf16.mxu0 0
    %814 = vmatpush1.bf16.xpose.msra.mxu0 0
    %815 = vmatprep.subr.bf16.mxu0 0
    %816 = vmatpush1.bf16.xpose.msra.mxu0 0
    %817 = vmatprep.subr.bf16.mxu0 0
    %818 = vmatpush1.bf16.xpose.msra.mxu0 0
    %819 = vmatprep.mubr.bf16.mxu0 0
    %820 = vmatmul.mubr.bf16.gmra.mrb[0].mxu0 %v782
    %v821 = vpop.f32.mrb[0].mxu0
    %v822 = vadd.f32 %v721, %v821
    %v823 = vpop.f32.mrb[0].mxu0
    %v824 = vpop.f32.mrb[0].mxu0
    %v825 = vpop.f32.mrb[0].mxu0
    %826 = vdwg.mxu0
    %v828 = vsel %vm734, %v724, 0
    %v831 = vsel %vm734, %v728, 0
    %833 = vmatprep.subr.bf16.mxu0 0
    %834 = vmatpush1.bf16.xpose.msra.mxu0 %v831
    %835 = vmatprep.subr.bf16.mxu0 0
    %836 = vmatpush1.bf16.xpose.msra.mxu0 0
    %837 = vmatprep.subr.bf16.mxu0 0
    %838 = vmatpush1.bf16.xpose.msra.mxu0 0
    %839 = vmatprep.subr.bf16.mxu0 0
    %840 = vmatpush1.bf16.xpose.msra.mxu0 0
    %841 = vmatprep.subr.bf16.mxu0 0
    %842 = vmatpush1.bf16.xpose.msra.mxu0 0
    %843 = vmatprep.subr.bf16.mxu0 0
    %844 = vmatpush1.bf16.xpose.msra.mxu0 0
    %845 = vmatprep.subr.bf16.mxu0 0
    %846 = vmatpush1.bf16.xpose.msra.mxu0 0
    %847 = vmatprep.subr.bf16.mxu0 0
    %848 = vmatpush1.bf16.xpose.msra.mxu0 0
    %849 = vmatprep.subr.bf16.mxu0 0
    %850 = vmatpush1.bf16.xpose.msra.mxu0 0
    %851 = vmatprep.subr.bf16.mxu0 0
    %852 = vmatpush1.bf16.xpose.msra.mxu0 0
    %853 = vmatprep.subr.bf16.mxu0 0
    %854 = vmatpush1.bf16.xpose.msra.mxu0 0
    %855 = vmatprep.subr.bf16.mxu0 0
    %856 = vmatpush1.bf16.xpose.msra.mxu0 0
    %857 = vmatprep.subr.bf16.mxu0 0
    %858 = vmatpush1.bf16.xpose.msra.mxu0 0
    %859 = vmatprep.subr.bf16.mxu0 0
    %860 = vmatpush1.bf16.xpose.msra.mxu0 0
    %861 = vmatprep.subr.bf16.mxu0 0
    %862 = vmatpush1.bf16.xpose.msra.mxu0 0
    %863 = vmatprep.subr.bf16.mxu0 0
    %864 = vmatpush1.bf16.xpose.msra.mxu0 0
    %865 = vmatprep.mubr.bf16.mxu0 0
    %866 = vmatmul.mubr.bf16.gmra.mrb[0].mxu0 %v828
    %v867 = vpop.f32.mrb[0].mxu0
    %v868 = vadd.f32 %v721, %v867
    %v869 = vpop.f32.mrb[0].mxu0
    %v870 = vpop.f32.mrb[0].mxu0
    %v871 = vpop.f32.mrb[0].mxu0
    %872 = vdwg.mxu0
    %v874 = vsel %vm734, %v725, 0
    %v877 = vsel %vm734, %v729, 0
    %879 = vmatprep.subr.bf16.mxu0 0
    %880 = vmatpush1.bf16.xpose.msra.mxu0 %v877
    %881 = vmatprep.subr.bf16.mxu0 0
    %882 = vmatpush1.bf16.xpose.msra.mxu0 0
    %883 = vmatprep.subr.bf16.mxu0 0
    %884 = vmatpush1.bf16.xpose.msra.mxu0 0
    %885 = vmatprep.subr.bf16.mxu0 0
    %886 = vmatpush1.bf16.xpose.msra.mxu0 0
    %887 = vmatprep.subr.bf16.mxu0 0
    %888 = vmatpush1.bf16.xpose.msra.mxu0 0
    %889 = vmatprep.subr.bf16.mxu0 0
    %890 = vmatpush1.bf16.xpose.msra.mxu0 0
    %891 = vmatprep.subr.bf16.mxu0 0
    %892 = vmatpush1.bf16.xpose.msra.mxu0 0
    %893 = vmatprep.subr.bf16.mxu0 0
    %894 = vmatpush1.bf16.xpose.msra.mxu0 0
    %895 = vmatprep.subr.bf16.mxu0 0
    %896 = vmatpush1.bf16.xpose.msra.mxu0 0
    %897 = vmatprep.subr.bf16.mxu0 0
    %898 = vmatpush1.bf16.xpose.msra.mxu0 0
    %899 = vmatprep.subr.bf16.mxu0 0
    %900 = vmatpush1.bf16.xpose.msra.mxu0 0
    %901 = vmatprep.subr.bf16.mxu0 0
    %902 = vmatpush1.bf16.xpose.msra.mxu0 0
    %903 = vmatprep.subr.bf16.mxu0 0
    %904 = vmatpush1.bf16.xpose.msra.mxu0 0
    %905 = vmatprep.subr.bf16.mxu0 0
    %906 = vmatpush1.bf16.xpose.msra.mxu0 0
    %907 = vmatprep.subr.bf16.mxu0 0
    %908 = vmatpush1.bf16.xpose.msra.mxu0 0
    %909 = vmatprep.subr.bf16.mxu0 0
    %910 = vmatpush1.bf16.xpose.msra.mxu0 0
    %911 = vmatprep.mubr.bf16.mxu0 0
    %912 = vmatmul.mubr.bf16.gmra.mrb[0].mxu0 %v874
    %v913 = vpop.f32.mrb[0].mxu0
    %v914 = vadd.f32 %v721, %v913
    %v915 = vpop.f32.mrb[0].mxu0
    %v916 = vpop.f32.mrb[0].mxu0
    %v917 = vpop.f32.mrb[0].mxu0
    %918 = vdwg.mxu0
    %v919 = vsel %vm734, %v776, -inf
    %920 = vmax.xlane.f32.xlu0 %v919
    %v921 = vpop.xlane.xlu0 %920
    %v922 = vsel %vm734, %v822, -inf
    %923 = vmax.xlane.f32.xlu0 %v922
    %v924 = vpop.xlane.xlu0 %923
    %v925 = vsel %vm734, %v868, -inf
    %926 = vmax.xlane.f32.xlu0 %v925
    %v927 = vpop.xlane.xlu0 %926
    %v928 = vsel %vm734, %v914, -inf
    %929 = vmax.xlane.f32.xlu0 %v928
    %v930 = vpop.xlane.xlu0 %929
    %v931 = vsub.f32 %v776, %v921
    %v932 = vsub.f32 %v822, %v924
    %v933 = vsub.f32 %v868, %v927
    %v934 = vsub.f32 %v914, %v930
    %v935 = vmul.f32 %v931, 1.442695
    %v936 = vpow.pop %v935
    %v937 = vmul.f32 %v932, 1.442695
    %v938 = vpow.pop %v937
    %v939 = vmul.f32 %v933, 1.442695
    %v940 = vpow.pop %v939
    %v941 = vmul.f32 %v934, 1.442695
    %v942 = vpow.pop %v941
    %v943 = vsel %vm734, %v936, 0.0
    %944 = vadd.xlane.f32.xlu0 %v943
    %v945 = vpop.xlane.xlu0 %944
    %v946 = vsel %vm734, %v938, 0.0
    %947 = vadd.xlane.f32.xlu0 %v946
    %v948 = vpop.xlane.xlu0 %947
    %v949 = vsel %vm734, %v940, 0.0
    %950 = vadd.xlane.f32.xlu0 %v949
    %v951 = vpop.xlane.xlu0 %950
    %v952 = vsel %vm734, %v942, 0.0
    %953 = vadd.xlane.f32.xlu0 %v952
    %v954 = vpop.xlane.xlu0 %953
    %v955 = vrcp.pop %v945
    %v956 = vrcp.pop %v948
    %v957 = vrcp.pop %v951
    %v958 = vrcp.pop %v954
    %v959 = vmul.f32 %v936, %v955
    %v960 = vmul.f32 %v938, %v956
    %v961 = vmul.f32 %v940, %v957
    %v962 = vmul.f32 %v942, %v958
    %v963 = vpack.c.bf16 %v959, %v959
    %v964 = vpack.c.bf16 %v960, %v960
    %v965 = vpack.c.bf16 %v961, %v961
    %v966 = vpack.c.bf16 %v962, %v962
    %v968 = vsel %vm734, %v963, 0
    %vm970 = vcmask 1043456
    %v972 = vsel %vm970, %v730, 0
    %974 = vmatprep.subr.bf16.mxu0 0
    %975 = vmatpush1.bf16.msra.mxu0 %v972
    %976 = vmatprep.subr.bf16.mxu0 0
    %977 = vmatpush1.bf16.msra.mxu0 0
    %978 = vmatprep.subr.bf16.mxu0 0
    %979 = vmatpush1.bf16.msra.mxu0 0
    %980 = vmatprep.subr.bf16.mxu0 0
    %981 = vmatpush1.bf16.msra.mxu0 0
    %982 = vmatprep.subr.bf16.mxu0 0
    %983 = vmatpush1.bf16.msra.mxu0 0
    %984 = vmatprep.subr.bf16.mxu0 0
    %985 = vmatpush1.bf16.msra.mxu0 0
    %986 = vmatprep.subr.bf16.mxu0 0
    %987 = vmatpush1.bf16.msra.mxu0 0
    %988 = vmatprep.subr.bf16.mxu0 0
    %989 = vmatpush1.bf16.msra.mxu0 0
    %990 = vmatprep.subr.bf16.mxu0 0
    %991 = vmatpush1.bf16.msra.mxu0 0
    %992 = vmatprep.subr.bf16.mxu0 0
    %993 = vmatpush1.bf16.msra.mxu0 0
    %994 = vmatprep.subr.bf16.mxu0 0
    %995 = vmatpush1.bf16.msra.mxu0 0
    %996 = vmatprep.subr.bf16.mxu0 0
    %997 = vmatpush1.bf16.msra.mxu0 0
    %998 = vmatprep.subr.bf16.mxu0 0
    %999 = vmatpush1.bf16.msra.mxu0 0
    %1000 = vmatprep.subr.bf16.mxu0 0
    %1001 = vmatpush1.bf16.msra.mxu0 0
    %1002 = vmatprep.subr.bf16.mxu0 0
    %1003 = vmatpush1.bf16.msra.mxu0 0
    %1004 = vmatprep.subr.bf16.mxu0 0
    %1005 = vmatpush1.bf16.msra.mxu0 0
    %1006 = vmatprep.mubr.bf16.mxu0 0
    %1007 = vmatmul.mubr.bf16.gmra.mrb[0].mxu0 %v968
    %v1008 = vpop.f32.mrb[0].mxu0
    %v1009 = vadd.f32 0.0, %v1008
    %v1010 = vpop.f32.mrb[0].mxu0
    %v1011 = vpop.f32.mrb[0].mxu0
    %v1012 = vpop.f32.mrb[0].mxu0
    %1013 = vdwg.mxu0
    %v1015 = vsel %vm734, %v964, 0
    %v1018 = vsel %vm970, %v731, 0
    %1020 = vmatprep.subr.bf16.mxu0 0
    %1021 = vmatpush1.bf16.msra.mxu0 %v1018
    %1022 = vmatprep.subr.bf16.mxu0 0
    %1023 = vmatpush1.bf16.msra.mxu0 0
    %1024 = vmatprep.subr.bf16.mxu0 0
    %1025 = vmatpush1.bf16.msra.mxu0 0
    %1026 = vmatprep.subr.bf16.mxu0 0
    %1027 = vmatpush1.bf16.msra.mxu0 0
    %1028 = vmatprep.subr.bf16.mxu0 0
    %1029 = vmatpush1.bf16.msra.mxu0 0
    %1030 = vmatprep.subr.bf16.mxu0 0
    %1031 = vmatpush1.bf16.msra.mxu0 0
    %1032 = vmatprep.subr.bf16.mxu0 0
    %1033 = vmatpush1.bf16.msra.mxu0 0
    %1034 = vmatprep.subr.bf16.mxu0 0
    %1035 = vmatpush1.bf16.msra.mxu0 0
    %1036 = vmatprep.subr.bf16.mxu0 0
    %1037 = vmatpush1.bf16.msra.mxu0 0
    %1038 = vmatprep.subr.bf16.mxu0 0
    %1039 = vmatpush1.bf16.msra.mxu0 0
    %1040 = vmatprep.subr.bf16.mxu0 0
    %1041 = vmatpush1.bf16.msra.mxu0 0
    %1042 = vmatprep.subr.bf16.mxu0 0
    %1043 = vmatpush1.bf16.msra.mxu0 0
    %1044 = vmatprep.subr.bf16.mxu0 0
    %1045 = vmatpush1.bf16.msra.mxu0 0
    %1046 = vmatprep.subr.bf16.mxu0 0
    %1047 = vmatpush1.bf16.msra.mxu0 0
    %1048 = vmatprep.subr.bf16.mxu0 0
    %1049 = vmatpush1.bf16.msra.mxu0 0
    %1050 = vmatprep.subr.bf16.mxu0 0
    %1051 = vmatpush1.bf16.msra.mxu0 0
    %1052 = vmatprep.mubr.bf16.mxu0 0
    %1053 = vmatmul.mubr.bf16.gmra.mrb[0].mxu0 %v1015
    %v1054 = vpop.f32.mrb[0].mxu0
    %v1055 = vadd.f32 0.0, %v1054
    %v1056 = vpop.f32.mrb[0].mxu0
    %v1057 = vpop.f32.mrb[0].mxu0
    %v1058 = vpop.f32.mrb[0].mxu0
    %1059 = vdwg.mxu0
    %v1061 = vsel %vm734, %v965, 0
    %v1064 = vsel %vm970, %v732, 0
    %1066 = vmatprep.subr.bf16.mxu0 0
    %1067 = vmatpush1.bf16.msra.mxu0 %v1064
    %1068 = vmatprep.subr.bf16.mxu0 0
    %1069 = vmatpush1.bf16.msra.mxu0 0
    %1070 = vmatprep.subr.bf16.mxu0 0
    %1071 = vmatpush1.bf16.msra.mxu0 0
    %1072 = vmatprep.subr.bf16.mxu0 0
    %1073 = vmatpush1.bf16.msra.mxu0 0
    %1074 = vmatprep.subr.bf16.mxu0 0
    %1075 = vmatpush1.bf16.msra.mxu0 0
    %1076 = vmatprep.subr.bf16.mxu0 0
    %1077 = vmatpush1.bf16.msra.mxu0 0
    %1078 = vmatprep.subr.bf16.mxu0 0
    %1079 = vmatpush1.bf16.msra.mxu0 0
    %1080 = vmatprep.subr.bf16.mxu0 0
    %1081 = vmatpush1.bf16.msra.mxu0 0
    %1082 = vmatprep.subr.bf16.mxu0 0
    %1083 = vmatpush1.bf16.msra.mxu0 0
    %1084 = vmatprep.subr.bf16.mxu0 0
    %1085 = vmatpush1.bf16.msra.mxu0 0
    %1086 = vmatprep.subr.bf16.mxu0 0
    %1087 = vmatpush1.bf16.msra.mxu0 0
    %1088 = vmatprep.subr.bf16.mxu0 0
    %1089 = vmatpush1.bf16.msra.mxu0 0
    %1090 = vmatprep.subr.bf16.mxu0 0
    %1091 = vmatpush1.bf16.msra.mxu0 0
    %1092 = vmatprep.subr.bf16.mxu0 0
    %1093 = vmatpush1.bf16.msra.mxu0 0
    %1094 = vmatprep.subr.bf16.mxu0 0
    %1095 = vmatpush1.bf16.msra.mxu0 0
    %1096 = vmatprep.subr.bf16.mxu0 0
    %1097 = vmatpush1.bf16.msra.mxu0 0
    %1098 = vmatprep.mubr.bf16.mxu0 0
    %1099 = vmatmul.mubr.bf16.gmra.mrb[0].mxu0 %v1061
    %v1100 = vpop.f32.mrb[0].mxu0
    %v1101 = vadd.f32 0.0, %v1100
    %v1102 = vpop.f32.mrb[0].mxu0
    %v1103 = vpop.f32.mrb[0].mxu0
    %v1104 = vpop.f32.mrb[0].mxu0
    %1105 = vdwg.mxu0
    %v1107 = vsel %vm734, %v966, 0
    %v1110 = vsel %vm970, %v733, 0
    %1112 = vmatprep.subr.bf16.mxu0 0
    %1113 = vmatpush1.bf16.msra.mxu0 %v1110
    %1114 = vmatprep.subr.bf16.mxu0 0
    %1115 = vmatpush1.bf16.msra.mxu0 0
    %1116 = vmatprep.subr.bf16.mxu0 0
    %1117 = vmatpush1.bf16.msra.mxu0 0
    %1118 = vmatprep.subr.bf16.mxu0 0
    %1119 = vmatpush1.bf16.msra.mxu0 0
    %1120 = vmatprep.subr.bf16.mxu0 0
    %1121 = vmatpush1.bf16.msra.mxu0 0
    %1122 = vmatprep.subr.bf16.mxu0 0
    %1123 = vmatpush1.bf16.msra.mxu0 0
    %1124 = vmatprep.subr.bf16.mxu0 0
    %1125 = vmatpush1.bf16.msra.mxu0 0
    %1126 = vmatprep.subr.bf16.mxu0 0
    %1127 = vmatpush1.bf16.msra.mxu0 0
    %1128 = vmatprep.subr.bf16.mxu0 0
    %1129 = vmatpush1.bf16.msra.mxu0 0
    %1130 = vmatprep.subr.bf16.mxu0 0
    %1131 = vmatpush1.bf16.msra.mxu0 0
    %1132 = vmatprep.subr.bf16.mxu0 0
    %1133 = vmatpush1.bf16.msra.mxu0 0
    %1134 = vmatprep.subr.bf16.mxu0 0
    %1135 = vmatpush1.bf16.msra.mxu0 0
    %1136 = vmatprep.subr.bf16.mxu0 0
    %1137 = vmatpush1.bf16.msra.mxu0 0
    %1138 = vmatprep.subr.bf16.mxu0 0
    %1139 = vmatpush1.bf16.msra.mxu0 0
    %1140 = vmatprep.subr.bf16.mxu0 0
    %1141 = vmatpush1.bf16.msra.mxu0 0
    %1142 = vmatprep.subr.bf16.mxu0 0
    %1143 = vmatpush1.bf16.msra.mxu0 0
    %1144 = vmatprep.mubr.bf16.mxu0 0
    %1145 = vmatmul.mubr.bf16.gmra.mrb[0].mxu0 %v1107
    %v1146 = vpop.f32.mrb[0].mxu0
    %v1147 = vadd.f32 0.0, %v1146
    %v1148 = vpop.f32.mrb[0].mxu0
    %v1149 = vpop.f32.mrb[0].mxu0
    %v1150 = vpop.f32.mrb[0].mxu0
    %1151 = vdwg.mxu0
    %v1152 = vpack.c.bf16 %v1009, %v1009
    %v1153 = vpack.c.bf16 %v1055, %v1055
    %v1154 = vpack.c.bf16 %v1101, %v1101
    %v1155 = vpack.c.bf16 %v1147, %v1147
    %1156 = vst.msk [vmem:[#allocation7] sm:$0xf] %vm601, %v1152
    %1158 = vrot.lane.b32.xlu0 %v1153, 8
    %v1159 = vpop.permute.xlu0 %1158
    %vm1161 = vcmask 126016
    %1162 = vst.msk [vmem:[#allocation7] sm:$0xf] %vm1161, %v1159
    %1164 = vrot.lane.b32.xlu0 %v1154, 16
    %v1165 = vpop.permute.xlu0 %1164
    %vm1167 = vcmask 191616
    %1168 = vst.msk [vmem:[#allocation7] sm:$0xf] %vm1167, %v1165
    %1170 = vrot.lane.b32.xlu0 %v1155, 24
    %v1171 = vpop.permute.xlu0 %1170
    %vm1173 = vcmask 257216
    %1174 = vst.msk [vmem:[#allocation7] sm:$0xf] %vm1173, %v1171
    %s1175 = scalar_lea.vmem [#allocation8], 8
    %v1176 = vld [vmem:[%s1175] sm:$0xff]
    %vm1177 = vcmp.gt.f32.partialorder %v1176, 0.0
    %v1178 = vsel %vm1177, 0.0, -1e+09
    %v1179 = vld [vmem:[%s662] sm:$0xf]
    %v1180 = vld [vmem:[%s662 + $0x4] sm:$0xf]
    %v1181 = vld [vmem:[%s662 + $0x8] sm:$0xf]
    %v1182 = vld [vmem:[%s662 + $0xc] sm:$0xf]
    %v1183 = vld [vmem:[%s667] sm:$0xf]
    %v1184 = vld [vmem:[%s667 + $0x4] sm:$0xf]
    %v1185 = vld [vmem:[%s667 + $0x8] sm:$0xf]
    %v1186 = vld [vmem:[%s667 + $0xc] sm:$0xf]
    %v1187 = vld [vmem:[%s672] sm:$0xf]
    %v1188 = vld [vmem:[%s672 + $0x4] sm:$0xf]
    %v1189 = vld [vmem:[%s672 + $0x8] sm:$0xf]
    %v1190 = vld [vmem:[%s672 + $0xc] sm:$0xf]
    %v1192 = vsel %vm734, %v1179, 0
    %v1195 = vsel %vm734, %v1183, 0
    %1197 = vmatprep.subr.bf16.mxu0 0
    %1198 = vmatpush1.bf16.xpose.msra.mxu0 %v1195
    %1199 = vmatprep.subr.bf16.mxu0 0
    %1200 = vmatpush1.bf16.xpose.msra.mxu0 0
    %1201 = vmatprep.subr.bf16.mxu0 0
    %1202 = vmatpush1.bf16.xpose.msra.mxu0 0
    %1203 = vmatprep.subr.bf16.mxu0 0
    %1204 = vmatpush1.bf16.xpose.msra.mxu0 0
    %1205 = vmatprep.subr.bf16.mxu0 0
    %1206 = vmatpush1.bf16.xpose.msra.mxu0 0
    %1207 = vmatprep.subr.bf16.mxu0 0
    %1208 = vmatpush1.bf16.xpose.msra.mxu0 0
    %1209 = vmatprep.subr.bf16.mxu0 0
    %1210 = vmatpush1.bf16.xpose.msra.mxu0 0
    %1211 = vmatprep.subr.bf16.mxu0 0
    %1212 = vmatpush1.bf16.xpose.msra.mxu0 0
    %1213 = vmatprep.subr.bf16.mxu0 0
    %1214 = vmatpush1.bf16.xpose.msra.mxu0 0
    %1215 = vmatprep.subr.bf16.mxu0 0
    %1216 = vmatpush1.bf16.xpose.msra.mxu0 0
    %1217 = vmatprep.subr.bf16.mxu0 0
    %1218 = vmatpush1.bf16.xpose.msra.mxu0 0
    %1219 = vmatprep.subr.bf16.mxu0 0
    %1220 = vmatpush1.bf16.xpose.msra.mxu0 0
    %1221 = vmatprep.subr.bf16.mxu0 0
    %1222 = vmatpush1.bf16.xpose.msra.mxu0 0
    %1223 = vmatprep.subr.bf16.mxu0 0
    %1224 = vmatpush1.bf16.xpose.msra.mxu0 0
    %1225 = vmatprep.subr.bf16.mxu0 0
    %1226 = vmatpush1.bf16.xpose.msra.mxu0 0
    %1227 = vmatprep.subr.bf16.mxu0 0
    %1228 = vmatpush1.bf16.xpose.msra.mxu0 0
    %1229 = vmatprep.mubr.bf16.mxu0 0
    %1230 = vmatmul.mubr.bf16.gmra.mrb[0].mxu0 %v1192
    %v1231 = vpop.f32.mrb[0].mxu0
    %v1232 = vadd.f32 %v1178, %v1231
    %v1233 = vpop.f32.mrb[0].mxu0
    %v1234 = vpop.f32.mrb[0].mxu0
    %v1235 = vpop.f32.mrb[0].mxu0
    %1236 = vdwg.mxu0
    %v1238 = vsel %vm734, %v1180, 0
    %v1241 = vsel %vm734, %v1184, 0
    %1243 = vmatprep.subr.bf16.mxu0 0
    %1244 = vmatpush1.bf16.xpose.msra.mxu0 %v1241
    %1245 = vmatprep.subr.bf16.mxu0 0
    %1246 = vmatpush1.bf16.xpose.msra.mxu0 0
    %1247 = vmatprep.subr.bf16.mxu0 0
    %1248 = vmatpush1.bf16.xpose.msra.mxu0 0
    %1249 = vmatprep.subr.bf16.mxu0 0
    %1250 = vmatpush1.bf16.xpose.msra.mxu0 0
    %1251 = vmatprep.subr.bf16.mxu0 0
    %1252 = vmatpush1.bf16.xpose.msra.mxu0 0
    %1253 = vmatprep.subr.bf16.mxu0 0
    %1254 = vmatpush1.bf16.xpose.msra.mxu0 0
    %1255 = vmatprep.subr.bf16.mxu0 0
    %1256 = vmatpush1.bf16.xpose.msra.mxu0 0
    %1257 = vmatprep.subr.bf16.mxu0 0
    %1258 = vmatpush1.bf16.xpose.msra.mxu0 0
    %1259 = vmatprep.subr.bf16.mxu0 0
    %1260 = vmatpush1.bf16.xpose.msra.mxu0 0
    %1261 = vmatprep.subr.bf16.mxu0 0
    %1262 = vmatpush1.bf16.xpose.msra.mxu0 0
    %1263 = vmatprep.subr.bf16.mxu0 0
    %1264 = vmatpush1.bf16.xpose.msra.mxu0 0
    %1265 = vmatprep.subr.bf16.mxu0 0
    %1266 = vmatpush1.bf16.xpose.msra.mxu0 0
    %1267 = vmatprep.subr.bf16.mxu0 0
    %1268 = vmatpush1.bf16.xpose.msra.mxu0 0
    %1269 = vmatprep.subr.bf16.mxu0 0
    %1270 = vmatpush1.bf16.xpose.msra.mxu0 0
    %1271 = vmatprep.subr.bf16.mxu0 0
    %1272 = vmatpush1.bf16.xpose.msra.mxu0 0
    %1273 = vmatprep.subr.bf16.mxu0 0
    %1274 = vmatpush1.bf16.xpose.msra.mxu0 0
    %1275 = vmatprep.mubr.bf16.mxu0 0
    %1276 = vmatmul.mubr.bf16.gmra.mrb[0].mxu0 %v1238
    %v1277 = vpop.f32.mrb[0].mxu0
    %v1278 = vadd.f32 %v1178, %v1277
    %v1279 = vpop.f32.mrb[0].mxu0
    %v1280 = vpop.f32.mrb[0].mxu0
    %v1281 = vpop.f32.mrb[0].mxu0
    %1282 = vdwg.mxu0
    %v1284 = vsel %vm734, %v1181, 0
    %v1287 = vsel %vm734, %v1185, 0
    %1289 = vmatprep.subr.bf16.mxu0 0
    %1290 = vmatpush1.bf16.xpose.msra.mxu0 %v1287
    %1291 = vmatprep.subr.bf16.mxu0 0
    %1292 = vmatpush1.bf16.xpose.msra.mxu0 0
    %1293 = vmatprep.subr.bf16.mxu0 0
    %1294 = vmatpush1.bf16.xpose.msra.mxu0 0
    %1295 = vmatprep.subr.bf16.mxu0 0
    %1296 = vmatpush1.bf16.xpose.msra.mxu0 0
    %1297 = vmatprep.subr.bf16.mxu0 0
    %1298 = vmatpush1.bf16.xpose.msra.mxu0 0
    %1299 = vmatprep.subr.bf16.mxu0 0
    %1300 = vmatpush1.bf16.xpose.msra.mxu0 0
    %1301 = vmatprep.subr.bf16.mxu0 0
    %1302 = vmatpush1.bf16.xpose.msra.mxu0 0
    %1303 = vmatprep.subr.bf16.mxu0 0
    %1304 = vmatpush1.bf16.xpose.msra.mxu0 0
    %1305 = vmatprep.subr.bf16.mxu0 0
    %1306 = vmatpush1.bf16.xpose.msra.mxu0 0
    %1307 = vmatprep.subr.bf16.mxu0 0
    %1308 = vmatpush1.bf16.xpose.msra.mxu0 0
    %1309 = vmatprep.subr.bf16.mxu0 0
    %1310 = vmatpush1.bf16.xpose.msra.mxu0 0
    %1311 = vmatprep.subr.bf16.mxu0 0
    %1312 = vmatpush1.bf16.xpose.msra.mxu0 0
    %1313 = vmatprep.subr.bf16.mxu0 0
    %1314 = vmatpush1.bf16.xpose.msra.mxu0 0
    %1315 = vmatprep.subr.bf16.mxu0 0
    %1316 = vmatpush1.bf16.xpose.msra.mxu0 0
    %1317 = vmatprep.subr.bf16.mxu0 0
    %1318 = vmatpush1.bf16.xpose.msra.mxu0 0
    %1319 = vmatprep.subr.bf16.mxu0 0
    %1320 = vmatpush1.bf16.xpose.msra.mxu0 0
    %1321 = vmatprep.mubr.bf16.mxu0 0
    %1322 = vmatmul.mubr.bf16.gmra.mrb[0].mxu0 %v1284
    %v1323 = vpop.f32.mrb[0].mxu0
    %v1324 = vadd.f32 %v1178, %v1323
    %v1325 = vpop.f32.mrb[0].mxu0
    %v1326 = vpop.f32.mrb[0].mxu0
    %v1327 = vpop.f32.mrb[0].mxu0
    %1328 = vdwg.mxu0
    %v1330 = vsel %vm734, %v1182, 0
    %v1333 = vsel %vm734, %v1186, 0
    %1335 = vmatprep.subr.bf16.mxu0 0
    %1336 = vmatpush1.bf16.xpose.msra.mxu0 %v1333
    %1337 = vmatprep.subr.bf16.mxu0 0
    %1338 = vmatpush1.bf16.xpose.msra.mxu0 0
    %1339 = vmatprep.subr.bf16.mxu0 0
    %1340 = vmatpush1.bf16.xpose.msra.mxu0 0
    %1341 = vmatprep.subr.bf16.mxu0 0
    %1342 = vmatpush1.bf16.xpose.msra.mxu0 0
    %1343 = vmatprep.subr.bf16.mxu0 0
    %1344 = vmatpush1.bf16.xpose.msra.mxu0 0
    %1345 = vmatprep.subr.bf16.mxu0 0
    %1346 = vmatpush1.bf16.xpose.msra.mxu0 0
    %1347 = vmatprep.subr.bf16.mxu0 0
    %1348 = vmatpush1.bf16.xpose.msra.mxu0 0
    %1349 = vmatprep.subr.bf16.mxu0 0
    %1350 = vmatpush1.bf16.xpose.msra.mxu0 0
    %1351 = vmatprep.subr.bf16.mxu0 0
    %1352 = vmatpush1.bf16.xpose.msra.mxu0 0
    %1353 = vmatprep.subr.bf16.mxu0 0
    %1354 = vmatpush1.bf16.xpose.msra.mxu0 0
    %1355 = vmatprep.subr.bf16.mxu0 0
    %1356 = vmatpush1.bf16.xpose.msra.mxu0 0
    %1357 = vmatprep.subr.bf16.mxu0 0
    %1358 = vmatpush1.bf16.xpose.msra.mxu0 0
    %1359 = vmatprep.subr.bf16.mxu0 0
    %1360 = vmatpush1.bf16.xpose.msra.mxu0 0
    %1361 = vmatprep.subr.bf16.mxu0 0
    %1362 = vmatpush1.bf16.xpose.msra.mxu0 0
    %1363 = vmatprep.subr.bf16.mxu0 0
    %1364 = vmatpush1.bf16.xpose.msra.mxu0 0
    %1365 = vmatprep.subr.bf16.mxu0 0
    %1366 = vmatpush1.bf16.xpose.msra.mxu0 0
    %1367 = vmatprep.mubr.bf16.mxu0 0
    %1368 = vmatmul.mubr.bf16.gmra.mrb[0].mxu0 %v1330
    %v1369 = vpop.f32.mrb[0].mxu0
    %v1370 = vadd.f32 %v1178, %v1369
    %v1371 = vpop.f32.mrb[0].mxu0
    %v1372 = vpop.f32.mrb[0].mxu0
    %v1373 = vpop.f32.mrb[0].mxu0
    %1374 = vdwg.mxu0
    %v1375 = vsel %vm734, %v1232, -inf
    %1376 = vmax.xlane.f32.xlu0 %v1375
    %v1377 = vpop.xlane.xlu0 %1376
    %v1378 = vsel %vm734, %v1278, -inf
    %1379 = vmax.xlane.f32.xlu0 %v1378
    %v1380 = vpop.xlane.xlu0 %1379
    %v1381 = vsel %vm734, %v1324, -inf
    %1382 = vmax.xlane.f32.xlu0 %v1381
    %v1383 = vpop.xlane.xlu0 %1382
    %v1384 = vsel %vm734, %v1370, -inf
    %1385 = vmax.xlane.f32.xlu0 %v1384
    %v1386 = vpop.xlane.xlu0 %1385
    %v1387 = vsub.f32 %v1232, %v1377
    %v1388 = vsub.f32 %v1278, %v1380
    %v1389 = vsub.f32 %v1324, %v1383
    %v1390 = vsub.f32 %v1370, %v1386
    %v1391 = vmul.f32 %v1387, 1.442695
    %v1392 = vpow.pop %v1391
    %v1393 = vmul.f32 %v1388, 1.442695
    %v1394 = vpow.pop %v1393
    %v1395 = vmul.f32 %v1389, 1.442695
    %v1396 = vpow.pop %v1395
    %v1397 = vmul.f32 %v1390, 1.442695
    %v1398 = vpow.pop %v1397
    %v1399 = vsel %vm734, %v1392, 0.0
    %1400 = vadd.xlane.f32.xlu0 %v1399
    %v1401 = vpop.xlane.xlu0 %1400
    %v1402 = vsel %vm734, %v1394, 0.0
    %1403 = vadd.xlane.f32.xlu0 %v1402
    %v1404 = vpop.xlane.xlu0 %1403
    %v1405 = vsel %vm734, %v1396, 0.0
    %1406 = vadd.xlane.f32.xlu0 %v1405
    %v1407 = vpop.xlane.xlu0 %1406
    %v1408 = vsel %vm734, %v1398, 0.0
    %1409 = vadd.xlane.f32.xlu0 %v1408
    %v1410 = vpop.xlane.xlu0 %1409
    %v1411 = vrcp.pop %v1401
    %v1412 = vrcp.pop %v1404
    %v1413 = vrcp.pop %v1407
    %v1414 = vrcp.pop %v1410
    %v1415 = vmul.f32 %v1392, %v1411
    %v1416 = vmul.f32 %v1394, %v1412
    %v1417 = vmul.f32 %v1396, %v1413
    %v1418 = vmul.f32 %v1398, %v1414
    %v1419 = vpack.c.bf16 %v1415, %v1415
    %v1420 = vpack.c.bf16 %v1416, %v1416
    %v1421 = vpack.c.bf16 %v1417, %v1417
    %v1422 = vpack.c.bf16 %v1418, %v1418
    %v1424 = vsel %vm734, %v1419, 0
    %v1427 = vsel %vm970, %v1187, 0
    %1429 = vmatprep.subr.bf16.mxu0 0
    %1430 = vmatpush1.bf16.msra.mxu0 %v1427
    %1431 = vmatprep.subr.bf16.mxu0 0
    %1432 = vmatpush1.bf16.msra.mxu0 0
    %1433 = vmatprep.subr.bf16.mxu0 0
    %1434 = vmatpush1.bf16.msra.mxu0 0
    %1435 = vmatprep.subr.bf16.mxu0 0
    %1436 = vmatpush1.bf16.msra.mxu0 0
    %1437 = vmatprep.subr.bf16.mxu0 0
    %1438 = vmatpush1.bf16.msra.mxu0 0
    %1439 = vmatprep.subr.bf16.mxu0 0
    %1440 = vmatpush1.bf16.msra.mxu0 0
    %1441 = vmatprep.subr.bf16.mxu0 0
    %1442 = vmatpush1.bf16.msra.mxu0 0
    %1443 = vmatprep.subr.bf16.mxu0 0
    %1444 = vmatpush1.bf16.msra.mxu0 0
    %1445 = vmatprep.subr.bf16.mxu0 0
    %1446 = vmatpush1.bf16.msra.mxu0 0
    %1447 = vmatprep.subr.bf16.mxu0 0
    %1448 = vmatpush1.bf16.msra.mxu0 0
    %1449 = vmatprep.subr.bf16.mxu0 0
    %1450 = vmatpush1.bf16.msra.mxu0 0
    %1451 = vmatprep.subr.bf16.mxu0 0
    %1452 = vmatpush1.bf16.msra.mxu0 0
    %1453 = vmatprep.subr.bf16.mxu0 0
    %1454 = vmatpush1.bf16.msra.mxu0 0
    %1455 = vmatprep.subr.bf16.mxu0 0
    %1456 = vmatpush1.bf16.msra.mxu0 0
    %1457 = vmatprep.subr.bf16.mxu0 0
    %1458 = vmatpush1.bf16.msra.mxu0 0
    %1459 = vmatprep.subr.bf16.mxu0 0
    %1460 = vmatpush1.bf16.msra.mxu0 0
    %1461 = vmatprep.mubr.bf16.mxu0 0
    %1462 = vmatmul.mubr.bf16.gmra.mrb[0].mxu0 %v1424
    %v1463 = vpop.f32.mrb[0].mxu0
    %v1464 = vadd.f32 0.0, %v1463
    %v1465 = vpop.f32.mrb[0].mxu0
    %v1466 = vpop.f32.mrb[0].mxu0
    %v1467 = vpop.f32.mrb[0].mxu0
    %1468 = vdwg.mxu0
    %v1470 = vsel %vm734, %v1420, 0
    %v1473 = vsel %vm970, %v1188, 0
    %1475 = vmatprep.subr.bf16.mxu0 0
    %1476 = vmatpush1.bf16.msra.mxu0 %v1473
    %1477 = vmatprep.subr.bf16.mxu0 0
    %1478 = vmatpush1.bf16.msra.mxu0 0
    %1479 = vmatprep.subr.bf16.mxu0 0
    %1480 = vmatpush1.bf16.msra.mxu0 0
    %1481 = vmatprep.subr.bf16.mxu0 0
    %1482 = vmatpush1.bf16.msra.mxu0 0
    %1483 = vmatprep.subr.bf16.mxu0 0
    %1484 = vmatpush1.bf16.msra.mxu0 0
    %1485 = vmatprep.subr.bf16.mxu0 0
    %1486 = vmatpush1.bf16.msra.mxu0 0
    %1487 = vmatprep.subr.bf16.mxu0 0
    %1488 = vmatpush1.bf16.msra.mxu0 0
    %1489 = vmatprep.subr.bf16.mxu0 0
    %1490 = vmatpush1.bf16.msra.mxu0 0
    %1491 = vmatprep.subr.bf16.mxu0 0
    %1492 = vmatpush1.bf16.msra.mxu0 0
    %1493 = vmatprep.subr.bf16.mxu0 0
    %1494 = vmatpush1.bf16.msra.mxu0 0
    %1495 = vmatprep.subr.bf16.mxu0 0
    %1496 = vmatpush1.bf16.msra.mxu0 0
    %1497 = vmatprep.subr.bf16.mxu0 0
    %1498 = vmatpush1.bf16.msra.mxu0 0
    %1499 = vmatprep.subr.bf16.mxu0 0
    %1500 = vmatpush1.bf16.msra.mxu0 0
    %1501 = vmatprep.subr.bf16.mxu0 0
    %1502 = vmatpush1.bf16.msra.mxu0 0
    %1503 = vmatprep.subr.bf16.mxu0 0
    %1504 = vmatpush1.bf16.msra.mxu0 0
    %1505 = vmatprep.subr.bf16.mxu0 0
    %1506 = vmatpush1.bf16.msra.mxu0 0
    %1507 = vmatprep.mubr.bf16.mxu0 0
    %1508 = vmatmul.mubr.bf16.gmra.mrb[0].mxu0 %v1470
    %v1509 = vpop.f32.mrb[0].mxu0
    %v1510 = vadd.f32 0.0, %v1509
    %v1511 = vpop.f32.mrb[0].mxu0
    %v1512 = vpop.f32.mrb[0].mxu0
    %v1513 = vpop.f32.mrb[0].mxu0
    %1514 = vdwg.mxu0
    %v1516 = vsel %vm734, %v1421, 0
    %v1519 = vsel %vm970, %v1189, 0
    %1521 = vmatprep.subr.bf16.mxu0 0
    %1522 = vmatpush1.bf16.msra.mxu0 %v1519
    %1523 = vmatprep.subr.bf16.mxu0 0
    %1524 = vmatpush1.bf16.msra.mxu0 0
    %1525 = vmatprep.subr.bf16.mxu0 0
    %1526 = vmatpush1.bf16.msra.mxu0 0
    %1527 = vmatprep.subr.bf16.mxu0 0
    %1528 = vmatpush1.bf16.msra.mxu0 0
    %1529 = vmatprep.subr.bf16.mxu0 0
    %1530 = vmatpush1.bf16.msra.mxu0 0
    %1531 = vmatprep.subr.bf16.mxu0 0
    %1532 = vmatpush1.bf16.msra.mxu0 0
    %1533 = vmatprep.subr.bf16.mxu0 0
    %1534 = vmatpush1.bf16.msra.mxu0 0
    %1535 = vmatprep.subr.bf16.mxu0 0
    %1536 = vmatpush1.bf16.msra.mxu0 0
    %1537 = vmatprep.subr.bf16.mxu0 0
    %1538 = vmatpush1.bf16.msra.mxu0 0
    %1539 = vmatprep.subr.bf16.mxu0 0
    %1540 = vmatpush1.bf16.msra.mxu0 0
    %1541 = vmatprep.subr.bf16.mxu0 0
    %1542 = vmatpush1.bf16.msra.mxu0 0
    %1543 = vmatprep.subr.bf16.mxu0 0
    %1544 = vmatpush1.bf16.msra.mxu0 0
    %1545 = vmatprep.subr.bf16.mxu0 0
    %1546 = vmatpush1.bf16.msra.mxu0 0
    %1547 = vmatprep.subr.bf16.mxu0 0
    %1548 = vmatpush1.bf16.msra.mxu0 0
    %1549 = vmatprep.subr.bf16.mxu0 0
    %1550 = vmatpush1.bf16.msra.mxu0 0
    %1551 = vmatprep.subr.bf16.mxu0 0
    %1552 = vmatpush1.bf16.msra.mxu0 0
    %1553 = vmatprep.mubr.bf16.mxu0 0
    %1554 = vmatmul.mubr.bf16.gmra.mrb[0].mxu0 %v1516
    %v1555 = vpop.f32.mrb[0].mxu0
    %v1556 = vadd.f32 0.0, %v1555
    %v1557 = vpop.f32.mrb[0].mxu0
    %v1558 = vpop.f32.mrb[0].mxu0
    %v1559 = vpop.f32.mrb[0].mxu0
    %1560 = vdwg.mxu0
    %v1562 = vsel %vm734, %v1422, 0
    %v1565 = vsel %vm970, %v1190, 0
    %1567 = vmatprep.subr.bf16.mxu0 0
    %1568 = vmatpush1.bf16.msra.mxu0 %v1565
    %1569 = vmatprep.subr.bf16.mxu0 0
    %1570 = vmatpush1.bf16.msra.mxu0 0
    %1571 = vmatprep.subr.bf16.mxu0 0
    %1572 = vmatpush1.bf16.msra.mxu0 0
    %1573 = vmatprep.subr.bf16.mxu0 0
    %1574 = vmatpush1.bf16.msra.mxu0 0
    %1575 = vmatprep.subr.bf16.mxu0 0
    %1576 = vmatpush1.bf16.msra.mxu0 0
    %1577 = vmatprep.subr.bf16.mxu0 0
    %1578 = vmatpush1.bf16.msra.mxu0 0
    %1579 = vmatprep.subr.bf16.mxu0 0
    %1580 = vmatpush1.bf16.msra.mxu0 0
    %1581 = vmatprep.subr.bf16.mxu0 0
    %1582 = vmatpush1.bf16.msra.mxu0 0
    %1583 = vmatprep.subr.bf16.mxu0 0
    %1584 = vmatpush1.bf16.msra.mxu0 0
    %1585 = vmatprep.subr.bf16.mxu0 0
    %1586 = vmatpush1.bf16.msra.mxu0 0
    %1587 = vmatprep.subr.bf16.mxu0 0
    %1588 = vmatpush1.bf16.msra.mxu0 0
    %1589 = vmatprep.subr.bf16.mxu0 0
    %1590 = vmatpush1.bf16.msra.mxu0 0
    %1591 = vmatprep.subr.bf16.mxu0 0
    %1592 = vmatpush1.bf16.msra.mxu0 0
    %1593 = vmatprep.subr.bf16.mxu0 0
    %1594 = vmatpush1.bf16.msra.mxu0 0
    %1595 = vmatprep.subr.bf16.mxu0 0
    %1596 = vmatpush1.bf16.msra.mxu0 0
    %1597 = vmatprep.subr.bf16.mxu0 0
    %1598 = vmatpush1.bf16.msra.mxu0 0
    %1599 = vmatprep.mubr.bf16.mxu0 0
    %1600 = vmatmul.mubr.bf16.gmra.mrb[0].mxu0 %v1562
    %v1601 = vpop.f32.mrb[0].mxu0
    %v1602 = vadd.f32 0.0, %v1601
    %v1603 = vpop.f32.mrb[0].mxu0
    %v1604 = vpop.f32.mrb[0].mxu0
    %v1605 = vpop.f32.mrb[0].mxu0
    %1606 = vdwg.mxu0
    %v1607 = vpack.c.bf16 %v1464, %v1464
    %v1608 = vpack.c.bf16 %v1510, %v1510
    %v1609 = vpack.c.bf16 %v1556, %v1556
    %v1610 = vpack.c.bf16 %v1602, %v1602
    %v1612 = vrot.slane %v1607, 4
    %vm1614 = vcmask 64516
    %1615 = vst.msk [vmem:[#allocation7] sm:$0xf0] %vm1614, %v1612
    %v1617 = vrot.slane %v1608, 4
    %1618 = vrot.lane.b32.xlu0 %v1617, 8
    %v1619 = vpop.permute.xlu0 %1618
    %vm1621 = vcmask 130116
    %1622 = vst.msk [vmem:[#allocation7] sm:$0xf0] %vm1621, %v1619
    %v1624 = vrot.slane %v1609, 4
    %1625 = vrot.lane.b32.xlu0 %v1624, 16
    %v1626 = vpop.permute.xlu0 %1625
    %vm1628 = vcmask 195716
    %1629 = vst.msk [vmem:[#allocation7] sm:$0xf0] %vm1628, %v1626
    %v1631 = vrot.slane %v1610, 4
    %1632 = vrot.lane.b32.xlu0 %v1631, 24
    %v1633 = vpop.permute.xlu0 %1632
    %vm1635 = vcmask 261316
    %1636 = vst.msk [vmem:[#allocation7] sm:$0xf0] %vm1635, %v1633
    %v1637 = vld [vmem:[#allocation7] sm:$0xff]
    %v1638 = vld [vmem:[#allocation28] sm:$0xf]
    %v1639 = vld [vmem:[#allocation28 + $0x4] sm:$0xf]
    %v1640 = vld [vmem:[#allocation28 + $0x8] sm:$0xf]
    %v1641 = vld [vmem:[#allocation28 + $0xc] sm:$0xf]
    %v1642 = vld [vmem:[#allocation29] sm:$0x1]
    %v1644 = vlaneseq
    %v1645 = vshrl.u32 %v1644, 7
    %v1646 = vsub.s32 0, %v1645
    %v1647 = vrot.slane %v1642, %v1646
    %v1653 = vunpack.c.l.b16 %v1638
    %v1654 = vunpack.c.l.b16 %v1639
    %v1655 = vunpack.c.l.b16 %v1640
    %v1656 = vunpack.c.l.b16 %v1641
    %v1657 = vpack.c.b16 %v1654, %v1653
    %v1658 = vpack.c.b16 %v1656, %v1655
    %v1662 = vsel %vm354, %v1637, 0
    %1664 = vmatprep.subr.bf16.mxu0 0
    %1665 = vmatpush1.bf16.msra.mxu0 %v1657
    %1666 = vmatprep.subr.bf16.mxu0 0
    %1667 = vmatpush1.bf16.msra.mxu0 %v1658
    %1668 = vmatprep.subr.bf16.mxu0 0
    %1669 = vmatpush1.bf16.msra.mxu0 0
    %1670 = vmatprep.subr.bf16.mxu0 0
    %1671 = vmatpush1.bf16.msra.mxu0 0
    %1672 = vmatprep.subr.bf16.mxu0 0
    %1673 = vmatpush1.bf16.msra.mxu0 0
    %1674 = vmatprep.subr.bf16.mxu0 0
    %1675 = vmatpush1.bf16.msra.mxu0 0
    %1676 = vmatprep.subr.bf16.mxu0 0
    %1677 = vmatpush1.bf16.msra.mxu0 0
    %1678 = vmatprep.subr.bf16.mxu0 0
    %1679 = vmatpush1.bf16.msra.mxu0 0
    %1680 = vmatprep.subr.bf16.mxu0 0
    %1681 = vmatpush1.bf16.msra.mxu0 0
    %1682 = vmatprep.subr.bf16.mxu0 0
    %1683 = vmatpush1.bf16.msra.mxu0 0
    %1684 = vmatprep.subr.bf16.mxu0 0
    %1685 = vmatpush1.bf16.msra.mxu0 0
    %1686 = vmatprep.subr.bf16.mxu0 0
    %1687 = vmatpush1.bf16.msra.mxu0 0
    %1688 = vmatprep.subr.bf16.mxu0 0
    %1689 = vmatpush1.bf16.msra.mxu0 0
    %1690 = vmatprep.subr.bf16.mxu0 0
    %1691 = vmatpush1.bf16.msra.mxu0 0
    %1692 = vmatprep.subr.bf16.mxu0 0
    %1693 = vmatpush1.bf16.msra.mxu0 0
    %1694 = vmatprep.subr.bf16.mxu0 0
    %1695 = vmatpush1.bf16.msra.mxu0 0
    %1696 = vmatprep.mubr.bf16.mxu0 0
    %1697 = vmatmul.mubr.bf16.gmra.mrb[0].mxu0 %v1662
    %v1698 = vpop.f32.mrb[0].mxu0
    %v1699 = vadd.f32 %v1647, %v1698
    %v1700 = vpop.f32.mrb[0].mxu0
    %v1701 = vpop.f32.mrb[0].mxu0
    %v1702 = vadd.f32 %v1647, %v1701
    %v1703 = vpop.f32.mrb[0].mxu0
    %1704 = vdwg.mxu0
    %v1705 = vadd.f32 %v348, %v1699
    %v1706 = vadd.f32 %v349, %v1702
    %v1707 = vsel %vm354, %v1705, 0.0
    %1708 = vadd.xlane.f32.xlu0 %v1707
    %v1709 = vpop.xlane.xlu0 %1708
    %v1710 = vsel %vm354, %v1706, 0.0
    %1711 = vadd.xlane.f32.xlu0 %v1710
    %v1712 = vpop.xlane.xlu0 %1711
    %v1713 = vmul.f32 %v1709, %v361
    %v1714 = vmul.f32 %v1712, %v361
    %v1715 = vsub.f32 %v1705, %v1713
    %v1716 = vsub.f32 %v1706, %v1714
    %v1717 = vmul.f32 %v1715, %v1715
    %v1718 = vmul.f32 %v1716, %v1716
    %v1719 = vsel %vm354, %v1717, 0.0
    %1720 = vadd.xlane.f32.xlu0 %v1719
    %v1721 = vpop.xlane.xlu0 %1720
    %v1722 = vsel %vm354, %v1718, 0.0
    %1723 = vadd.xlane.f32.xlu0 %v1722
    %v1724 = vpop.xlane.xlu0 %1723
    %v1725 = vmul.f32 %v1721, %v361
    %v1726 = vmul.f32 %v1724, %v361
    %v1727 = vadd.f32 %v1725, 1e-05
    %v1728 = vadd.f32 %v1726, 1e-05
    %v1729 = vrsqrt.pop %v1727
    %v1730 = vrsqrt.pop %v1728
    %v1731 = vmul.f32 %v1715, %v1729
    %v1732 = vmul.f32 %v1716, %v1730
    %v1733 = vld [vmem:[#allocation16] sm:$0x1]
    %v1735 = vlaneseq
    %v1736 = vshrl.u32 %v1735, 7
    %v1737 = vsub.s32 0, %v1736
    %v1738 = vrot.slane %v1733, %v1737
    %v1740 = vmul.f32 %v1731, %v1738
    %v1741 = vmul.f32 %v1732, %v1738
    %v1742 = vld [vmem:[#allocation17] sm:$0x1]
    %v1744 = vlaneseq
    %v1745 = vshrl.u32 %v1744, 7
    %v1746 = vsub.s32 0, %v1745
    %v1747 = vrot.slane %v1742, %v1746
    %v1749 = vadd.f32 %v1740, %v1747
    %v1750 = vadd.f32 %v1741, %v1747
    %v1751 = vpack.c.bf16 %v1750, %v1749
    %v1752 = vld [vmem:[%s37] sm:$0xf]
    %v1753 = vld [vmem:[%s37 + $0x4] sm:$0xf]
    %v1754 = vld [vmem:[%s37 + $0x8] sm:$0xf]
    %v1755 = vld [vmem:[%s37 + $0xc] sm:$0xf]
    %v1756 = vld [vmem:[%s39] sm:$0x1]
    %v1758 = vlaneseq
    %v1759 = vshrl.u32 %v1758, 7
    %v1760 = vsub.s32 0, %v1759
    %v1761 = vrot.slane %v1756, %v1760
    %v1767 = vunpack.c.l.b16 %v1752
    %v1768 = vunpack.c.l.b16 %v1753
    %v1769 = vunpack.c.l.b16 %v1754
    %v1770 = vunpack.c.l.b16 %v1755
    %v1771 = vpack.c.b16 %v1768, %v1767
    %v1772 = vpack.c.b16 %v1770, %v1769
    %v1776 = vsel %vm354, %v1751, 0
    %1778 = vmatprep.subr.bf16.mxu0 0
    %1779 = vmatpush1.bf16.msra.mxu0 %v1771
    %1780 = vmatprep.subr.bf16.mxu0 0
    %1781 = vmatpush1.bf16.msra.mxu0 %v1772
    %1782 = vmatprep.subr.bf16.mxu0 0
    %1783 = vmatpush1.bf16.msra.mxu0 0
    %1784 = vmatprep.subr.bf16.mxu0 0
    %1785 = vmatpush1.bf16.msra.mxu0 0
    %1786 = vmatprep.subr.bf16.mxu0 0
    %1787 = vmatpush1.bf16.msra.mxu0 0
    %1788 = vmatprep.subr.bf16.mxu0 0
    %1789 = vmatpush1.bf16.msra.mxu0 0
    %1790 = vmatprep.subr.bf16.mxu0 0
    %1791 = vmatpush1.bf16.msra.mxu0 0
    %1792 = vmatprep.subr.bf16.mxu0 0
    %1793 = vmatpush1.bf16.msra.mxu0 0
    %1794 = vmatprep.subr.bf16.mxu0 0
    %1795 = vmatpush1.bf16.msra.mxu0 0
    %1796 = vmatprep.subr.bf16.mxu0 0
    %1797 = vmatpush1.bf16.msra.mxu0 0
    %1798 = vmatprep.subr.bf16.mxu0 0
    %1799 = vmatpush1.bf16.msra.mxu0 0
    %1800 = vmatprep.subr.bf16.mxu0 0
    %1801 = vmatpush1.bf16.msra.mxu0 0
    %1802 = vmatprep.subr.bf16.mxu0 0
    %1803 = vmatpush1.bf16.msra.mxu0 0
    %1804 = vmatprep.subr.bf16.mxu0 0
    %1805 = vmatpush1.bf16.msra.mxu0 0
    %1806 = vmatprep.subr.bf16.mxu0 0
    %1807 = vmatpush1.bf16.msra.mxu0 0
    %1808 = vmatprep.subr.bf16.mxu0 0
    %1809 = vmatpush1.bf16.msra.mxu0 0
    %1810 = vmatprep.mubr.bf16.mxu0 0
    %1811 = vmatmul.mubr.bf16.gmra.mrb[0].mxu0 %v1776
    %v1812 = vpop.f32.mrb[0].mxu0
    %v1813 = vadd.f32 %v1761, %v1812
    %v1814 = vpop.f32.mrb[0].mxu0
    %v1815 = vpop.f32.mrb[0].mxu0
    %v1816 = vadd.f32 %v1761, %v1815
    %v1817 = vpop.f32.mrb[0].mxu0
    %1818 = vdwg.mxu0
    %v1819 = vmul.f32 %v1813, 0.35355338
    %v1820 = vmul.f32 %v1816, 0.35355338
    %v1821 = vpack.c.bf16 %v351, %v350
    %v1822 = vpack.c.bf16 %v353, %v352
    %v1823 = vld [vmem:[#allocation31] sm:$0xf]
    %v1824 = vld [vmem:[#allocation31 + $0x4] sm:$0xf]
    %v1825 = vld [vmem:[#allocation31 + $0x8] sm:$0xf]
    %v1826 = vld [vmem:[#allocation31 + $0xc] sm:$0xf]
    %v1827 = vld [vmem:[%s43] sm:$0x1]
    %v1829 = vlaneseq
    %v1830 = vshrl.u32 %v1829, 7
    %v1831 = vsub.s32 0, %v1830
    %v1832 = vrot.slane %v1827, %v1831
    %v1838 = vunpack.c.l.b16 %v1823
    %v1839 = vunpack.c.l.b16 %v1824
    %v1840 = vunpack.c.l.b16 %v1825
    %v1841 = vunpack.c.l.b16 %v1826
    %v1842 = vpack.c.b16 %v1839, %v1838
    %v1843 = vpack.c.b16 %v1841, %v1840
    %v1847 = vsel %vm354, %v1821, 0
    %v1850 = vsel %vm354, %v1822, 0
    %1852 = vmatprep.subr.bf16.mxu0 0
    %1853 = vmatpush1.bf16.msra.mxu0 %v1842
    %1854 = vmatprep.subr.bf16.mxu0 0
    %1855 = vmatpush1.bf16.msra.mxu0 %v1843
    %1856 = vmatprep.subr.bf16.mxu0 0
    %1857 = vmatpush1.bf16.msra.mxu0 0
    %1858 = vmatprep.subr.bf16.mxu0 0
    %1859 = vmatpush1.bf16.msra.mxu0 0
    %1860 = vmatprep.subr.bf16.mxu0 0
    %1861 = vmatpush1.bf16.msra.mxu0 0
    %1862 = vmatprep.subr.bf16.mxu0 0
    %1863 = vmatpush1.bf16.msra.mxu0 0
    %1864 = vmatprep.subr.bf16.mxu0 0
    %1865 = vmatpush1.bf16.msra.mxu0 0
    %1866 = vmatprep.subr.bf16.mxu0 0
    %1867 = vmatpush1.bf16.msra.mxu0 0
    %1868 = vmatprep.subr.bf16.mxu0 0
    %1869 = vmatpush1.bf16.msra.mxu0 0
    %1870 = vmatprep.subr.bf16.mxu0 0
    %1871 = vmatpush1.bf16.msra.mxu0 0
    %1872 = vmatprep.subr.bf16.mxu0 0
    %1873 = vmatpush1.bf16.msra.mxu0 0
    %1874 = vmatprep.subr.bf16.mxu0 0
    %1875 = vmatpush1.bf16.msra.mxu0 0
    %1876 = vmatprep.subr.bf16.mxu0 0
    %1877 = vmatpush1.bf16.msra.mxu0 0
    %1878 = vmatprep.subr.bf16.mxu0 0
    %1879 = vmatpush1.bf16.msra.mxu0 0
    %1880 = vmatprep.subr.bf16.mxu0 0
    %1881 = vmatpush1.bf16.msra.mxu0 0
    %1882 = vmatprep.subr.bf16.mxu0 0
    %1883 = vmatpush1.bf16.msra.mxu0 0
    %1884 = vmatprep.mubr.bf16.mxu0 0
    %1885 = vmatmul.mubr.bf16.gmra.mrb[0].mxu0 %v1847
    %v1886 = vpop.f32.mrb[0].mxu0
    %v1887 = vadd.f32 %v1832, %v1886
    %v1888 = vpop.f32.mrb[0].mxu0
    %v1889 = vpop.f32.mrb[0].mxu0
    %v1890 = vadd.f32 %v1832, %v1889
    %v1891 = vpop.f32.mrb[0].mxu0
    %1892 = vmatprep.mubr.bf16.mxu0 0
    %1893 = vmatmul.mubr.bf16.gmra.mrb[0].mxu0 %v1850
    %v1894 = vpop.f32.mrb[0].mxu0
    %v1895 = vadd.f32 %v1832, %v1894
    %v1896 = vpop.f32.mrb[0].mxu0
    %v1897 = vpop.f32.mrb[0].mxu0
    %v1898 = vadd.f32 %v1832, %v1897
    %v1899 = vpop.f32.mrb[0].mxu0
    %1900 = vdwg.mxu0
    %v1901 = vld [vmem:[%s45] sm:$0xf]
    %v1902 = vld [vmem:[%s45 + $0x4] sm:$0xf]
    %v1903 = vld [vmem:[%s45 + $0x8] sm:$0xf]
    %v1904 = vld [vmem:[%s45 + $0xc] sm:$0xf]
    %v1905 = vld [vmem:[#allocation32] sm:$0x1]
    %v1907 = vlaneseq
    %v1908 = vshrl.u32 %v1907, 7
    %v1909 = vsub.s32 0, %v1908
    %v1910 = vrot.slane %v1905, %v1909
    %v1916 = vunpack.c.l.b16 %v1901
    %v1917 = vunpack.c.l.b16 %v1902
    %v1918 = vunpack.c.l.b16 %v1903
    %v1919 = vunpack.c.l.b16 %v1904
    %v1920 = vpack.c.b16 %v1917, %v1916
    %v1921 = vpack.c.b16 %v1919, %v1918
    %1924 = vmatprep.subr.bf16.mxu0 0
    %1925 = vmatpush1.bf16.msra.mxu0 %v1920
    %1926 = vmatprep.subr.bf16.mxu0 0
    %1927 = vmatpush1.bf16.msra.mxu0 %v1921
    %1928 = vmatprep.subr.bf16.mxu0 0
    %1929 = vmatpush1.bf16.msra.mxu0 0
    %1930 = vmatprep.subr.bf16.mxu0 0
    %1931 = vmatpush1.bf16.msra.mxu0 0
    %1932 = vmatprep.subr.bf16.mxu0 0
    %1933 = vmatpush1.bf16.msra.mxu0 0
    %1934 = vmatprep.subr.bf16.mxu0 0
    %1935 = vmatpush1.bf16.msra.mxu0 0
    %1936 = vmatprep.subr.bf16.mxu0 0
    %1937 = vmatpush1.bf16.msra.mxu0 0
    %1938 = vmatprep.subr.bf16.mxu0 0
    %1939 = vmatpush1.bf16.msra.mxu0 0
    %1940 = vmatprep.subr.bf16.mxu0 0
    %1941 = vmatpush1.bf16.msra.mxu0 0
    %1942 = vmatprep.subr.bf16.mxu0 0
    %1943 = vmatpush1.bf16.msra.mxu0 0
    %1944 = vmatprep.subr.bf16.mxu0 0
    %1945 = vmatpush1.bf16.msra.mxu0 0
    %1946 = vmatprep.subr.bf16.mxu0 0
    %1947 = vmatpush1.bf16.msra.mxu0 0
    %1948 = vmatprep.subr.bf16.mxu0 0
    %1949 = vmatpush1.bf16.msra.mxu0 0
    %1950 = vmatprep.subr.bf16.mxu0 0
    %1951 = vmatpush1.bf16.msra.mxu0 0
    %1952 = vmatprep.subr.bf16.mxu0 0
    %1953 = vmatpush1.bf16.msra.mxu0 0
    %1954 = vmatprep.subr.bf16.mxu0 0
    %1955 = vmatpush1.bf16.msra.mxu0 0
    %1956 = vmatprep.mubr.bf16.mxu0 0
    %1957 = vmatmul.mubr.bf16.gmra.mrb[0].mxu0 %v1847
    %v1958 = vpop.f32.mrb[0].mxu0
    %v1959 = vadd.f32 %v1910, %v1958
    %v1960 = vpop.f32.mrb[0].mxu0
    %v1961 = vpop.f32.mrb[0].mxu0
    %v1962 = vadd.f32 %v1910, %v1961
    %v1963 = vpop.f32.mrb[0].mxu0
    %1964 = vmatprep.mubr.bf16.mxu0 0
    %1965 = vmatmul.mubr.bf16.gmra.mrb[0].mxu0 %v1850
    %v1966 = vpop.f32.mrb[0].mxu0
    %v1967 = vadd.f32 %v1910, %v1966
    %v1968 = vpop.f32.mrb[0].mxu0
    %v1969 = vpop.f32.mrb[0].mxu0
    %v1970 = vadd.f32 %v1910, %v1969
    %v1971 = vpop.f32.mrb[0].mxu0
    %1972 = vdwg.mxu0
    %v1973 = vpack.c.bf16 %v1820, %v1819
    %v1974 = vpack.c.bf16 %v1890, %v1887
    %v1975 = vpack.c.bf16 %v1898, %v1895
    %v1976 = vpack.c.bf16 %v1962, %v1959
    %v1977 = vpack.c.bf16 %v1970, %v1967
    %1978 = vst.msk [vmem:[#allocation2] sm:$0xf] %vm601, %v1973
    %1979 = vst.msk [vmem:[#allocation5] sm:$0xff] %vm734, %v1974
    %1980 = vst.msk [vmem:[#allocation6] sm:$0xff] %vm734, %v1976
    %v1982 = vunpack.c.l.b16 %v1973
    %v1983 = vpack.c.b16 %v1982, %v1982
    %1984 = vrot.lane.b32.xlu0 %v1983, 120
    %v1985 = vpop.permute.xlu0 %1984
    %1987 = vst.msk [vmem:[%s611] sm:$0xf] %vm601, %v1985
    %1989 = vrot.lane.b32.xlu0 %v1974, 120
    %v1990 = vpop.permute.xlu0 %1989
    %s1992 = scalar_lea.vmem [#allocation5], 8
    %1993 = vst.msk [vmem:[%s1992] sm:$0xff] %vm734, %v1990
    %1995 = vrot.lane.b32.xlu0 %v1976, 120
    %v1996 = vpop.permute.xlu0 %1995
    %s1998 = scalar_lea.vmem [#allocation6], 8
    %1999 = vst.msk [vmem:[%s1998] sm:$0xff] %vm734, %v1996
    %2000 = vrot.lane.b32.xlu0 %v1983, 112
    %v2001 = vpop.permute.xlu0 %2000
    %2003 = vst.msk [vmem:[%s632] sm:$0xf] %vm601, %v2001
    %2004 = vrot.lane.b32.xlu0 %v1974, 112
    %v2005 = vpop.permute.xlu0 %2004
    %s2007 = scalar_lea.vmem [#allocation5], 16
    %2008 = vst.msk [vmem:[%s2007] sm:$0xff] %vm734, %v2005
    %2009 = vrot.lane.b32.xlu0 %v1976, 112
    %v2010 = vpop.permute.xlu0 %2009
    %s2012 = scalar_lea.vmem [#allocation6], 16
    %2013 = vst.msk [vmem:[%s2012] sm:$0xff] %vm734, %v2010
    %2014 = vrot.lane.b32.xlu0 %v1983, 104
    %v2015 = vpop.permute.xlu0 %2014
    %2017 = vst.msk [vmem:[%s647] sm:$0xf] %vm601, %v2015
    %2018 = vrot.lane.b32.xlu0 %v1974, 104
    %v2019 = vpop.permute.xlu0 %2018
    %s2021 = scalar_lea.vmem [#allocation5], 24
    %2022 = vst.msk [vmem:[%s2021] sm:$0xff] %vm734, %v2019
    %2023 = vrot.lane.b32.xlu0 %v1976, 104
    %v2024 = vpop.permute.xlu0 %2023
    %s2026 = scalar_lea.vmem [#allocation6], 24
    %2027 = vst.msk [vmem:[%s2026] sm:$0xff] %vm734, %v2024
    %v2028 = vunpack.c.h.b16 %v1973
    %v2029 = vpack.c.b16 %v2028, %v2028
    %2031 = vst.msk [vmem:[%s662] sm:$0xf] %vm601, %v2029
    %s2032 = scalar_lea.vmem [#allocation5], 32
    %2033 = vst.msk [vmem:[%s2032] sm:$0xff] %vm734, %v1975
    %s2034 = scalar_lea.vmem [#allocation6], 32
    %2035 = vst.msk [vmem:[%s2034] sm:$0xff] %vm734, %v1977
    %2036 = vrot.lane.b32.xlu0 %v2029, 120
    %v2037 = vpop.permute.xlu0 %2036
    %2039 = vst.msk [vmem:[%s677] sm:$0xf] %vm601, %v2037
    %2041 = vrot.lane.b32.xlu0 %v1975, 120
    %v2042 = vpop.permute.xlu0 %2041
    %s2044 = scalar_lea.vmem [#allocation5], 40
    %2045 = vst.msk [vmem:[%s2044] sm:$0xff] %vm734, %v2042
    %2047 = vrot.lane.b32.xlu0 %v1977, 120
    %v2048 = vpop.permute.xlu0 %2047
    %s2050 = scalar_lea.vmem [#allocation6], 40
    %2051 = vst.msk [vmem:[%s2050] sm:$0xff] %vm734, %v2048
    %2052 = vrot.lane.b32.xlu0 %v2029, 112
    %v2053 = vpop.permute.xlu0 %2052
    %2055 = vst.msk [vmem:[%s692] sm:$0xf] %vm601, %v2053
    %2056 = vrot.lane.b32.xlu0 %v1975, 112
    %v2057 = vpop.permute.xlu0 %2056
    %s2059 = scalar_lea.vmem [#allocation5], 48
    %2060 = vst.msk [vmem:[%s2059] sm:$0xff] %vm734, %v2057
    %2061 = vrot.lane.b32.xlu0 %v1977, 112
    %v2062 = vpop.permute.xlu0 %2061
    %s2064 = scalar_lea.vmem [#allocation6], 48
    %2065 = vst.msk [vmem:[%s2064] sm:$0xff] %vm734, %v2062
    %2066 = vrot.lane.b32.xlu0 %v2029, 104
    %v2067 = vpop.permute.xlu0 %2066
    %2069 = vst.msk [vmem:[%s707] sm:$0xf] %vm601, %v2067
    %2070 = vrot.lane.b32.xlu0 %v1975, 104
    %v2071 = vpop.permute.xlu0 %2070
    %s2073 = scalar_lea.vmem [#allocation5], 56
    %2074 = vst.msk [vmem:[%s2073] sm:$0xff] %vm734, %v2071
    %2075 = vrot.lane.b32.xlu0 %v1977, 104
    %v2076 = vpop.permute.xlu0 %2075
    %s2078 = scalar_lea.vmem [#allocation6], 56
    %2079 = vst.msk [vmem:[%s2078] sm:$0xff] %vm734, %v2076
    %v2080 = vld [vmem:[#allocation11] sm:$0xff]
    %vm2081 = vcmp.gt.f32.partialorder %v2080, 0.0
    %v2082 = vsel %vm2081, 0.0, -1e+09
    %v2083 = vld [vmem:[#allocation2] sm:$0xf]
    %v2084 = vld [vmem:[#allocation2 + $0x4] sm:$0xf]
    %v2085 = vld [vmem:[#allocation2 + $0x8] sm:$0xf]
    %v2086 = vld [vmem:[#allocation2 + $0xc] sm:$0xf]
    %v2087 = vld [vmem:[#allocation5] sm:$0xff]
    %v2088 = vld [vmem:[#allocation5 + $0x8] sm:$0xff]
    %v2089 = vld [vmem:[#allocation5 + $0x10] sm:$0xff]
    %v2090 = vld [vmem:[#allocation5 + $0x18] sm:$0xff]
    %v2091 = vld [vmem:[#allocation6] sm:$0xff]
    %v2092 = vld [vmem:[#allocation6 + $0x8] sm:$0xff]
    %v2093 = vld [vmem:[#allocation6 + $0x10] sm:$0xff]
    %v2094 = vld [vmem:[#allocation6 + $0x18] sm:$0xff]
    %v2096 = vsel %vm734, %v2083, 0
    %v2099 = vsel %vm734, %v2087, 0
    %2101 = vmatprep.subr.bf16.mxu0 0
    %2102 = vmatpush1.bf16.xpose.msra.mxu0 %v2099
    %2103 = vmatprep.subr.bf16.mxu0 0
    %2104 = vmatpush1.bf16.xpose.msra.mxu0 0
    %2105 = vmatprep.subr.bf16.mxu0 0
    %2106 = vmatpush1.bf16.xpose.msra.mxu0 0
    %2107 = vmatprep.subr.bf16.mxu0 0
    %2108 = vmatpush1.bf16.xpose.msra.mxu0 0
    %2109 = vmatprep.subr.bf16.mxu0 0
    %2110 = vmatpush1.bf16.xpose.msra.mxu0 0
    %2111 = vmatprep.subr.bf16.mxu0 0
    %2112 = vmatpush1.bf16.xpose.msra.mxu0 0
    %2113 = vmatprep.subr.bf16.mxu0 0
    %2114 = vmatpush1.bf16.xpose.msra.mxu0 0
    %2115 = vmatprep.subr.bf16.mxu0 0
    %2116 = vmatpush1.bf16.xpose.msra.mxu0 0
    %2117 = vmatprep.subr.bf16.mxu0 0
    %2118 = vmatpush1.bf16.xpose.msra.mxu0 0
    %2119 = vmatprep.subr.bf16.mxu0 0
    %2120 = vmatpush1.bf16.xpose.msra.mxu0 0
    %2121 = vmatprep.subr.bf16.mxu0 0
    %2122 = vmatpush1.bf16.xpose.msra.mxu0 0
    %2123 = vmatprep.subr.bf16.mxu0 0
    %2124 = vmatpush1.bf16.xpose.msra.mxu0 0
    %2125 = vmatprep.subr.bf16.mxu0 0
    %2126 = vmatpush1.bf16.xpose.msra.mxu0 0
    %2127 = vmatprep.subr.bf16.mxu0 0
    %2128 = vmatpush1.bf16.xpose.msra.mxu0 0
    %2129 = vmatprep.subr.bf16.mxu0 0
    %2130 = vmatpush1.bf16.xpose.msra.mxu0 0
    %2131 = vmatprep.subr.bf16.mxu0 0
    %2132 = vmatpush1.bf16.xpose.msra.mxu0 0
    %2133 = vmatprep.mubr.bf16.mxu0 0
    %2134 = vmatmul.mubr.bf16.gmra.mrb[0].mxu0 %v2096
    %v2135 = vpop.f32.mrb[0].mxu0
    %v2136 = vadd.f32 %v2082, %v2135
    %v2137 = vpop.f32.mrb[0].mxu0
    %v2138 = vpop.f32.mrb[0].mxu0
    %v2139 = vpop.f32.mrb[0].mxu0
    %2140 = vdwg.mxu0
    %v2142 = vsel %vm734, %v2084, 0
    %v2145 = vsel %vm734, %v2088, 0
    %2147 = vmatprep.subr.bf16.mxu0 0
    %2148 = vmatpush1.bf16.xpose.msra.mxu0 %v2145
    %2149 = vmatprep.subr.bf16.mxu0 0
    %2150 = vmatpush1.bf16.xpose.msra.mxu0 0
    %2151 = vmatprep.subr.bf16.mxu0 0
    %2152 = vmatpush1.bf16.xpose.msra.mxu0 0
    %2153 = vmatprep.subr.bf16.mxu0 0
    %2154 = vmatpush1.bf16.xpose.msra.mxu0 0
    %2155 = vmatprep.subr.bf16.mxu0 0
    %2156 = vmatpush1.bf16.xpose.msra.mxu0 0
    %2157 = vmatprep.subr.bf16.mxu0 0
    %2158 = vmatpush1.bf16.xpose.msra.mxu0 0
    %2159 = vmatprep.subr.bf16.mxu0 0
    %2160 = vmatpush1.bf16.xpose.msra.mxu0 0
    %2161 = vmatprep.subr.bf16.mxu0 0
    %2162 = vmatpush1.bf16.xpose.msra.mxu0 0
    %2163 = vmatprep.subr.bf16.mxu0 0
    %2164 = vmatpush1.bf16.xpose.msra.mxu0 0
    %2165 = vmatprep.subr.bf16.mxu0 0
    %2166 = vmatpush1.bf16.xpose.msra.mxu0 0
    %2167 = vmatprep.subr.bf16.mxu0 0
    %2168 = vmatpush1.bf16.xpose.msra.mxu0 0
    %2169 = vmatprep.subr.bf16.mxu0 0
    %2170 = vmatpush1.bf16.xpose.msra.mxu0 0
    %2171 = vmatprep.subr.bf16.mxu0 0
    %2172 = vmatpush1.bf16.xpose.msra.mxu0 0
    %2173 = vmatprep.subr.bf16.mxu0 0
    %2174 = vmatpush1.bf16.xpose.msra.mxu0 0
    %2175 = vmatprep.subr.bf16.mxu0 0
    %2176 = vmatpush1.bf16.xpose.msra.mxu0 0
    %2177 = vmatprep.subr.bf16.mxu0 0
    %2178 = vmatpush1.bf16.xpose.msra.mxu0 0
    %2179 = vmatprep.mubr.bf16.mxu0 0
    %2180 = vmatmul.mubr.bf16.gmra.mrb[0].mxu0 %v2142
    %v2181 = vpop.f32.mrb[0].mxu0
    %v2182 = vadd.f32 %v2082, %v2181
    %v2183 = vpop.f32.mrb[0].mxu0
    %v2184 = vpop.f32.mrb[0].mxu0
    %v2185 = vpop.f32.mrb[0].mxu0
    %2186 = vdwg.mxu0
    %v2188 = vsel %vm734, %v2085, 0
    %v2191 = vsel %vm734, %v2089, 0
    %2193 = vmatprep.subr.bf16.mxu0 0
    %2194 = vmatpush1.bf16.xpose.msra.mxu0 %v2191
    %2195 = vmatprep.subr.bf16.mxu0 0
    %2196 = vmatpush1.bf16.xpose.msra.mxu0 0
    %2197 = vmatprep.subr.bf16.mxu0 0
    %2198 = vmatpush1.bf16.xpose.msra.mxu0 0
    %2199 = vmatprep.subr.bf16.mxu0 0
    %2200 = vmatpush1.bf16.xpose.msra.mxu0 0
    %2201 = vmatprep.subr.bf16.mxu0 0
    %2202 = vmatpush1.bf16.xpose.msra.mxu0 0
    %2203 = vmatprep.subr.bf16.mxu0 0
    %2204 = vmatpush1.bf16.xpose.msra.mxu0 0
    %2205 = vmatprep.subr.bf16.mxu0 0
    %2206 = vmatpush1.bf16.xpose.msra.mxu0 0
    %2207 = vmatprep.subr.bf16.mxu0 0
    %2208 = vmatpush1.bf16.xpose.msra.mxu0 0
    %2209 = vmatprep.subr.bf16.mxu0 0
    %2210 = vmatpush1.bf16.xpose.msra.mxu0 0
    %2211 = vmatprep.subr.bf16.mxu0 0
    %2212 = vmatpush1.bf16.xpose.msra.mxu0 0
    %2213 = vmatprep.subr.bf16.mxu0 0
    %2214 = vmatpush1.bf16.xpose.msra.mxu0 0
    %2215 = vmatprep.subr.bf16.mxu0 0
    %2216 = vmatpush1.bf16.xpose.msra.mxu0 0
    %2217 = vmatprep.subr.bf16.mxu0 0
    %2218 = vmatpush1.bf16.xpose.msra.mxu0 0
    %2219 = vmatprep.subr.bf16.mxu0 0
    %2220 = vmatpush1.bf16.xpose.msra.mxu0 0
    %2221 = vmatprep.subr.bf16.mxu0 0
    %2222 = vmatpush1.bf16.xpose.msra.mxu0 0
    %2223 = vmatprep.subr.bf16.mxu0 0
    %2224 = vmatpush1.bf16.xpose.msra.mxu0 0
    %2225 = vmatprep.mubr.bf16.mxu0 0
    %2226 = vmatmul.mubr.bf16.gmra.mrb[0].mxu0 %v2188
    %v2227 = vpop.f32.mrb[0].mxu0
    %v2228 = vadd.f32 %v2082, %v2227
    %v2229 = vpop.f32.mrb[0].mxu0
    %v2230 = vpop.f32.mrb[0].mxu0
    %v2231 = vpop.f32.mrb[0].mxu0
    %2232 = vdwg.mxu0
    %v2234 = vsel %vm734, %v2086, 0
    %v2237 = vsel %vm734, %v2090, 0
    %2239 = vmatprep.subr.bf16.mxu0 0
    %2240 = vmatpush1.bf16.xpose.msra.mxu0 %v2237
    %2241 = vmatprep.subr.bf16.mxu0 0
    %2242 = vmatpush1.bf16.xpose.msra.mxu0 0
    %2243 = vmatprep.subr.bf16.mxu0 0
    %2244 = vmatpush1.bf16.xpose.msra.mxu0 0
    %2245 = vmatprep.subr.bf16.mxu0 0
    %2246 = vmatpush1.bf16.xpose.msra.mxu0 0
    %2247 = vmatprep.subr.bf16.mxu0 0
    %2248 = vmatpush1.bf16.xpose.msra.mxu0 0
    %2249 = vmatprep.subr.bf16.mxu0 0
    %2250 = vmatpush1.bf16.xpose.msra.mxu0 0
    %2251 = vmatprep.subr.bf16.mxu0 0
    %2252 = vmatpush1.bf16.xpose.msra.mxu0 0
    %2253 = vmatprep.subr.bf16.mxu0 0
    %2254 = vmatpush1.bf16.xpose.msra.mxu0 0
    %2255 = vmatprep.subr.bf16.mxu0 0
    %2256 = vmatpush1.bf16.xpose.msra.mxu0 0
    %2257 = vmatprep.subr.bf16.mxu0 0
    %2258 = vmatpush1.bf16.xpose.msra.mxu0 0
    %2259 = vmatprep.subr.bf16.mxu0 0
    %2260 = vmatpush1.bf16.xpose.msra.mxu0 0
    %2261 = vmatprep.subr.bf16.mxu0 0
    %2262 = vmatpush1.bf16.xpose.msra.mxu0 0
    %2263 = vmatprep.subr.bf16.mxu0 0
    %2264 = vmatpush1.bf16.xpose.msra.mxu0 0
    %2265 = vmatprep.subr.bf16.mxu0 0
    %2266 = vmatpush1.bf16.xpose.msra.mxu0 0
    %2267 = vmatprep.subr.bf16.mxu0 0
    %2268 = vmatpush1.bf16.xpose.msra.mxu0 0
    %2269 = vmatprep.subr.bf16.mxu0 0
    %2270 = vmatpush1.bf16.xpose.msra.mxu0 0
    %2271 = vmatprep.mubr.bf16.mxu0 0
    %2272 = vmatmul.mubr.bf16.gmra.mrb[0].mxu0 %v2234
    %v2273 = vpop.f32.mrb[0].mxu0
    %v2274 = vadd.f32 %v2082, %v2273
    %v2275 = vpop.f32.mrb[0].mxu0
    %v2276 = vpop.f32.mrb[0].mxu0
    %v2277 = vpop.f32.mrb[0].mxu0
    %2278 = vdwg.mxu0
    %vm2279 = vcmask 130048
    %v2280 = vsel %vm2279, %v2136, -inf
    %2281 = vmax.xlane.f32.xlu0 %v2280
    %v2282 = vpop.xlane.xlu0 %2281
    %v2283 = vsel %vm2279, %v2182, -inf
    %2284 = vmax.xlane.f32.xlu0 %v2283
    %v2285 = vpop.xlane.xlu0 %2284
    %v2286 = vsel %vm2279, %v2228, -inf
    %2287 = vmax.xlane.f32.xlu0 %v2286
    %v2288 = vpop.xlane.xlu0 %2287
    %v2289 = vsel %vm2279, %v2274, -inf
    %2290 = vmax.xlane.f32.xlu0 %v2289
    %v2291 = vpop.xlane.xlu0 %2290
    %v2292 = vsub.f32 %v2136, %v2282
    %v2293 = vsub.f32 %v2182, %v2285
    %v2294 = vsub.f32 %v2228, %v2288
    %v2295 = vsub.f32 %v2274, %v2291
    %v2296 = vmul.f32 %v2292, 1.442695
    %v2297 = vpow.pop %v2296
    %v2298 = vmul.f32 %v2293, 1.442695
    %v2299 = vpow.pop %v2298
    %v2300 = vmul.f32 %v2294, 1.442695
    %v2301 = vpow.pop %v2300
    %v2302 = vmul.f32 %v2295, 1.442695
    %v2303 = vpow.pop %v2302
    %v2304 = vsel %vm2279, %v2297, 0.0
    %2305 = vadd.xlane.f32.xlu0 %v2304
    %v2306 = vpop.xlane.xlu0 %2305
    %v2307 = vsel %vm2279, %v2299, 0.0
    %2308 = vadd.xlane.f32.xlu0 %v2307
    %v2309 = vpop.xlane.xlu0 %2308
    %v2310 = vsel %vm2279, %v2301, 0.0
    %2311 = vadd.xlane.f32.xlu0 %v2310
    %v2312 = vpop.xlane.xlu0 %2311
    %v2313 = vsel %vm2279, %v2303, 0.0
    %2314 = vadd.xlane.f32.xlu0 %v2313
    %v2315 = vpop.xlane.xlu0 %2314
    %v2316 = vrcp.pop %v2306
    %v2317 = vrcp.pop %v2309
    %v2318 = vrcp.pop %v2312
    %v2319 = vrcp.pop %v2315
    %v2320 = vmul.f32 %v2297, %v2316
    %v2321 = vmul.f32 %v2299, %v2317
    %v2322 = vmul.f32 %v2301, %v2318
    %v2323 = vmul.f32 %v2303, %v2319
    %v2324 = vpack.c.bf16 %v2320, %v2320
    %v2325 = vpack.c.bf16 %v2321, %v2321
    %v2326 = vpack.c.bf16 %v2322, %v2322
    %v2327 = vpack.c.bf16 %v2323, %v2323
    %v2329 = vsel %vm2279, %v2324, 0
    %2331 = vmatprep.subr.bf16.mxu0 0
    %2332 = vmatpush1.bf16.msra.mxu0 %v2091
    %2333 = vmatprep.subr.bf16.mxu0 0
    %2334 = vmatpush1.bf16.msra.mxu0 0
    %2335 = vmatprep.subr.bf16.mxu0 0
    %2336 = vmatpush1.bf16.msra.mxu0 0
    %2337 = vmatprep.subr.bf16.mxu0 0
    %2338 = vmatpush1.bf16.msra.mxu0 0
    %2339 = vmatprep.subr.bf16.mxu0 0
    %2340 = vmatpush1.bf16.msra.mxu0 0
    %2341 = vmatprep.subr.bf16.mxu0 0
    %2342 = vmatpush1.bf16.msra.mxu0 0
    %2343 = vmatprep.subr.bf16.mxu0 0
    %2344 = vmatpush1.bf16.msra.mxu0 0
    %2345 = vmatprep.subr.bf16.mxu0 0
    %2346 = vmatpush1.bf16.msra.mxu0 0
    %2347 = vmatprep.subr.bf16.mxu0 0
    %2348 = vmatpush1.bf16.msra.mxu0 0
    %2349 = vmatprep.subr.bf16.mxu0 0
    %2350 = vmatpush1.bf16.msra.mxu0 0
    %2351 = vmatprep.subr.bf16.mxu0 0
    %2352 = vmatpush1.bf16.msra.mxu0 0
    %2353 = vmatprep.subr.bf16.mxu0 0
    %2354 = vmatpush1.bf16.msra.mxu0 0
    %2355 = vmatprep.subr.bf16.mxu0 0
    %2356 = vmatpush1.bf16.msra.mxu0 0
    %2357 = vmatprep.subr.bf16.mxu0 0
    %2358 = vmatpush1.bf16.msra.mxu0 0
    %2359 = vmatprep.subr.bf16.mxu0 0
    %2360 = vmatpush1.bf16.msra.mxu0 0
    %2361 = vmatprep.subr.bf16.mxu0 0
    %2362 = vmatpush1.bf16.msra.mxu0 0
    %2363 = vmatprep.mubr.bf16.mxu0 0
    %2364 = vmatmul.mubr.bf16.gmra.mrb[0].mxu0 %v2329
    %v2365 = vpop.f32.mrb[0].mxu0
    %v2366 = vadd.f32 0.0, %v2365
    %v2367 = vpop.f32.mrb[0].mxu0
    %v2368 = vpop.f32.mrb[0].mxu0
    %v2369 = vpop.f32.mrb[0].mxu0
    %2370 = vdwg.mxu0
    %v2372 = vsel %vm2279, %v2325, 0
    %2374 = vmatprep.subr.bf16.mxu0 0
    %2375 = vmatpush1.bf16.msra.mxu0 %v2092
    %2376 = vmatprep.subr.bf16.mxu0 0
    %2377 = vmatpush1.bf16.msra.mxu0 0
    %2378 = vmatprep.subr.bf16.mxu0 0
    %2379 = vmatpush1.bf16.msra.mxu0 0
    %2380 = vmatprep.subr.bf16.mxu0 0
    %2381 = vmatpush1.bf16.msra.mxu0 0
    %2382 = vmatprep.subr.bf16.mxu0 0
    %2383 = vmatpush1.bf16.msra.mxu0 0
    %2384 = vmatprep.subr.bf16.mxu0 0
    %2385 = vmatpush1.bf16.msra.mxu0 0
    %2386 = vmatprep.subr.bf16.mxu0 0
    %2387 = vmatpush1.bf16.msra.mxu0 0
    %2388 = vmatprep.subr.bf16.mxu0 0
    %2389 = vmatpush1.bf16.msra.mxu0 0
    %2390 = vmatprep.subr.bf16.mxu0 0
    %2391 = vmatpush1.bf16.msra.mxu0 0
    %2392 = vmatprep.subr.bf16.mxu0 0
    %2393 = vmatpush1.bf16.msra.mxu0 0
    %2394 = vmatprep.subr.bf16.mxu0 0
    %2395 = vmatpush1.bf16.msra.mxu0 0
    %2396 = vmatprep.subr.bf16.mxu0 0
    %2397 = vmatpush1.bf16.msra.mxu0 0
    %2398 = vmatprep.subr.bf16.mxu0 0
    %2399 = vmatpush1.bf16.msra.mxu0 0
    %2400 = vmatprep.subr.bf16.mxu0 0
    %2401 = vmatpush1.bf16.msra.mxu0 0
    %2402 = vmatprep.subr.bf16.mxu0 0
    %2403 = vmatpush1.bf16.msra.mxu0 0
    %2404 = vmatprep.subr.bf16.mxu0 0
    %2405 = vmatpush1.bf16.msra.mxu0 0
    %2406 = vmatprep.mubr.bf16.mxu0 0
    %2407 = vmatmul.mubr.bf16.gmra.mrb[0].mxu0 %v2372
    %v2408 = vpop.f32.mrb[0].mxu0
    %v2409 = vadd.f32 0.0, %v2408
    %v2410 = vpop.f32.mrb[0].mxu0
    %v2411 = vpop.f32.mrb[0].mxu0
    %v2412 = vpop.f32.mrb[0].mxu0
    %2413 = vdwg.mxu0
    %v2415 = vsel %vm2279, %v2326, 0
    %2417 = vmatprep.subr.bf16.mxu0 0
    %2418 = vmatpush1.bf16.msra.mxu0 %v2093
    %2419 = vmatprep.subr.bf16.mxu0 0
    %2420 = vmatpush1.bf16.msra.mxu0 0
    %2421 = vmatprep.subr.bf16.mxu0 0
    %2422 = vmatpush1.bf16.msra.mxu0 0
    %2423 = vmatprep.subr.bf16.mxu0 0
    %2424 = vmatpush1.bf16.msra.mxu0 0
    %2425 = vmatprep.subr.bf16.mxu0 0
    %2426 = vmatpush1.bf16.msra.mxu0 0
    %2427 = vmatprep.subr.bf16.mxu0 0
    %2428 = vmatpush1.bf16.msra.mxu0 0
    %2429 = vmatprep.subr.bf16.mxu0 0
    %2430 = vmatpush1.bf16.msra.mxu0 0
    %2431 = vmatprep.subr.bf16.mxu0 0
    %2432 = vmatpush1.bf16.msra.mxu0 0
    %2433 = vmatprep.subr.bf16.mxu0 0
    %2434 = vmatpush1.bf16.msra.mxu0 0
    %2435 = vmatprep.subr.bf16.mxu0 0
    %2436 = vmatpush1.bf16.msra.mxu0 0
    %2437 = vmatprep.subr.bf16.mxu0 0
    %2438 = vmatpush1.bf16.msra.mxu0 0
    %2439 = vmatprep.subr.bf16.mxu0 0
    %2440 = vmatpush1.bf16.msra.mxu0 0
    %2441 = vmatprep.subr.bf16.mxu0 0
    %2442 = vmatpush1.bf16.msra.mxu0 0
    %2443 = vmatprep.subr.bf16.mxu0 0
    %2444 = vmatpush1.bf16.msra.mxu0 0
    %2445 = vmatprep.subr.bf16.mxu0 0
    %2446 = vmatpush1.bf16.msra.mxu0 0
    %2447 = vmatprep.subr.bf16.mxu0 0
    %2448 = vmatpush1.bf16.msra.mxu0 0
    %2449 = vmatprep.mubr.bf16.mxu0 0
    %2450 = vmatmul.mubr.bf16.gmra.mrb[0].mxu0 %v2415
    %v2451 = vpop.f32.mrb[0].mxu0
    %v2452 = vadd.f32 0.0, %v2451
    %v2453 = vpop.f32.mrb[0].mxu0
    %v2454 = vpop.f32.mrb[0].mxu0
    %v2455 = vpop.f32.mrb[0].mxu0
    %2456 = vdwg.mxu0
    %v2458 = vsel %vm2279, %v2327, 0
    %2460 = vmatprep.subr.bf16.mxu0 0
    %2461 = vmatpush1.bf16.msra.mxu0 %v2094
    %2462 = vmatprep.subr.bf16.mxu0 0
    %2463 = vmatpush1.bf16.msra.mxu0 0
    %2464 = vmatprep.subr.bf16.mxu0 0
    %2465 = vmatpush1.bf16.msra.mxu0 0
    %2466 = vmatprep.subr.bf16.mxu0 0
    %2467 = vmatpush1.bf16.msra.mxu0 0
    %2468 = vmatprep.subr.bf16.mxu0 0
    %2469 = vmatpush1.bf16.msra.mxu0 0
    %2470 = vmatprep.subr.bf16.mxu0 0
    %2471 = vmatpush1.bf16.msra.mxu0 0
    %2472 = vmatprep.subr.bf16.mxu0 0
    %2473 = vmatpush1.bf16.msra.mxu0 0
    %2474 = vmatprep.subr.bf16.mxu0 0
    %2475 = vmatpush1.bf16.msra.mxu0 0
    %2476 = vmatprep.subr.bf16.mxu0 0
    %2477 = vmatpush1.bf16.msra.mxu0 0
    %2478 = vmatprep.subr.bf16.mxu0 0
    %2479 = vmatpush1.bf16.msra.mxu0 0
    %2480 = vmatprep.subr.bf16.mxu0 0
    %2481 = vmatpush1.bf16.msra.mxu0 0
    %2482 = vmatprep.subr.bf16.mxu0 0
    %2483 = vmatpush1.bf16.msra.mxu0 0
    %2484 = vmatprep.subr.bf16.mxu0 0
    %2485 = vmatpush1.bf16.msra.mxu0 0
    %2486 = vmatprep.subr.bf16.mxu0 0
    %2487 = vmatpush1.bf16.msra.mxu0 0
    %2488 = vmatprep.subr.bf16.mxu0 0
    %2489 = vmatpush1.bf16.msra.mxu0 0
    %2490 = vmatprep.subr.bf16.mxu0 0
    %2491 = vmatpush1.bf16.msra.mxu0 0
    %2492 = vmatprep.mubr.bf16.mxu0 0
    %2493 = vmatmul.mubr.bf16.gmra.mrb[0].mxu0 %v2458
    %v2494 = vpop.f32.mrb[0].mxu0
    %v2495 = vadd.f32 0.0, %v2494
    %v2496 = vpop.f32.mrb[0].mxu0
    %v2497 = vpop.f32.mrb[0].mxu0
    %v2498 = vpop.f32.mrb[0].mxu0
    %2499 = vdwg.mxu0
    %v2500 = vpack.c.bf16 %v2366, %v2366
    %v2501 = vpack.c.bf16 %v2409, %v2409
    %v2502 = vpack.c.bf16 %v2452, %v2452
    %v2503 = vpack.c.bf16 %v2495, %v2495
    %2504 = vst.msk [vmem:[#allocation7] sm:$0xf] %vm601, %v2500
    %2506 = vrot.lane.b32.xlu0 %v2501, 8
    %v2507 = vpop.permute.xlu0 %2506
    %2509 = vst.msk [vmem:[#allocation7] sm:$0xf] %vm1161, %v2507
    %2511 = vrot.lane.b32.xlu0 %v2502, 16
    %v2512 = vpop.permute.xlu0 %2511
    %2514 = vst.msk [vmem:[#allocation7] sm:$0xf] %vm1167, %v2512
    %2516 = vrot.lane.b32.xlu0 %v2503, 24
    %v2517 = vpop.permute.xlu0 %2516
    %2519 = vst.msk [vmem:[#allocation7] sm:$0xf] %vm1173, %v2517
    %s2520 = scalar_lea.vmem [#allocation11], 8
    %v2521 = vld [vmem:[%s2520] sm:$0xff]
    %vm2522 = vcmp.gt.f32.partialorder %v2521, 0.0
    %v2523 = vsel %vm2522, 0.0, -1e+09
    %v2524 = vld [vmem:[%s662] sm:$0xf]
    %v2525 = vld [vmem:[%s662 + $0x4] sm:$0xf]
    %v2526 = vld [vmem:[%s662 + $0x8] sm:$0xf]
    %v2527 = vld [vmem:[%s662 + $0xc] sm:$0xf]
    %v2528 = vld [vmem:[%s2032] sm:$0xff]
    %v2529 = vld [vmem:[%s2032 + $0x8] sm:$0xff]
    %v2530 = vld [vmem:[%s2032 + $0x10] sm:$0xff]
    %v2531 = vld [vmem:[%s2032 + $0x18] sm:$0xff]
    %v2532 = vld [vmem:[%s2034] sm:$0xff]
    %v2533 = vld [vmem:[%s2034 + $0x8] sm:$0xff]
    %v2534 = vld [vmem:[%s2034 + $0x10] sm:$0xff]
    %v2535 = vld [vmem:[%s2034 + $0x18] sm:$0xff]
    %v2537 = vsel %vm734, %v2524, 0
    %v2540 = vsel %vm734, %v2528, 0
    %2542 = vmatprep.subr.bf16.mxu0 0
    %2543 = vmatpush1.bf16.xpose.msra.mxu0 %v2540
    %2544 = vmatprep.subr.bf16.mxu0 0
    %2545 = vmatpush1.bf16.xpose.msra.mxu0 0
    %2546 = vmatprep.subr.bf16.mxu0 0
    %2547 = vmatpush1.bf16.xpose.msra.mxu0 0
    %2548 = vmatprep.subr.bf16.mxu0 0
    %2549 = vmatpush1.bf16.xpose.msra.mxu0 0
    %2550 = vmatprep.subr.bf16.mxu0 0
    %2551 = vmatpush1.bf16.xpose.msra.mxu0 0
    %2552 = vmatprep.subr.bf16.mxu0 0
    %2553 = vmatpush1.bf16.xpose.msra.mxu0 0
    %2554 = vmatprep.subr.bf16.mxu0 0
    %2555 = vmatpush1.bf16.xpose.msra.mxu0 0
    %2556 = vmatprep.subr.bf16.mxu0 0
    %2557 = vmatpush1.bf16.xpose.msra.mxu0 0
    %2558 = vmatprep.subr.bf16.mxu0 0
    %2559 = vmatpush1.bf16.xpose.msra.mxu0 0
    %2560 = vmatprep.subr.bf16.mxu0 0
    %2561 = vmatpush1.bf16.xpose.msra.mxu0 0
    %2562 = vmatprep.subr.bf16.mxu0 0
    %2563 = vmatpush1.bf16.xpose.msra.mxu0 0
    %2564 = vmatprep.subr.bf16.mxu0 0
    %2565 = vmatpush1.bf16.xpose.msra.mxu0 0
    %2566 = vmatprep.subr.bf16.mxu0 0
    %2567 = vmatpush1.bf16.xpose.msra.mxu0 0
    %2568 = vmatprep.subr.bf16.mxu0 0
    %2569 = vmatpush1.bf16.xpose.msra.mxu0 0
    %2570 = vmatprep.subr.bf16.mxu0 0
    %2571 = vmatpush1.bf16.xpose.msra.mxu0 0
    %2572 = vmatprep.subr.bf16.mxu0 0
    %2573 = vmatpush1.bf16.xpose.msra.mxu0 0
    %2574 = vmatprep.mubr.bf16.mxu0 0
    %2575 = vmatmul.mubr.bf16.gmra.mrb[0].mxu0 %v2537
    %v2576 = vpop.f32.mrb[0].mxu0
    %v2577 = vadd.f32 %v2523, %v2576
    %v2578 = vpop.f32.mrb[0].mxu0
    %v2579 = vpop.f32.mrb[0].mxu0
    %v2580 = vpop.f32.mrb[0].mxu0
    %2581 = vdwg.mxu0
    %v2583 = vsel %vm734, %v2525, 0
    %v2586 = vsel %vm734, %v2529, 0
    %2588 = vmatprep.subr.bf16.mxu0 0
    %2589 = vmatpush1.bf16.xpose.msra.mxu0 %v2586
    %2590 = vmatprep.subr.bf16.mxu0 0
    %2591 = vmatpush1.bf16.xpose.msra.mxu0 0
    %2592 = vmatprep.subr.bf16.mxu0 0
    %2593 = vmatpush1.bf16.xpose.msra.mxu0 0
    %2594 = vmatprep.subr.bf16.mxu0 0
    %2595 = vmatpush1.bf16.xpose.msra.mxu0 0
    %2596 = vmatprep.subr.bf16.mxu0 0
    %2597 = vmatpush1.bf16.xpose.msra.mxu0 0
    %2598 = vmatprep.subr.bf16.mxu0 0
    %2599 = vmatpush1.bf16.xpose.msra.mxu0 0
    %2600 = vmatprep.subr.bf16.mxu0 0
    %2601 = vmatpush1.bf16.xpose.msra.mxu0 0
    %2602 = vmatprep.subr.bf16.mxu0 0
    %2603 = vmatpush1.bf16.xpose.msra.mxu0 0
    %2604 = vmatprep.subr.bf16.mxu0 0
    %2605 = vmatpush1.bf16.xpose.msra.mxu0 0
    %2606 = vmatprep.subr.bf16.mxu0 0
    %2607 = vmatpush1.bf16.xpose.msra.mxu0 0
    %2608 = vmatprep.subr.bf16.mxu0 0
    %2609 = vmatpush1.bf16.xpose.msra.mxu0 0
    %2610 = vmatprep.subr.bf16.mxu0 0
    %2611 = vmatpush1.bf16.xpose.msra.mxu0 0
    %2612 = vmatprep.subr.bf16.mxu0 0
    %2613 = vmatpush1.bf16.xpose.msra.mxu0 0
    %2614 = vmatprep.subr.bf16.mxu0 0
    %2615 = vmatpush1.bf16.xpose.msra.mxu0 0
    %2616 = vmatprep.subr.bf16.mxu0 0
    %2617 = vmatpush1.bf16.xpose.msra.mxu0 0
    %2618 = vmatprep.subr.bf16.mxu0 0
    %2619 = vmatpush1.bf16.xpose.msra.mxu0 0
    %2620 = vmatprep.mubr.bf16.mxu0 0
    %2621 = vmatmul.mubr.bf16.gmra.mrb[0].mxu0 %v2583
    %v2622 = vpop.f32.mrb[0].mxu0
    %v2623 = vadd.f32 %v2523, %v2622
    %v2624 = vpop.f32.mrb[0].mxu0
    %v2625 = vpop.f32.mrb[0].mxu0
    %v2626 = vpop.f32.mrb[0].mxu0
    %2627 = vdwg.mxu0
    %v2629 = vsel %vm734, %v2526, 0
    %v2632 = vsel %vm734, %v2530, 0
    %2634 = vmatprep.subr.bf16.mxu0 0
    %2635 = vmatpush1.bf16.xpose.msra.mxu0 %v2632
    %2636 = vmatprep.subr.bf16.mxu0 0
    %2637 = vmatpush1.bf16.xpose.msra.mxu0 0
    %2638 = vmatprep.subr.bf16.mxu0 0
    %2639 = vmatpush1.bf16.xpose.msra.mxu0 0
    %2640 = vmatprep.subr.bf16.mxu0 0
    %2641 = vmatpush1.bf16.xpose.msra.mxu0 0
    %2642 = vmatprep.subr.bf16.mxu0 0
    %2643 = vmatpush1.bf16.xpose.msra.mxu0 0
    %2644 = vmatprep.subr.bf16.mxu0 0
    %2645 = vmatpush1.bf16.xpose.msra.mxu0 0
    %2646 = vmatprep.subr.bf16.mxu0 0
    %2647 = vmatpush1.bf16.xpose.msra.mxu0 0
    %2648 = vmatprep.subr.bf16.mxu0 0
    %2649 = vmatpush1.bf16.xpose.msra.mxu0 0
    %2650 = vmatprep.subr.bf16.mxu0 0
    %2651 = vmatpush1.bf16.xpose.msra.mxu0 0
    %2652 = vmatprep.subr.bf16.mxu0 0
    %2653 = vmatpush1.bf16.xpose.msra.mxu0 0
    %2654 = vmatprep.subr.bf16.mxu0 0
    %2655 = vmatpush1.bf16.xpose.msra.mxu0 0
    %2656 = vmatprep.subr.bf16.mxu0 0
    %2657 = vmatpush1.bf16.xpose.msra.mxu0 0
    %2658 = vmatprep.subr.bf16.mxu0 0
    %2659 = vmatpush1.bf16.xpose.msra.mxu0 0
    %2660 = vmatprep.subr.bf16.mxu0 0
    %2661 = vmatpush1.bf16.xpose.msra.mxu0 0
    %2662 = vmatprep.subr.bf16.mxu0 0
    %2663 = vmatpush1.bf16.xpose.msra.mxu0 0
    %2664 = vmatprep.subr.bf16.mxu0 0
    %2665 = vmatpush1.bf16.xpose.msra.mxu0 0
    %2666 = vmatprep.mubr.bf16.mxu0 0
    %2667 = vmatmul.mubr.bf16.gmra.mrb[0].mxu0 %v2629
    %v2668 = vpop.f32.mrb[0].mxu0
    %v2669 = vadd.f32 %v2523, %v2668
    %v2670 = vpop.f32.mrb[0].mxu0
    %v2671 = vpop.f32.mrb[0].mxu0
    %v2672 = vpop.f32.mrb[0].mxu0
    %2673 = vdwg.mxu0
    %v2675 = vsel %vm734, %v2527, 0
    %v2678 = vsel %vm734, %v2531, 0
    %2680 = vmatprep.subr.bf16.mxu0 0
    %2681 = vmatpush1.bf16.xpose.msra.mxu0 %v2678
    %2682 = vmatprep.subr.bf16.mxu0 0
    %2683 = vmatpush1.bf16.xpose.msra.mxu0 0
    %2684 = vmatprep.subr.bf16.mxu0 0
    %2685 = vmatpush1.bf16.xpose.msra.mxu0 0
    %2686 = vmatprep.subr.bf16.mxu0 0
    %2687 = vmatpush1.bf16.xpose.msra.mxu0 0
    %2688 = vmatprep.subr.bf16.mxu0 0
    %2689 = vmatpush1.bf16.xpose.msra.mxu0 0
    %2690 = vmatprep.subr.bf16.mxu0 0
    %2691 = vmatpush1.bf16.xpose.msra.mxu0 0
    %2692 = vmatprep.subr.bf16.mxu0 0
    %2693 = vmatpush1.bf16.xpose.msra.mxu0 0
    %2694 = vmatprep.subr.bf16.mxu0 0
    %2695 = vmatpush1.bf16.xpose.msra.mxu0 0
    %2696 = vmatprep.subr.bf16.mxu0 0
    %2697 = vmatpush1.bf16.xpose.msra.mxu0 0
    %2698 = vmatprep.subr.bf16.mxu0 0
    %2699 = vmatpush1.bf16.xpose.msra.mxu0 0
    %2700 = vmatprep.subr.bf16.mxu0 0
    %2701 = vmatpush1.bf16.xpose.msra.mxu0 0
    %2702 = vmatprep.subr.bf16.mxu0 0
    %2703 = vmatpush1.bf16.xpose.msra.mxu0 0
    %2704 = vmatprep.subr.bf16.mxu0 0
    %2705 = vmatpush1.bf16.xpose.msra.mxu0 0
    %2706 = vmatprep.subr.bf16.mxu0 0
    %2707 = vmatpush1.bf16.xpose.msra.mxu0 0
    %2708 = vmatprep.subr.bf16.mxu0 0
    %2709 = vmatpush1.bf16.xpose.msra.mxu0 0
    %2710 = vmatprep.subr.bf16.mxu0 0
    %2711 = vmatpush1.bf16.xpose.msra.mxu0 0
    %2712 = vmatprep.mubr.bf16.mxu0 0
    %2713 = vmatmul.mubr.bf16.gmra.mrb[0].mxu0 %v2675
    %v2714 = vpop.f32.mrb[0].mxu0
    %v2715 = vadd.f32 %v2523, %v2714
    %v2716 = vpop.f32.mrb[0].mxu0
    %v2717 = vpop.f32.mrb[0].mxu0
    %v2718 = vpop.f32.mrb[0].mxu0
    %2719 = vdwg.mxu0
    %v2720 = vsel %vm2279, %v2577, -inf
    %2721 = vmax.xlane.f32.xlu0 %v2720
    %v2722 = vpop.xlane.xlu0 %2721
    %v2723 = vsel %vm2279, %v2623, -inf
    %2724 = vmax.xlane.f32.xlu0 %v2723
    %v2725 = vpop.xlane.xlu0 %2724
    %v2726 = vsel %vm2279, %v2669, -inf
    %2727 = vmax.xlane.f32.xlu0 %v2726
    %v2728 = vpop.xlane.xlu0 %2727
    %v2729 = vsel %vm2279, %v2715, -inf
    %2730 = vmax.xlane.f32.xlu0 %v2729
    %v2731 = vpop.xlane.xlu0 %2730
    %v2732 = vsub.f32 %v2577, %v2722
    %v2733 = vsub.f32 %v2623, %v2725
    %v2734 = vsub.f32 %v2669, %v2728
    %v2735 = vsub.f32 %v2715, %v2731
    %v2736 = vmul.f32 %v2732, 1.442695
    %v2737 = vpow.pop %v2736
    %v2738 = vmul.f32 %v2733, 1.442695
    %v2739 = vpow.pop %v2738
    %v2740 = vmul.f32 %v2734, 1.442695
    %v2741 = vpow.pop %v2740
    %v2742 = vmul.f32 %v2735, 1.442695
    %v2743 = vpow.pop %v2742
    %v2744 = vsel %vm2279, %v2737, 0.0
    %2745 = vadd.xlane.f32.xlu0 %v2744
    %v2746 = vpop.xlane.xlu0 %2745
    %v2747 = vsel %vm2279, %v2739, 0.0
    %2748 = vadd.xlane.f32.xlu0 %v2747
    %v2749 = vpop.xlane.xlu0 %2748
    %v2750 = vsel %vm2279, %v2741, 0.0
    %2751 = vadd.xlane.f32.xlu0 %v2750
    %v2752 = vpop.xlane.xlu0 %2751
    %v2753 = vsel %vm2279, %v2743, 0.0
    %2754 = vadd.xlane.f32.xlu0 %v2753
    %v2755 = vpop.xlane.xlu0 %2754
    %v2756 = vrcp.pop %v2746
    %v2757 = vrcp.pop %v2749
    %v2758 = vrcp.pop %v2752
    %v2759 = vrcp.pop %v2755
    %v2760 = vmul.f32 %v2737, %v2756
    %v2761 = vmul.f32 %v2739, %v2757
    %v2762 = vmul.f32 %v2741, %v2758
    %v2763 = vmul.f32 %v2743, %v2759
    %v2764 = vpack.c.bf16 %v2760, %v2760
    %v2765 = vpack.c.bf16 %v2761, %v2761
    %v2766 = vpack.c.bf16 %v2762, %v2762
    %v2767 = vpack.c.bf16 %v2763, %v2763
    %v2769 = vsel %vm2279, %v2764, 0
    %2771 = vmatprep.subr.bf16.mxu0 0
    %2772 = vmatpush1.bf16.msra.mxu0 %v2532
    %2773 = vmatprep.subr.bf16.mxu0 0
    %2774 = vmatpush1.bf16.msra.mxu0 0
    %2775 = vmatprep.subr.bf16.mxu0 0
    %2776 = vmatpush1.bf16.msra.mxu0 0
    %2777 = vmatprep.subr.bf16.mxu0 0
    %2778 = vmatpush1.bf16.msra.mxu0 0
    %2779 = vmatprep.subr.bf16.mxu0 0
    %2780 = vmatpush1.bf16.msra.mxu0 0
    %2781 = vmatprep.subr.bf16.mxu0 0
    %2782 = vmatpush1.bf16.msra.mxu0 0
    %2783 = vmatprep.subr.bf16.mxu0 0
    %2784 = vmatpush1.bf16.msra.mxu0 0
    %2785 = vmatprep.subr.bf16.mxu0 0
    %2786 = vmatpush1.bf16.msra.mxu0 0
    %2787 = vmatprep.subr.bf16.mxu0 0
    %2788 = vmatpush1.bf16.msra.mxu0 0
    %2789 = vmatprep.subr.bf16.mxu0 0
    %2790 = vmatpush1.bf16.msra.mxu0 0
    %2791 = vmatprep.subr.bf16.mxu0 0
    %2792 = vmatpush1.bf16.msra.mxu0 0
    %2793 = vmatprep.subr.bf16.mxu0 0
    %2794 = vmatpush1.bf16.msra.mxu0 0
    %2795 = vmatprep.subr.bf16.mxu0 0
    %2796 = vmatpush1.bf16.msra.mxu0 0
    %2797 = vmatprep.subr.bf16.mxu0 0
    %2798 = vmatpush1.bf16.msra.mxu0 0
    %2799 = vmatprep.subr.bf16.mxu0 0
    %2800 = vmatpush1.bf16.msra.mxu0 0
    %2801 = vmatprep.subr.bf16.mxu0 0
    %2802 = vmatpush1.bf16.msra.mxu0 0
    %2803 = vmatprep.mubr.bf16.mxu0 0
    %2804 = vmatmul.mubr.bf16.gmra.mrb[0].mxu0 %v2769
    %v2805 = vpop.f32.mrb[0].mxu0
    %v2806 = vadd.f32 0.0, %v2805
    %v2807 = vpop.f32.mrb[0].mxu0
    %v2808 = vpop.f32.mrb[0].mxu0
    %v2809 = vpop.f32.mrb[0].mxu0
    %2810 = vdwg.mxu0
    %v2812 = vsel %vm2279, %v2765, 0
    %2814 = vmatprep.subr.bf16.mxu0 0
    %2815 = vmatpush1.bf16.msra.mxu0 %v2533
    %2816 = vmatprep.subr.bf16.mxu0 0
    %2817 = vmatpush1.bf16.msra.mxu0 0
    %2818 = vmatprep.subr.bf16.mxu0 0
    %2819 = vmatpush1.bf16.msra.mxu0 0
    %2820 = vmatprep.subr.bf16.mxu0 0
    %2821 = vmatpush1.bf16.msra.mxu0 0
    %2822 = vmatprep.subr.bf16.mxu0 0
    %2823 = vmatpush1.bf16.msra.mxu0 0
    %2824 = vmatprep.subr.bf16.mxu0 0
    %2825 = vmatpush1.bf16.msra.mxu0 0
    %2826 = vmatprep.subr.bf16.mxu0 0
    %2827 = vmatpush1.bf16.msra.mxu0 0
    %2828 = vmatprep.subr.bf16.mxu0 0
    %2829 = vmatpush1.bf16.msra.mxu0 0
    %2830 = vmatprep.subr.bf16.mxu0 0
    %2831 = vmatpush1.bf16.msra.mxu0 0
    %2832 = vmatprep.subr.bf16.mxu0 0
    %2833 = vmatpush1.bf16.msra.mxu0 0
    %2834 = vmatprep.subr.bf16.mxu0 0
    %2835 = vmatpush1.bf16.msra.mxu0 0
    %2836 = vmatprep.subr.bf16.mxu0 0
    %2837 = vmatpush1.bf16.msra.mxu0 0
    %2838 = vmatprep.subr.bf16.mxu0 0
    %2839 = vmatpush1.bf16.msra.mxu0 0
    %2840 = vmatprep.subr.bf16.mxu0 0
    %2841 = vmatpush1.bf16.msra.mxu0 0
    %2842 = vmatprep.subr.bf16.mxu0 0
    %2843 = vmatpush1.bf16.msra.mxu0 0
    %2844 = vmatprep.subr.bf16.mxu0 0
    %2845 = vmatpush1.bf16.msra.mxu0 0
    %2846 = vmatprep.mubr.bf16.mxu0 0
    %2847 = vmatmul.mubr.bf16.gmra.mrb[0].mxu0 %v2812
    %v2848 = vpop.f32.mrb[0].mxu0
    %v2849 = vadd.f32 0.0, %v2848
    %v2850 = vpop.f32.mrb[0].mxu0
    %v2851 = vpop.f32.mrb[0].mxu0
    %v2852 = vpop.f32.mrb[0].mxu0
    %2853 = vdwg.mxu0
    %v2855 = vsel %vm2279, %v2766, 0
    %2857 = vmatprep.subr.bf16.mxu0 0
    %2858 = vmatpush1.bf16.msra.mxu0 %v2534
    %2859 = vmatprep.subr.bf16.mxu0 0
    %2860 = vmatpush1.bf16.msra.mxu0 0
    %2861 = vmatprep.subr.bf16.mxu0 0
    %2862 = vmatpush1.bf16.msra.mxu0 0
    %2863 = vmatprep.subr.bf16.mxu0 0
    %2864 = vmatpush1.bf16.msra.mxu0 0
    %2865 = vmatprep.subr.bf16.mxu0 0
    %2866 = vmatpush1.bf16.msra.mxu0 0
    %2867 = vmatprep.subr.bf16.mxu0 0
    %2868 = vmatpush1.bf16.msra.mxu0 0
    %2869 = vmatprep.subr.bf16.mxu0 0
    %2870 = vmatpush1.bf16.msra.mxu0 0
    %2871 = vmatprep.subr.bf16.mxu0 0
    %2872 = vmatpush1.bf16.msra.mxu0 0
    %2873 = vmatprep.subr.bf16.mxu0 0
    %2874 = vmatpush1.bf16.msra.mxu0 0
    %2875 = vmatprep.subr.bf16.mxu0 0
    %2876 = vmatpush1.bf16.msra.mxu0 0
    %2877 = vmatprep.subr.bf16.mxu0 0
    %2878 = vmatpush1.bf16.msra.mxu0 0
    %2879 = vmatprep.subr.bf16.mxu0 0
    %2880 = vmatpush1.bf16.msra.mxu0 0
    %2881 = vmatprep.subr.bf16.mxu0 0
    %2882 = vmatpush1.bf16.msra.mxu0 0
    %2883 = vmatprep.subr.bf16.mxu0 0
    %2884 = vmatpush1.bf16.msra.mxu0 0
    %2885 = vmatprep.subr.bf16.mxu0 0
    %2886 = vmatpush1.bf16.msra.mxu0 0
    %2887 = vmatprep.subr.bf16.mxu0 0
    %2888 = vmatpush1.bf16.msra.mxu0 0
    %2889 = vmatprep.mubr.bf16.mxu0 0
    %2890 = vmatmul.mubr.bf16.gmra.mrb[0].mxu0 %v2855
    %v2891 = vpop.f32.mrb[0].mxu0
    %v2892 = vadd.f32 0.0, %v2891
    %v2893 = vpop.f32.mrb[0].mxu0
    %v2894 = vpop.f32.mrb[0].mxu0
    %v2895 = vpop.f32.mrb[0].mxu0
    %2896 = vdwg.mxu0
    %v2898 = vsel %vm2279, %v2767, 0
    %2900 = vmatprep.subr.bf16.mxu0 0
    %2901 = vmatpush1.bf16.msra.mxu0 %v2535
    %2902 = vmatprep.subr.bf16.mxu0 0
    %2903 = vmatpush1.bf16.msra.mxu0 0
    %2904 = vmatprep.subr.bf16.mxu0 0
    %2905 = vmatpush1.bf16.msra.mxu0 0
    %2906 = vmatprep.subr.bf16.mxu0 0
    %2907 = vmatpush1.bf16.msra.mxu0 0
    %2908 = vmatprep.subr.bf16.mxu0 0
    %2909 = vmatpush1.bf16.msra.mxu0 0
    %2910 = vmatprep.subr.bf16.mxu0 0
    %2911 = vmatpush1.bf16.msra.mxu0 0
    %2912 = vmatprep.subr.bf16.mxu0 0
    %2913 = vmatpush1.bf16.msra.mxu0 0
    %2914 = vmatprep.subr.bf16.mxu0 0
    %2915 = vmatpush1.bf16.msra.mxu0 0
    %2916 = vmatprep.subr.bf16.mxu0 0
    %2917 = vmatpush1.bf16.msra.mxu0 0
    %2918 = vmatprep.subr.bf16.mxu0 0
    %2919 = vmatpush1.bf16.msra.mxu0 0
    %2920 = vmatprep.subr.bf16.mxu0 0
    %2921 = vmatpush1.bf16.msra.mxu0 0
    %2922 = vmatprep.subr.bf16.mxu0 0
    %2923 = vmatpush1.bf16.msra.mxu0 0
    %2924 = vmatprep.subr.bf16.mxu0 0
    %2925 = vmatpush1.bf16.msra.mxu0 0
    %2926 = vmatprep.subr.bf16.mxu0 0
    %2927 = vmatpush1.bf16.msra.mxu0 0
    %2928 = vmatprep.subr.bf16.mxu0 0
    %2929 = vmatpush1.bf16.msra.mxu0 0
    %2930 = vmatprep.subr.bf16.mxu0 0
    %2931 = vmatpush1.bf16.msra.mxu0 0
    %2932 = vmatprep.mubr.bf16.mxu0 0
    %2933 = vmatmul.mubr.bf16.gmra.mrb[0].mxu0 %v2898
    %v2934 = vpop.f32.mrb[0].mxu0
    %v2935 = vadd.f32 0.0, %v2934
    %v2936 = vpop.f32.mrb[0].mxu0
    %v2937 = vpop.f32.mrb[0].mxu0
    %v2938 = vpop.f32.mrb[0].mxu0
    %2939 = vdwg.mxu0
    %v2940 = vpack.c.bf16 %v2806, %v2806
    %v2941 = vpack.c.bf16 %v2849, %v2849
    %v2942 = vpack.c.bf16 %v2892, %v2892
    %v2943 = vpack.c.bf16 %v2935, %v2935
    %v2945 = vrot.slane %v2940, 4
    %2947 = vst.msk [vmem:[#allocation7] sm:$0xf0] %vm1614, %v2945
    %v2949 = vrot.slane %v2941, 4
    %2950 = vrot.lane.b32.xlu0 %v2949, 8
    %v2951 = vpop.permute.xlu0 %2950
    %2953 = vst.msk [vmem:[#allocation7] sm:$0xf0] %vm1621, %v2951
    %v2955 = vrot.slane %v2942, 4
    %2956 = vrot.lane.b32.xlu0 %v2955, 16
    %v2957 = vpop.permute.xlu0 %2956
    %2959 = vst.msk [vmem:[#allocation7] sm:$0xf0] %vm1628, %v2957
    %v2961 = vrot.slane %v2943, 4
    %2962 = vrot.lane.b32.xlu0 %v2961, 24
    %v2963 = vpop.permute.xlu0 %2962
    %2965 = vst.msk [vmem:[#allocation7] sm:$0xf0] %vm1635, %v2963
    %v2966 = vld [vmem:[#allocation7] sm:$0xff]
    %v2967 = vld [vmem:[#allocation34] sm:$0xf]
    %v2968 = vld [vmem:[#allocation34 + $0x4] sm:$0xf]
    %v2969 = vld [vmem:[#allocation34 + $0x8] sm:$0xf]
    %v2970 = vld [vmem:[#allocation34 + $0xc] sm:$0xf]
    %v2971 = vld [vmem:[#allocation35] sm:$0x1]
    %v2973 = vlaneseq
    %v2974 = vshrl.u32 %v2973, 7
    %v2975 = vsub.s32 0, %v2974
    %v2976 = vrot.slane %v2971, %v2975
    %v2982 = vunpack.c.l.b16 %v2967
    %v2983 = vunpack.c.l.b16 %v2968
    %v2984 = vunpack.c.l.b16 %v2969
    %v2985 = vunpack.c.l.b16 %v2970
    %v2986 = vpack.c.b16 %v2983, %v2982
    %v2987 = vpack.c.b16 %v2985, %v2984
    %v2991 = vsel %vm354, %v2966, 0
    %2993 = vmatprep.subr.bf16.mxu0 0
    %2994 = vmatpush1.bf16.msra.mxu0 %v2986
    %2995 = vmatprep.subr.bf16.mxu0 0
    %2996 = vmatpush1.bf16.msra.mxu0 %v2987
    %2997 = vmatprep.subr.bf16.mxu0 0
    %2998 = vmatpush1.bf16.msra.mxu0 0
    %2999 = vmatprep.subr.bf16.mxu0 0
    %3000 = vmatpush1.bf16.msra.mxu0 0
    %3001 = vmatprep.subr.bf16.mxu0 0
    %3002 = vmatpush1.bf16.msra.mxu0 0
    %3003 = vmatprep.subr.bf16.mxu0 0
    %3004 = vmatpush1.bf16.msra.mxu0 0
    %3005 = vmatprep.subr.bf16.mxu0 0
    %3006 = vmatpush1.bf16.msra.mxu0 0
    %3007 = vmatprep.subr.bf16.mxu0 0
    %3008 = vmatpush1.bf16.msra.mxu0 0
    %3009 = vmatprep.subr.bf16.mxu0 0
    %3010 = vmatpush1.bf16.msra.mxu0 0
    %3011 = vmatprep.subr.bf16.mxu0 0
    %3012 = vmatpush1.bf16.msra.mxu0 0
    %3013 = vmatprep.subr.bf16.mxu0 0
    %3014 = vmatpush1.bf16.msra.mxu0 0
    %3015 = vmatprep.subr.bf16.mxu0 0
    %3016 = vmatpush1.bf16.msra.mxu0 0
    %3017 = vmatprep.subr.bf16.mxu0 0
    %3018 = vmatpush1.bf16.msra.mxu0 0
    %3019 = vmatprep.subr.bf16.mxu0 0
    %3020 = vmatpush1.bf16.msra.mxu0 0
    %3021 = vmatprep.subr.bf16.mxu0 0
    %3022 = vmatpush1.bf16.msra.mxu0 0
    %3023 = vmatprep.subr.bf16.mxu0 0
    %3024 = vmatpush1.bf16.msra.mxu0 0
    %3025 = vmatprep.mubr.bf16.mxu0 0
    %3026 = vmatmul.mubr.bf16.gmra.mrb[0].mxu0 %v2991
    %v3027 = vpop.f32.mrb[0].mxu0
    %v3028 = vadd.f32 %v2976, %v3027
    %v3029 = vpop.f32.mrb[0].mxu0
    %v3030 = vpop.f32.mrb[0].mxu0
    %v3031 = vadd.f32 %v2976, %v3030
    %v3032 = vpop.f32.mrb[0].mxu0
    %3033 = vdwg.mxu0
    %v3034 = vadd.f32 %v1705, %v3028
    %v3035 = vadd.f32 %v1706, %v3031
    %v3036 = vsel %vm354, %v3034, 0.0
    %3037 = vadd.xlane.f32.xlu0 %v3036
    %v3038 = vpop.xlane.xlu0 %3037
    %v3039 = vsel %vm354, %v3035, 0.0
    %3040 = vadd.xlane.f32.xlu0 %v3039
    %v3041 = vpop.xlane.xlu0 %3040
    %v3042 = vmul.f32 %v3038, %v361
    %v3043 = vmul.f32 %v3041, %v361
    %v3044 = vsub.f32 %v3034, %v3042
    %v3045 = vsub.f32 %v3035, %v3043
    %v3046 = vmul.f32 %v3044, %v3044
    %v3047 = vmul.f32 %v3045, %v3045
    %v3048 = vsel %vm354, %v3046, 0.0
    %3049 = vadd.xlane.f32.xlu0 %v3048
    %v3050 = vpop.xlane.xlu0 %3049
    %v3051 = vsel %vm354, %v3047, 0.0
    %3052 = vadd.xlane.f32.xlu0 %v3051
    %v3053 = vpop.xlane.xlu0 %3052
    %v3054 = vmul.f32 %v3050, %v361
    %v3055 = vmul.f32 %v3053, %v361
    %v3056 = vadd.f32 %v3054, 1e-05
    %v3057 = vadd.f32 %v3055, 1e-05
    %v3058 = vrsqrt.pop %v3056
    %v3059 = vrsqrt.pop %v3057
    %v3060 = vmul.f32 %v3044, %v3058
    %v3061 = vmul.f32 %v3045, %v3059
    %v3062 = vld [vmem:[#allocation19] sm:$0x1]
    %v3064 = vlaneseq
    %v3065 = vshrl.u32 %v3064, 7
    %v3066 = vsub.s32 0, %v3065
    %v3067 = vrot.slane %v3062, %v3066
    %v3069 = vmul.f32 %v3060, %v3067
    %v3070 = vmul.f32 %v3061, %v3067
    %v3071 = vld [vmem:[#allocation20] sm:$0x1]
    %v3073 = vlaneseq
    %v3074 = vshrl.u32 %v3073, 7
    %v3075 = vsub.s32 0, %v3074
    %v3076 = vrot.slane %v3071, %v3075
    %v3078 = vadd.f32 %v3069, %v3076
    %v3079 = vadd.f32 %v3070, %v3076
    %v3080 = vpack.c.bf16 %v3079, %v3078
    %v3081 = vld [vmem:[%s53] sm:$0xf]
    %v3082 = vld [vmem:[%s53 + $0x4] sm:$0xf]
    %v3083 = vld [vmem:[%s53 + $0x8] sm:$0xf]
    %v3084 = vld [vmem:[%s53 + $0xc] sm:$0xf]
    %v3085 = vld [vmem:[%s55] sm:$0x1]
    %v3087 = vlaneseq
    %v3088 = vshrl.u32 %v3087, 7
    %v3089 = vsub.s32 0, %v3088
    %v3090 = vrot.slane %v3085, %v3089
    %v3096 = vunpack.c.l.b16 %v3081
    %v3097 = vunpack.c.l.b16 %v3082
    %v3098 = vunpack.c.l.b16 %v3083
    %v3099 = vunpack.c.l.b16 %v3084
    %v3100 = vpack.c.b16 %v3097, %v3096
    %v3101 = vpack.c.b16 %v3099, %v3098
    %v3105 = vsel %vm354, %v3080, 0
    %3107 = vmatprep.subr.bf16.mxu0 0
    %3108 = vmatpush1.bf16.msra.mxu0 %v3100
    %3109 = vmatprep.subr.bf16.mxu0 0
    %3110 = vmatpush1.bf16.msra.mxu0 %v3101
    %3111 = vmatprep.subr.bf16.mxu0 0
    %3112 = vmatpush1.bf16.msra.mxu0 0
    %3113 = vmatprep.subr.bf16.mxu0 0
    %3114 = vmatpush1.bf16.msra.mxu0 0
    %3115 = vmatprep.subr.bf16.mxu0 0
    %3116 = vmatpush1.bf16.msra.mxu0 0
    %3117 = vmatprep.subr.bf16.mxu0 0
    %3118 = vmatpush1.bf16.msra.mxu0 0
    %3119 = vmatprep.subr.bf16.mxu0 0
    %3120 = vmatpush1.bf16.msra.mxu0 0
    %3121 = vmatprep.subr.bf16.mxu0 0
    %3122 = vmatpush1.bf16.msra.mxu0 0
    %3123 = vmatprep.subr.bf16.mxu0 0
    %3124 = vmatpush1.bf16.msra.mxu0 0
    %3125 = vmatprep.subr.bf16.mxu0 0
    %3126 = vmatpush1.bf16.msra.mxu0 0
    %3127 = vmatprep.subr.bf16.mxu0 0
    %3128 = vmatpush1.bf16.msra.mxu0 0
    %3129 = vmatprep.subr.bf16.mxu0 0
    %3130 = vmatpush1.bf16.msra.mxu0 0
    %3131 = vmatprep.subr.bf16.mxu0 0
    %3132 = vmatpush1.bf16.msra.mxu0 0
    %3133 = vmatprep.subr.bf16.mxu0 0
    %3134 = vmatpush1.bf16.msra.mxu0 0
    %3135 = vmatprep.subr.bf16.mxu0 0
    %3136 = vmatpush1.bf16.msra.mxu0 0
    %3137 = vmatprep.subr.bf16.mxu0 0
    %3138 = vmatpush1.bf16.msra.mxu0 0
    %3139 = vmatprep.mubr.bf16.mxu0 0
    %3140 = vmatmul.mubr.bf16.gmra.mrb[0].mxu0 %v3105
    %v3141 = vpop.f32.mrb[0].mxu0
    %v3142 = vadd.f32 %v3090, %v3141
    %v3143 = vpop.f32.mrb[0].mxu0
    %v3144 = vpop.f32.mrb[0].mxu0
    %v3145 = vadd.f32 %v3090, %v3144
    %v3146 = vpop.f32.mrb[0].mxu0
    %3147 = vdwg.mxu0
    %v3148 = vmax.f32 %v3142, 0.0
    %v3149 = vmax.f32 %v3145, 0.0
    %v3150 = vpack.c.bf16 %v3149, %v3148
    %v3151 = vld [vmem:[%s57] sm:$0xf]
    %v3152 = vld [vmem:[%s57 + $0x4] sm:$0xf]
    %v3153 = vld [vmem:[%s57 + $0x8] sm:$0xf]
    %v3154 = vld [vmem:[%s57 + $0xc] sm:$0xf]
    %v3155 = vld [vmem:[%s57 + $0x10] sm:$0xf]
    %v3156 = vld [vmem:[%s57 + $0x14] sm:$0xf]
    %v3157 = vld [vmem:[%s57 + $0x18] sm:$0xf]
    %v3158 = vld [vmem:[%s57 + $0x1c] sm:$0xf]
    %v3159 = vld [vmem:[%s59] sm:$0x1]
    %v3161 = vlaneseq
    %v3162 = vshrl.u32 %v3161, 7
    %v3163 = vsub.s32 0, %v3162
    %v3164 = vrot.slane %v3159, %v3163
    %v3174 = vunpack.c.l.b16 %v3151
    %v3175 = vunpack.c.l.b16 %v3152
    %v3176 = vunpack.c.l.b16 %v3153
    %v3177 = vunpack.c.l.b16 %v3154
    %v3178 = vunpack.c.l.b16 %v3155
    %v3179 = vunpack.c.l.b16 %v3156
    %v3180 = vunpack.c.l.b16 %v3157
    %v3181 = vunpack.c.l.b16 %v3158
    %v3182 = vpack.c.b16 %v3175, %v3174
    %v3183 = vpack.c.b16 %v3177, %v3176
    %v3184 = vpack.c.b16 %v3179, %v3178
    %v3185 = vpack.c.b16 %v3181, %v3180
    %vm3190 = vcmask 523264
    %v3192 = vsel %vm3190, %v3150, 0
    %3194 = vmatprep.subr.bf16.mxu0 0
    %3195 = vmatpush1.bf16.msra.mxu0 %v3182
    %3196 = vmatprep.subr.bf16.mxu0 0
    %3197 = vmatpush1.bf16.msra.mxu0 %v3183
    %3198 = vmatprep.subr.bf16.mxu0 0
    %3199 = vmatpush1.bf16.msra.mxu0 %v3184
    %3200 = vmatprep.subr.bf16.mxu0 0
    %3201 = vmatpush1.bf16.msra.mxu0 %v3185
    %3202 = vmatprep.subr.bf16.mxu0 0
    %3203 = vmatpush1.bf16.msra.mxu0 0
    %3204 = vmatprep.subr.bf16.mxu0 0
    %3205 = vmatpush1.bf16.msra.mxu0 0
    %3206 = vmatprep.subr.bf16.mxu0 0
    %3207 = vmatpush1.bf16.msra.mxu0 0
    %3208 = vmatprep.subr.bf16.mxu0 0
    %3209 = vmatpush1.bf16.msra.mxu0 0
    %3210 = vmatprep.subr.bf16.mxu0 0
    %3211 = vmatpush1.bf16.msra.mxu0 0
    %3212 = vmatprep.subr.bf16.mxu0 0
    %3213 = vmatpush1.bf16.msra.mxu0 0
    %3214 = vmatprep.subr.bf16.mxu0 0
    %3215 = vmatpush1.bf16.msra.mxu0 0
    %3216 = vmatprep.subr.bf16.mxu0 0
    %3217 = vmatpush1.bf16.msra.mxu0 0
    %3218 = vmatprep.subr.bf16.mxu0 0
    %3219 = vmatpush1.bf16.msra.mxu0 0
    %3220 = vmatprep.subr.bf16.mxu0 0
    %3221 = vmatpush1.bf16.msra.mxu0 0
    %3222 = vmatprep.subr.bf16.mxu0 0
    %3223 = vmatpush1.bf16.msra.mxu0 0
    %3224 = vmatprep.subr.bf16.mxu0 0
    %3225 = vmatpush1.bf16.msra.mxu0 0
    %3226 = vmatprep.mubr.bf16.mxu0 0
    %3227 = vmatmul.mubr.bf16.gmra.mrb[0].mxu0 %v3192
    %v3228 = vpop.f32.mrb[0].mxu0
    %v3229 = vadd.f32 %v3164, %v3228
    %v3230 = vpop.f32.mrb[0].mxu0
    %v3231 = vpop.f32.mrb[0].mxu0
    %v3232 = vadd.f32 %v3164, %v3231
    %v3233 = vpop.f32.mrb[0].mxu0
    %3234 = vdwg.mxu0
    %v3235 = vadd.f32 %v3034, %v3229
    %v3236 = vadd.f32 %v3035, %v3232
    %3237 = vst.msk [vmem:[#allocation37] sm:$0xff] %vm354, %v3235
    %3238 = vst.msk [vmem:[#allocation37 + $0x8] sm:$0xff] %vm354, %v3236
    // Predicated region
    $region194: #{tpu_custom_call.1} parent=1 // pred_check
      _
    $region195: #{tpu_custom_call.1} parent=1 // pred_check_branch
      %3240 = sbr.rel (0) target = $region197
    $region196: #{tpu_custom_call.1} parent=1 // pred_region
      %s3242 = ssub.s32 256, 256
      %3243 = vsyncadd [#allocation10], %s3242
      %s3244 = sshll.u32 [#allocation37], 4
      %s3245 = int_to_ptr.vmem [resolvable:$true] %s3244
      %3250 = dma.vmem_to_hbm [thread:$0]  %s3245, 256, %s61, [#allocation10], 128, 128, 8
    $region197: #{tpu_custom_call.1} parent=1 // pred_fallthru
      _
    // Predicated region
    $region198: #{tpu_custom_call.1} parent=1 // pred_check
      _
    $region199: #{tpu_custom_call.1} parent=1 // pred_check_branch
      %3252 = sbr.rel (0) target = $region201
    $region200: #{tpu_custom_call.1} parent=1 // pred_region
      %3253 = dma.done [#allocation10], 256
    $region201: #{tpu_custom_call.1} parent=1 // pred_fallthru
      _
    %3254 = vsyncpa [#allocation9], 1
    %3255 = vsyncpa [#allocation12], 1
    %3256 = vsyncpa [#allocation15], 1
    %3257 = vsyncpa [#allocation18], 1
    %3258 = vsyncpa [#allocation21], 1
    %3259 = vsyncpa [#allocation24], 1
    %3260 = vsyncpa [#allocation27], 1
    %3261 = vsyncpa [#allocation30], 1
    %3262 = vsyncpa [#allocation33], 1
    %3263 = vsyncpa [#allocation36], 1
    %3264 = vsyncpa [#allocation10], 1

</llo_original>
